<compile_context>
chip_gen: v7x
topology: tpu7x:2x2x1
jax: 0.10.0
libtpu: 0.0.40
codegen_flags: <defaults>
</compile_context>

<pallas_src>
import math

import jax
import jax.numpy as jnp
from jax import lax
from jax.experimental import pallas as pl
from jax.experimental.pallas import tpu as pltpu


def _round_up(x, m):
    return (x + m - 1) // m * m


def bilstm_attention_kernel(
    lens_ref,     # [Bt, 1]   int32 valid lengths
    mask_ref,     # [Bt, T]   f32 attention mask (1 = valid), lane-dense
    x_ref,        # [T, Bt, D] embedded inputs (time-major)
    wih_ref,      # [D, 8H]   fused fwd|bwd input projection
    bih_ref,      # [1, 8H]   fused gate biases
    whf_ref,      # [H, 4H]   forward recurrent weights
    whb_ref,      # [H, 4H]   backward recurrent weights
    wattf_ref,    # [H, A]    attention projection, forward half
    wattb_ref,    # [H, A]    attention projection, backward half
    batt_ref,     # [1, A]
    vatt_ref,     # [1, A]    attention context vector (row layout)
    wmlpf_ref,    # [H, M]    mlp weights, forward half
    wmlpb_ref,    # [H, M]    mlp weights, backward half
    bmlp_ref,     # [1, M]
    wcls_ref,     # [M, Cp]   classifier (columns zero-padded to Cp)
    bcls_ref,     # [1, Cp]
    logits_ref,   # out: [Bt, Cp]
    alpha_ref,    # out: [Bt, T]  lane-dense attention weights
    gxf_ref,      # scratch: [T, Bt, 4H]  hoisted fwd input-projected gates (+bias)
    gxb_ref,      # scratch: [T, Bt, 4H]  hoisted bwd input-projected gates (+bias)
    hf_ref,       # scratch: [T, Bt, H]   forward hidden states
    hb_ref,       # scratch: [T, Bt, H]   backward hidden states
):
    T, Bt, D = x_ref.shape
    H = whf_ref.shape[0]
    f32 = jnp.float32

    # ---- phase 1: hoisted input projection (one big MXU matmul, bias folded) --
    x2d = x_ref[...].reshape(T * Bt, D)
    gx = jnp.dot(x2d, wih_ref[...], preferred_element_type=f32) + bih_ref[...]
    # Split fwd/bwd halves ONCE here so the recurrence never slices lanes.
    gxf_ref[...] = gx[:, 0:4 * H].reshape(T, Bt, 4 * H)
    gxb_ref[...] = gx[:, 4 * H:8 * H].reshape(T, Bt, 4 * H)

    whf = whf_ref[...]
    whb = whb_ref[...]
    lens = lens_ref[...]                                  # [Bt, 1] int32

    def gate_math(gates, c_prev):
        # PyTorch gate order (i, f, g, o).
        i = jax.nn.sigmoid(gates[:, 0 * H:1 * H])
        f = jax.nn.sigmoid(gates[:, 1 * H:2 * H])
        g = jnp.tanh(gates[:, 2 * H:3 * H])
        o = jax.nn.sigmoid(gates[:, 3 * H:4 * H])
        c_new = f * c_prev + i * g
        h_new = o * jnp.tanh(c_new)
        return h_new, c_new

    # ---- phase 2: fused fwd/bwd recurrence (states carried in registers) -----
    def step(s, carry):
        h_f, c_f, h_b, c_b = carry
        tf = s
        tb = T - 1 - s
        gates_f = gxf_ref[tf] + jnp.dot(
            h_f.astype(whf.dtype), whf, preferred_element_type=f32)
        gates_b = gxb_ref[tb] + jnp.dot(
            h_b.astype(whb.dtype), whb, preferred_element_type=f32)
        hf_new, cf_new = gate_math(gates_f, c_f)
        hb_new, cb_new = gate_math(gates_b, c_b)
        vf = lens > tf                                    # [Bt, 1]
        vb = lens > tb                                    # [Bt, 1]
        hf_ref[tf] = jnp.where(vf, hf_new, 0.0)           # padded steps emit 0
        hb_ref[tb] = jnp.where(vb, hb_new, 0.0)
        return (jnp.where(vf, hf_new, h_f), jnp.where(vf, cf_new, c_f),
                jnp.where(vb, hb_new, h_b), jnp.where(vb, cb_new, c_b))

    z_bh = jnp.zeros((Bt, H), f32)
    lax.fori_loop(0, T, step, (z_bh, z_bh, z_bh, z_bh),
                  unroll=True if T <= 32 else 8)

    # ---- phase 3: attention scores v^T tanh(W [hf; hb] + b), batched over T*Bt
    hf2d = hf_ref[...].reshape(T * Bt, H)
    hb2d = hb_ref[...].reshape(T * Bt, H)
    u = jnp.tanh(
        jnp.dot(hf2d.astype(wattf_ref.dtype), wattf_ref[...],
                preferred_element_type=f32)
        + jnp.dot(hb2d.astype(wattb_ref.dtype), wattb_ref[...],
                  preferred_element_type=f32)
        + batt_ref[...])
    # VPU multiply + lane reduce instead of an N=1 matmul.
    s_col = jnp.sum(u * vatt_ref[...], axis=-1, keepdims=True)   # [T*Bt, 1]

    # ---- masked softmax over time, lane-dense [Bt, T] layout ------------------
    scores = s_col.reshape(T, Bt).T                               # [Bt, T]
    scores = jnp.where(mask_ref[...] > 0.0, scores, -1e9)
    smax = jnp.max(scores, axis=-1, keepdims=True)
    e = jnp.exp(scores - smax)
    z = jnp.sum(e, axis=-1, keepdims=True)
    alpha_bt = e * pl.reciprocal(z, approx=True)                  # [Bt, T]
    alpha_ref[...] = alpha_bt.astype(alpha_ref.dtype)

    # ---- weighted sum over time (split halves, no [hf; hb] concat) ------------
    alpha_tb1 = alpha_bt.T.reshape(T, Bt, 1)
    sent_f = jnp.sum(alpha_tb1 * hf_ref[...], axis=0)             # [Bt, H]
    sent_b = jnp.sum(alpha_tb1 * hb_ref[...], axis=0)             # [Bt, H]

    # ---- MLP + classifier (dropout identity in eval; no hidden activation) ----
    mlp = (jnp.dot(sent_f.astype(wmlpf_ref.dtype), wmlpf_ref[...],
                   preferred_element_type=f32)
           + jnp.dot(sent_b.astype(wmlpb_ref.dtype), wmlpb_ref[...],
                     preferred_element_type=f32)
           + bmlp_ref[...])
    logits = jnp.dot(mlp.astype(wcls_ref.dtype), wcls_ref[...],
                     preferred_element_type=f32) + bcls_ref[...]
    logits_ref[...] = logits.astype(logits_ref.dtype)


def bilstm_attention_forward(word_inputs, mask, seq_lengths, params,
                             return_alpha=False, batch_tile=None,
                             use_bf16_matmul=False):
    """word_inputs: [B, T] int32, mask: [B, T], seq_lengths: [B]."""
    emb = params["embedding"]
    B, T = word_inputs.shape
    H = params["w_hh_f"].shape[0]
    A = params["w_att"].shape[1]
    C = params["w_cls"].shape[1]
    D = emb.shape[1]

    # MXU input dtype (accumulation and state math stay float32).
    mm_dtype = jnp.bfloat16 if use_bf16_matmul else jnp.float32

    # Embedding lookup is glue (gather) in plain JAX; dropout == identity (eval).
    x = jnp.take(emb, word_inputs, axis=0)                        # [B, T, D]
    x_tm = jnp.transpose(x, (1, 0, 2))                            # [T, B, D]

    # ---- batch grid: pick tile, keep per-tile scratch well under scoped VMEM --
    if batch_tile is None:
        batch_tile = min(128, _round_up(B, 8))
        # scratch per tile: gxf+gxb (8H) + hf+hb (2H), all f32, T deep.
        while (batch_tile > 8 and
               4 * T * batch_tile * (10 * H) > 12 * 1024 * 1024):
            batch_tile = _round_up(max(8, batch_tile // 2), 8)
    Bt = batch_tile
    Bp = _round_up(B, Bt)
    mask = mask.astype(jnp.float32)
    seq_lengths = seq_lengths.astype(jnp.int32)
    if Bp != B:
        pad = Bp - B
        x_tm = jnp.pad(x_tm, ((0, 0), (0, pad), (0, 0)))
        mask = jnp.pad(mask, ((0, pad), (0, 0)))
        seq_lengths = jnp.pad(seq_lengths, (0, pad))
    x_tm = x_tm.astype(mm_dtype)
    lens = seq_lengths.reshape(Bp, 1)                             # [Bp, 1]

    # ---- weight preprocessing (pure XLA glue) ---------------------------------
    w_ih = jnp.concatenate([params["w_ih_f"], params["w_ih_b"]],
                           axis=1).astype(mm_dtype)               # [D, 8H]
    b_ih = jnp.concatenate([params["b_f"], params["b_b"]],
                           axis=1).astype(jnp.float32)            # [1, 8H]
    w_hh_f = params["w_hh_f"].astype(mm_dtype)                    # [H, 4H]
    w_hh_b = params["w_hh_b"].astype(mm_dtype)                    # [H, 4H]
    w_att_f = params["w_att"][:H].astype(mm_dtype)                # [H, A]
    w_att_b = params["w_att"][H:].astype(mm_dtype)                # [H, A]
    b_att = params["b_att"].astype(jnp.float32)                   # [1, A]
    v_att = params["v_att"].reshape(1, A).astype(jnp.float32)     # [1, A]
    w_mlp_f = params["w_mlp"][:H].astype(mm_dtype)                # [H, M]
    w_mlp_b = params["w_mlp"][H:].astype(mm_dtype)                # [H, M]
    b_mlp = params["b_mlp"].astype(jnp.float32)                   # [1, M]

    # Zero-pad classifier columns to a lane-dense width (unmasked vst for the
    # logits store; zero extra MXU cost since the MXU tile is >= 128 wide).
    Cp = _round_up(C, 128)
    w_cls = params["w_cls"].astype(mm_dtype)                      # [M, C]
    b_cls = params["b_cls"].astype(jnp.float32)                   # [1, C]
    if Cp != C:
        w_cls = jnp.pad(w_cls, ((0, 0), (0, Cp - C)))
        b_cls = jnp.pad(b_cls, ((0, 0), (0, Cp - C)))

    inputs = (lens, mask, x_tm, w_ih, b_ih, w_hh_f, w_hh_b,
              w_att_f, w_att_b, b_att, v_att, w_mlp_f, w_mlp_b, b_mlp,
              w_cls, b_cls)

    def _full(a):
        nd = a.ndim
        return pl.BlockSpec(a.shape, lambda i, _nd=nd: (0,) * _nd)

    in_specs = [
        pl.BlockSpec((Bt, 1), lambda i: (i, 0)),                  # lens
        pl.BlockSpec((Bt, T), lambda i: (i, 0)),                  # mask
        pl.BlockSpec((T, Bt, D), lambda i: (0, i, 0)),            # x (time-major)
    ] + [_full(a) for a in inputs[3:]]

    out_specs = [
        pl.BlockSpec((Bt, Cp), lambda i: (i, 0)),                 # logits (padded)
        pl.BlockSpec((Bt, T), lambda i: (i, 0)),                  # alpha
    ]

    grid = (Bp // Bt,)

    logits_p, alpha_p = pl.pallas_call(
        bilstm_attention_kernel,
        out_shape=(
            jax.ShapeDtypeStruct((Bp, Cp), jnp.float32),
            jax.ShapeDtypeStruct((Bp, T), jnp.float32),
        ),
        grid_spec=pltpu.PrefetchScalarGridSpec(
            num_scalar_prefetch=0,
            grid=grid,
            in_specs=in_specs,
            out_specs=out_specs,
            scratch_shapes=[
                pltpu.VMEM((T, Bt, 4 * H), jnp.float32),  # fwd gate proj.
                pltpu.VMEM((T, Bt, 4 * H), jnp.float32),  # bwd gate proj.
                pltpu.VMEM((T, Bt, H), jnp.float32),      # forward hidden
                pltpu.VMEM((T, Bt, H), jnp.float32),      # backward hidden
            ],
        ),
        compiler_params=pltpu.CompilerParams(
            dimension_semantics=("parallel",),
            vmem_limit_bytes=32 * 1024 * 1024),
    )(*inputs)

    logits = logits_p[:B, :C]
    alpha = alpha_p[:B]
    if return_alpha:
        return logits, alpha
    return logits


def init_params(key, vocab_size, word_dim, lstm_dim, mlp_dim, n_class):
    H = lstm_dim
    A = lstm_dim           # attention projection dim (SelfAttention(2H, H))
    ks = jax.random.split(key, 16)

    def u(k, shape, scale):
        return jax.random.uniform(k, shape, jnp.float32, -scale, scale)

    s_lstm = 1.0 / math.sqrt(H)
    s_att = 1.0 / math.sqrt(2 * H)
    s_v = 1.0 / math.sqrt(A)
    s_mlp = 1.0 / math.sqrt(2 * H)
    s_cls = 1.0 / math.sqrt(mlp_dim)

    return {
        "embedding": u(ks[0], (vocab_size, word_dim), 0.1),
        # forward LSTM (PyTorch gate order i,f,g,o; weights stored [in, 4H])
        "w_ih_f": u(ks[1], (word_dim, 4 * H), s_lstm),
        "w_hh_f": u(ks[2], (H, 4 * H), s_lstm),
        "b_f":    u(ks[3], (1, 4 * H), s_lstm),
        # backward LSTM
        "w_ih_b": u(ks[4], (word_dim, 4 * H), s_lstm),
        "w_hh_b": u(ks[5], (H, 4 * H), s_lstm),
        "b_b":    u(ks[6], (1, 4 * H), s_lstm),
        # self-attention: v^T tanh(W h + b)
        "w_att":  u(ks[7], (2 * H, A), s_att),
        "b_att":  u(ks[8], (1, A), s_att),
        "v_att":  u(ks[9], (A, 1), s_v),
        # mlp + classifier
        "w_mlp":  u(ks[10], (2 * H, mlp_dim), s_mlp),
        "b_mlp":  u(ks[11], (1, mlp_dim), s_mlp),
        "w_cls":  u(ks[12], (mlp_dim, n_class), s_cls),
        "b_cls":  u(ks[13], (1, n_class), s_cls),
    }


if __name__ == "__main__":
    vocab_size, word_dim, lstm_dim, mlp_dim, n_class = 100, 16, 32, 32, 4
    B, T = 2, 8

    key = jax.random.PRNGKey(0)
    k_param, k_words = jax.random.split(key)
    params = init_params(k_param, vocab_size, word_dim, lstm_dim, mlp_dim,
                         n_class)

    word_inputs = jax.random.randint(k_words, (B, T), 0, vocab_size,
                                     dtype=jnp.int32)
    seq_lengths = jnp.array([T, T - 2], dtype=jnp.int32)
    mask = (jnp.arange(T)[None, :] < seq_lengths[:, None]).astype(jnp.float32)

    logits, alpha = bilstm_attention_forward(word_inputs, mask, seq_lengths,
                                             params, return_alpha=True)
    jax.block_until_ready((logits, alpha))
    assert logits.shape == (B, n_class)
    assert alpha.shape == (B, T)
    print("KERNEL_OK")
</pallas_src>

<mosaic_0001>
module attributes {stable_mosaic.version = 11 : i64} {
  func.func @bilstm_attention_kernel(%arg0: i32, %arg1: memref<8x1xi32, #tpu.memory_space<vmem>>, %arg2: memref<8x8xf32, #tpu.memory_space<vmem>>, %arg3: memref<8x8x16xf32, #tpu.memory_space<vmem>>, %arg4: memref<16x256xf32, #tpu.memory_space<vmem>>, %arg5: memref<1x256xf32, #tpu.memory_space<vmem>>, %arg6: memref<32x128xf32, #tpu.memory_space<vmem>>, %arg7: memref<32x128xf32, #tpu.memory_space<vmem>>, %arg8: memref<32x32xf32, #tpu.memory_space<vmem>>, %arg9: memref<32x32xf32, #tpu.memory_space<vmem>>, %arg10: memref<1x32xf32, #tpu.memory_space<vmem>>, %arg11: memref<1x32xf32, #tpu.memory_space<vmem>>, %arg12: memref<32x32xf32, #tpu.memory_space<vmem>>, %arg13: memref<32x32xf32, #tpu.memory_space<vmem>>, %arg14: memref<1x32xf32, #tpu.memory_space<vmem>>, %arg15: memref<32x128xf32, #tpu.memory_space<vmem>>, %arg16: memref<1x128xf32, #tpu.memory_space<vmem>>, %arg17: memref<8x128xf32, #tpu.memory_space<vmem>>, %arg18: memref<8x8xf32, #tpu.memory_space<vmem>>, %arg19: memref<8x8x128xf32, #tpu.memory_space<vmem>>, %arg20: memref<8x8x128xf32, #tpu.memory_space<vmem>>, %arg21: memref<8x8x32xf32, #tpu.memory_space<vmem>>, %arg22: memref<8x8x32xf32, #tpu.memory_space<vmem>>) attributes {dimension_semantics = [#tpu.dimension_semantics<parallel>], iteration_bounds = array<i64: 1>, scalar_prefetch = 0 : i64, scratch_operands = 4 : i64, tpu.core_type = #tpu.core_type<tc>, window_params = [{transform_indices = @transform_0, window_bounds = array<i64: 8, 1>}, {transform_indices = @transform_1, window_bounds = array<i64: 8, 8>}, {transform_indices = @transform_2, window_bounds = array<i64: 8, 8, 16>}, {pipeline_mode = #tpu.pipeline_mode<synchronous>, transform_indices = @transform_3, window_bounds = array<i64: 16, 256>}, {pipeline_mode = #tpu.pipeline_mode<synchronous>, transform_indices = @transform_4, window_bounds = array<i64: 1, 256>}, {pipeline_mode = #tpu.pipeline_mode<synchronous>, transform_indices = @transform_5, window_bounds = array<i64: 32, 128>}, {pipeline_mode = #tpu.pipeline_mode<synchronous>, transform_indices = @transform_6, window_bounds = array<i64: 32, 128>}, {pipeline_mode = #tpu.pipeline_mode<synchronous>, transform_indices = @transform_7, window_bounds = array<i64: 32, 32>}, {pipeline_mode = #tpu.pipeline_mode<synchronous>, transform_indices = @transform_8, window_bounds = array<i64: 32, 32>}, {pipeline_mode = #tpu.pipeline_mode<synchronous>, transform_indices = @transform_9, window_bounds = array<i64: 1, 32>}, {pipeline_mode = #tpu.pipeline_mode<synchronous>, transform_indices = @transform_10, window_bounds = array<i64: 1, 32>}, {pipeline_mode = #tpu.pipeline_mode<synchronous>, transform_indices = @transform_11, window_bounds = array<i64: 32, 32>}, {pipeline_mode = #tpu.pipeline_mode<synchronous>, transform_indices = @transform_12, window_bounds = array<i64: 32, 32>}, {pipeline_mode = #tpu.pipeline_mode<synchronous>, transform_indices = @transform_13, window_bounds = array<i64: 1, 32>}, {pipeline_mode = #tpu.pipeline_mode<synchronous>, transform_indices = @transform_14, window_bounds = array<i64: 32, 128>}, {pipeline_mode = #tpu.pipeline_mode<synchronous>, transform_indices = @transform_15, window_bounds = array<i64: 1, 128>}, {transform_indices = @transform_16, window_bounds = array<i64: 8, 128>}, {transform_indices = @transform_17, window_bounds = array<i64: 8, 8>}]} {
    %c0 = arith.constant 0 : index
    %c0_0 = arith.constant 0 : index
    %c0_1 = arith.constant 0 : index
    %0 = vector.load %arg3[%c0, %c0_0, %c0_1] : memref<8x8x16xf32, #tpu.memory_space<vmem>>, vector<8x8x16xf32>
    %1 = vector.shape_cast %0 : vector<8x8x16xf32> to vector<64x16xf32>
    %c0_2 = arith.constant 0 : index
    %c0_3 = arith.constant 0 : index
    %2 = vector.load %arg4[%c0_2, %c0_3] : memref<16x256xf32, #tpu.memory_space<vmem>>, vector<16x256xf32>
    %cst = arith.constant dense<0.000000e+00> : vector<64x256xf32>
    %3 = tpu.matmul %1, %2, %cst {dimension_numbers = #tpu.dot_dimension_numbers<[1], [0], [0], [1], [0, 0, 1, 1], [], []>} : vector<64x16xf32>, vector<16x256xf32>, vector<64x256xf32> -> vector<64x256xf32>
    %c0_4 = arith.constant 0 : index
    %c0_5 = arith.constant 0 : index
    %4 = vector.load %arg5[%c0_4, %c0_5] : memref<1x256xf32, #tpu.memory_space<vmem>>, vector<1x256xf32>
    %5 = vector.broadcast %4 : vector<1x256xf32> to vector<64x256xf32>
    %6 = arith.addf %3, %5 : vector<64x256xf32>
    %7 = vector.extract_strided_slice %6 {offsets = [0, 0], sizes = [64, 128], strides = [1, 1]} : vector<64x256xf32> to vector<64x128xf32>
    %8 = vector.shape_cast %7 : vector<64x128xf32> to vector<8x8x128xf32>
    %c0_6 = arith.constant 0 : index
    %c0_7 = arith.constant 0 : index
    %c0_8 = arith.constant 0 : index
    %9 = vector.load %arg19[%c0_6, %c0_7, %c0_8] : memref<8x8x128xf32, #tpu.memory_space<vmem>>, vector<8x8x128xf32>
    tpu.vector_store %arg19[%c0_6, %c0_7, %c0_8], %8 {strides = array<i32>} : memref<8x8x128xf32, #tpu.memory_space<vmem>>, vector<8x8x128xf32>,
    %10 = vector.extract_strided_slice %6 {offsets = [0, 128], sizes = [64, 128], strides = [1, 1]} : vector<64x256xf32> to vector<64x128xf32>
    %11 = vector.shape_cast %10 : vector<64x128xf32> to vector<8x8x128xf32>
    %c0_9 = arith.constant 0 : index
    %c0_10 = arith.constant 0 : index
    %c0_11 = arith.constant 0 : index
    %12 = vector.load %arg20[%c0_9, %c0_10, %c0_11] : memref<8x8x128xf32, #tpu.memory_space<vmem>>, vector<8x8x128xf32>
    tpu.vector_store %arg20[%c0_9, %c0_10, %c0_11], %11 {strides = array<i32>} : memref<8x8x128xf32, #tpu.memory_space<vmem>>, vector<8x8x128xf32>,
    %c0_12 = arith.constant 0 : index
    %c0_13 = arith.constant 0 : index
    %13 = vector.load %arg6[%c0_12, %c0_13] : memref<32x128xf32, #tpu.memory_space<vmem>>, vector<32x128xf32>
    %c0_14 = arith.constant 0 : index
    %c0_15 = arith.constant 0 : index
    %14 = vector.load %arg7[%c0_14, %c0_15] : memref<32x128xf32, #tpu.memory_space<vmem>>, vector<32x128xf32>
    %c0_16 = arith.constant 0 : index
    %c0_17 = arith.constant 0 : index
    %15 = vector.load %arg1[%c0_16, %c0_17] : memref<8x1xi32, #tpu.memory_space<vmem>>, vector<8x1xi32>
    %cst_18 = arith.constant 0.000000e+00 : f32
    %16 = vector.broadcast %cst_18 : f32 to vector<8x32xf32>
    %c0_i32 = arith.constant 0 : i32
    %c7_i32 = arith.constant 7 : i32
    %17 = arith.subi %c7_i32, %c0_i32 : i32
    %18 = arith.index_cast %c0_i32 : i32 to index
    %c0_19 = arith.constant 0 : index
    %c0_20 = arith.constant 0 : index
    %19 = vector.load %arg19[%18, %c0_19, %c0_20] : memref<8x8x128xf32, #tpu.memory_space<vmem>>, vector<1x8x128xf32>
    %20 = vector.shape_cast %19 : vector<1x8x128xf32> to vector<8x128xf32>
    %cst_21 = arith.constant dense<0.000000e+00> : vector<8x128xf32>
    %21 = tpu.matmul %16, %13, %cst_21 {dimension_numbers = #tpu.dot_dimension_numbers<[1], [0], [0], [1], [0, 0, 1, 1], [], []>} : vector<8x32xf32>, vector<32x128xf32>, vector<8x128xf32> -> vector<8x128xf32>
    %22 = arith.addf %20, %21 : vector<8x128xf32>
    %23 = arith.index_cast %17 : i32 to index
    %c0_22 = arith.constant 0 : index
    %c0_23 = arith.constant 0 : index
    %24 = vector.load %arg20[%23, %c0_22, %c0_23] : memref<8x8x128xf32, #tpu.memory_space<vmem>>, vector<1x8x128xf32>
    %25 = vector.shape_cast %24 : vector<1x8x128xf32> to vector<8x128xf32>
    %cst_24 = arith.constant dense<0.000000e+00> : vector<8x128xf32>
    %26 = tpu.matmul %16, %14, %cst_24 {dimension_numbers = #tpu.dot_dimension_numbers<[1], [0], [0], [1], [0, 0, 1, 1], [], []>} : vector<8x32xf32>, vector<32x128xf32>, vector<8x128xf32> -> vector<8x128xf32>
    %27 = arith.addf %25, %26 : vector<8x128xf32>
    %28 = vector.extract_strided_slice %22 {offsets = [0, 0], sizes = [8, 32], strides = [1, 1]} : vector<8x128xf32> to vector<8x32xf32>
    %29 = arith.negf %28 : vector<8x32xf32>
    %30 = math.exp %29 : vector<8x32xf32>
    %cst_25 = arith.constant 1.000000e+00 : f32
    %31 = vector.broadcast %cst_25 : f32 to vector<8x32xf32>
    %32 = arith.addf %31, %30 : vector<8x32xf32>
    %33 = arith.divf %31, %32 : vector<8x32xf32>
    %34 = vector.extract_strided_slice %22 {offsets = [0, 32], sizes = [8, 32], strides = [1, 1]} : vector<8x128xf32> to vector<8x32xf32>
    %35 = arith.negf %34 : vector<8x32xf32>
    %36 = math.exp %35 : vector<8x32xf32>
    %cst_26 = arith.constant 1.000000e+00 : f32
    %37 = vector.broadcast %cst_26 : f32 to vector<8x32xf32>
    %38 = arith.addf %37, %36 : vector<8x32xf32>
    %39 = arith.divf %37, %38 : vector<8x32xf32>
    %40 = vector.extract_strided_slice %22 {offsets = [0, 64], sizes = [8, 32], strides = [1, 1]} : vector<8x128xf32> to vector<8x32xf32>
    %41 = math.tanh %40 : vector<8x32xf32>
    %42 = vector.extract_strided_slice %22 {offsets = [0, 96], sizes = [8, 32], strides = [1, 1]} : vector<8x128xf32> to vector<8x32xf32>
    %43 = arith.negf %42 : vector<8x32xf32>
    %44 = math.exp %43 : vector<8x32xf32>
    %cst_27 = arith.constant 1.000000e+00 : f32
    %45 = vector.broadcast %cst_27 : f32 to vector<8x32xf32>
    %46 = arith.addf %45, %44 : vector<8x32xf32>
    %47 = arith.divf %45, %46 : vector<8x32xf32>
    %48 = arith.mulf %39, %16 : vector<8x32xf32>
    %49 = arith.mulf %33, %41 : vector<8x32xf32>
    %50 = arith.addf %48, %49 : vector<8x32xf32>
    %51 = math.tanh %50 : vector<8x32xf32>
    %52 = arith.mulf %47, %51 : vector<8x32xf32>
    %53 = vector.extract_strided_slice %27 {offsets = [0, 0], sizes = [8, 32], strides = [1, 1]} : vector<8x128xf32> to vector<8x32xf32>
    %54 = arith.negf %53 : vector<8x32xf32>
    %55 = math.exp %54 : vector<8x32xf32>
    %cst_28 = arith.constant 1.000000e+00 : f32
    %56 = vector.broadcast %cst_28 : f32 to vector<8x32xf32>
    %57 = arith.addf %56, %55 : vector<8x32xf32>
    %58 = arith.divf %56, %57 : vector<8x32xf32>
    %59 = vector.extract_strided_slice %27 {offsets = [0, 32], sizes = [8, 32], strides = [1, 1]} : vector<8x128xf32> to vector<8x32xf32>
    %60 = arith.negf %59 : vector<8x32xf32>
    %61 = math.exp %60 : vector<8x32xf32>
    %cst_29 = arith.constant 1.000000e+00 : f32
    %62 = vector.broadcast %cst_29 : f32 to vector<8x32xf32>
    %63 = arith.addf %62, %61 : vector<8x32xf32>
    %64 = arith.divf %62, %63 : vector<8x32xf32>
    %65 = vector.extract_strided_slice %27 {offsets = [0, 64], sizes = [8, 32], strides = [1, 1]} : vector<8x128xf32> to vector<8x32xf32>
    %66 = math.tanh %65 : vector<8x32xf32>
    %67 = vector.extract_strided_slice %27 {offsets = [0, 96], sizes = [8, 32], strides = [1, 1]} : vector<8x128xf32> to vector<8x32xf32>
    %68 = arith.negf %67 : vector<8x32xf32>
    %69 = math.exp %68 : vector<8x32xf32>
    %cst_30 = arith.constant 1.000000e+00 : f32
    %70 = vector.broadcast %cst_30 : f32 to vector<8x32xf32>
    %71 = arith.addf %70, %69 : vector<8x32xf32>
    %72 = arith.divf %70, %71 : vector<8x32xf32>
    %73 = arith.mulf %64, %16 : vector<8x32xf32>
    %74 = arith.mulf %58, %66 : vector<8x32xf32>
    %75 = arith.addf %73, %74 : vector<8x32xf32>
    %76 = math.tanh %75 : vector<8x32xf32>
    %77 = arith.mulf %72, %76 : vector<8x32xf32>
    %78 = vector.broadcast %c0_i32 : i32 to vector<8x1xi32>
    %79 = arith.cmpi sgt, %15, %78 : vector<8x1xi32>
    %80 = vector.broadcast %17 : i32 to vector<8x1xi32>
    %81 = arith.cmpi sgt, %15, %80 : vector<8x1xi32>
    %cst_31 = arith.constant 0.000000e+00 : f32
    %82 = vector.shape_cast %79 : vector<8x1xi1> to vector<8x1xi1>
    %83 = vector.broadcast %82 : vector<8x1xi1> to vector<8x32xi1>
    %84 = vector.broadcast %cst_31 : f32 to vector<8x32xf32>
    %85 = arith.select %83, %52, %84 : vector<8x32xi1>, vector<8x32xf32>
    %86 = arith.index_cast %c0_i32 : i32 to index
    %c0_32 = arith.constant 0 : index
    %c0_33 = arith.constant 0 : index
    %87 = vector.load %arg21[%86, %c0_32, %c0_33] : memref<8x8x32xf32, #tpu.memory_space<vmem>>, vector<1x8x32xf32>
    %88 = vector.shape_cast %87 : vector<1x8x32xf32> to vector<8x32xf32>
    %89 = vector.shape_cast %85 : vector<8x32xf32> to vector<1x8x32xf32>
    tpu.vector_store %arg21[%86, %c0_32, %c0_33], %89 {strides = array<i32>} : memref<8x8x32xf32, #tpu.memory_space<vmem>>, vector<1x8x32xf32>,
    %cst_34 = arith.constant 0.000000e+00 : f32
    %90 = vector.shape_cast %81 : vector<8x1xi1> to vector<8x1xi1>
    %91 = vector.broadcast %90 : vector<8x1xi1> to vector<8x32xi1>
    %92 = vector.broadcast %cst_34 : f32 to vector<8x32xf32>
    %93 = arith.select %91, %77, %92 : vector<8x32xi1>, vector<8x32xf32>
    %94 = arith.index_cast %17 : i32 to index
    %c0_35 = arith.constant 0 : index
    %c0_36 = arith.constant 0 : index
    %95 = vector.load %arg22[%94, %c0_35, %c0_36] : memref<8x8x32xf32, #tpu.memory_space<vmem>>, vector<1x8x32xf32>
    %96 = vector.shape_cast %95 : vector<1x8x32xf32> to vector<8x32xf32>
    %97 = vector.shape_cast %93 : vector<8x32xf32> to vector<1x8x32xf32>
    tpu.vector_store %arg22[%94, %c0_35, %c0_36], %97 {strides = array<i32>} : memref<8x8x32xf32, #tpu.memory_space<vmem>>, vector<1x8x32xf32>,
    %98 = vector.shape_cast %79 : vector<8x1xi1> to vector<8x1xi1>
    %99 = vector.broadcast %98 : vector<8x1xi1> to vector<8x32xi1>
    %100 = arith.select %99, %52, %16 : vector<8x32xi1>, vector<8x32xf32>
    %101 = vector.shape_cast %79 : vector<8x1xi1> to vector<8x1xi1>
    %102 = vector.broadcast %101 : vector<8x1xi1> to vector<8x32xi1>
    %103 = arith.select %102, %50, %16 : vector<8x32xi1>, vector<8x32xf32>
    %104 = vector.shape_cast %81 : vector<8x1xi1> to vector<8x1xi1>
    %105 = vector.broadcast %104 : vector<8x1xi1> to vector<8x32xi1>
    %106 = arith.select %105, %77, %16 : vector<8x32xi1>, vector<8x32xf32>
    %107 = vector.shape_cast %81 : vector<8x1xi1> to vector<8x1xi1>
    %108 = vector.broadcast %107 : vector<8x1xi1> to vector<8x32xi1>
    %109 = arith.select %108, %75, %16 : vector<8x32xi1>, vector<8x32xf32>
    %c1_i32 = arith.constant 1 : i32
    %c7_i32_37 = arith.constant 7 : i32
    %110 = arith.subi %c7_i32_37, %c1_i32 : i32
    %111 = arith.index_cast %c1_i32 : i32 to index
    %c0_38 = arith.constant 0 : index
    %c0_39 = arith.constant 0 : index
    %112 = vector.load %arg19[%111, %c0_38, %c0_39] : memref<8x8x128xf32, #tpu.memory_space<vmem>>, vector<1x8x128xf32>
    %113 = vector.shape_cast %112 : vector<1x8x128xf32> to vector<8x128xf32>
    %cst_40 = arith.constant dense<0.000000e+00> : vector<8x128xf32>
    %114 = tpu.matmul %100, %13, %cst_40 {dimension_numbers = #tpu.dot_dimension_numbers<[1], [0], [0], [1], [0, 0, 1, 1], [], []>} : vector<8x32xf32>, vector<32x128xf32>, vector<8x128xf32> -> vector<8x128xf32>
    %115 = arith.addf %113, %114 : vector<8x128xf32>
    %116 = arith.index_cast %110 : i32 to index
    %c0_41 = arith.constant 0 : index
    %c0_42 = arith.constant 0 : index
    %117 = vector.load %arg20[%116, %c0_41, %c0_42] : memref<8x8x128xf32, #tpu.memory_space<vmem>>, vector<1x8x128xf32>
    %118 = vector.shape_cast %117 : vector<1x8x128xf32> to vector<8x128xf32>
    %cst_43 = arith.constant dense<0.000000e+00> : vector<8x128xf32>
    %119 = tpu.matmul %106, %14, %cst_43 {dimension_numbers = #tpu.dot_dimension_numbers<[1], [0], [0], [1], [0, 0, 1, 1], [], []>} : vector<8x32xf32>, vector<32x128xf32>, vector<8x128xf32> -> vector<8x128xf32>
    %120 = arith.addf %118, %119 : vector<8x128xf32>
    %121 = vector.extract_strided_slice %115 {offsets = [0, 0], sizes = [8, 32], strides = [1, 1]} : vector<8x128xf32> to vector<8x32xf32>
    %122 = arith.negf %121 : vector<8x32xf32>
    %123 = math.exp %122 : vector<8x32xf32>
    %cst_44 = arith.constant 1.000000e+00 : f32
    %124 = vector.broadcast %cst_44 : f32 to vector<8x32xf32>
    %125 = arith.addf %124, %123 : vector<8x32xf32>
    %126 = arith.divf %124, %125 : vector<8x32xf32>
    %127 = vector.extract_strided_slice %115 {offsets = [0, 32], sizes = [8, 32], strides = [1, 1]} : vector<8x128xf32> to vector<8x32xf32>
    %128 = arith.negf %127 : vector<8x32xf32>
    %129 = math.exp %128 : vector<8x32xf32>
    %cst_45 = arith.constant 1.000000e+00 : f32
    %130 = vector.broadcast %cst_45 : f32 to vector<8x32xf32>
    %131 = arith.addf %130, %129 : vector<8x32xf32>
    %132 = arith.divf %130, %131 : vector<8x32xf32>
    %133 = vector.extract_strided_slice %115 {offsets = [0, 64], sizes = [8, 32], strides = [1, 1]} : vector<8x128xf32> to vector<8x32xf32>
    %134 = math.tanh %133 : vector<8x32xf32>
    %135 = vector.extract_strided_slice %115 {offsets = [0, 96], sizes = [8, 32], strides = [1, 1]} : vector<8x128xf32> to vector<8x32xf32>
    %136 = arith.negf %135 : vector<8x32xf32>
    %137 = math.exp %136 : vector<8x32xf32>
    %cst_46 = arith.constant 1.000000e+00 : f32
    %138 = vector.broadcast %cst_46 : f32 to vector<8x32xf32>
    %139 = arith.addf %138, %137 : vector<8x32xf32>
    %140 = arith.divf %138, %139 : vector<8x32xf32>
    %141 = arith.mulf %132, %103 : vector<8x32xf32>
    %142 = arith.mulf %126, %134 : vector<8x32xf32>
    %143 = arith.addf %141, %142 : vector<8x32xf32>
    %144 = math.tanh %143 : vector<8x32xf32>
    %145 = arith.mulf %140, %144 : vector<8x32xf32>
    %146 = vector.extract_strided_slice %120 {offsets = [0, 0], sizes = [8, 32], strides = [1, 1]} : vector<8x128xf32> to vector<8x32xf32>
    %147 = arith.negf %146 : vector<8x32xf32>
    %148 = math.exp %147 : vector<8x32xf32>
    %cst_47 = arith.constant 1.000000e+00 : f32
    %149 = vector.broadcast %cst_47 : f32 to vector<8x32xf32>
    %150 = arith.addf %149, %148 : vector<8x32xf32>
    %151 = arith.divf %149, %150 : vector<8x32xf32>
    %152 = vector.extract_strided_slice %120 {offsets = [0, 32], sizes = [8, 32], strides = [1, 1]} : vector<8x128xf32> to vector<8x32xf32>
    %153 = arith.negf %152 : vector<8x32xf32>
    %154 = math.exp %153 : vector<8x32xf32>
    %cst_48 = arith.constant 1.000000e+00 : f32
    %155 = vector.broadcast %cst_48 : f32 to vector<8x32xf32>
    %156 = arith.addf %155, %154 : vector<8x32xf32>
    %157 = arith.divf %155, %156 : vector<8x32xf32>
    %158 = vector.extract_strided_slice %120 {offsets = [0, 64], sizes = [8, 32], strides = [1, 1]} : vector<8x128xf32> to vector<8x32xf32>
    %159 = math.tanh %158 : vector<8x32xf32>
    %160 = vector.extract_strided_slice %120 {offsets = [0, 96], sizes = [8, 32], strides = [1, 1]} : vector<8x128xf32> to vector<8x32xf32>
    %161 = arith.negf %160 : vector<8x32xf32>
    %162 = math.exp %161 : vector<8x32xf32>
    %cst_49 = arith.constant 1.000000e+00 : f32
    %163 = vector.broadcast %cst_49 : f32 to vector<8x32xf32>
    %164 = arith.addf %163, %162 : vector<8x32xf32>
    %165 = arith.divf %163, %164 : vector<8x32xf32>
    %166 = arith.mulf %157, %109 : vector<8x32xf32>
    %167 = arith.mulf %151, %159 : vector<8x32xf32>
    %168 = arith.addf %166, %167 : vector<8x32xf32>
    %169 = math.tanh %168 : vector<8x32xf32>
    %170 = arith.mulf %165, %169 : vector<8x32xf32>
    %171 = vector.broadcast %c1_i32 : i32 to vector<8x1xi32>
    %172 = arith.cmpi sgt, %15, %171 : vector<8x1xi32>
    %173 = vector.broadcast %110 : i32 to vector<8x1xi32>
    %174 = arith.cmpi sgt, %15, %173 : vector<8x1xi32>
    %cst_50 = arith.constant 0.000000e+00 : f32
    %175 = vector.shape_cast %172 : vector<8x1xi1> to vector<8x1xi1>
    %176 = vector.broadcast %175 : vector<8x1xi1> to vector<8x32xi1>
    %177 = vector.broadcast %cst_50 : f32 to vector<8x32xf32>
    %178 = arith.select %176, %145, %177 : vector<8x32xi1>, vector<8x32xf32>
    %179 = arith.index_cast %c1_i32 : i32 to index
    %c0_51 = arith.constant 0 : index
    %c0_52 = arith.constant 0 : index
    %180 = vector.load %arg21[%179, %c0_51, %c0_52] : memref<8x8x32xf32, #tpu.memory_space<vmem>>, vector<1x8x32xf32>
    %181 = vector.shape_cast %180 : vector<1x8x32xf32> to vector<8x32xf32>
    %182 = vector.shape_cast %178 : vector<8x32xf32> to vector<1x8x32xf32>
    tpu.vector_store %arg21[%179, %c0_51, %c0_52], %182 {strides = array<i32>} : memref<8x8x32xf32, #tpu.memory_space<vmem>>, vector<1x8x32xf32>,
    %cst_53 = arith.constant 0.000000e+00 : f32
    %183 = vector.shape_cast %174 : vector<8x1xi1> to vector<8x1xi1>
    %184 = vector.broadcast %183 : vector<8x1xi1> to vector<8x32xi1>
    %185 = vector.broadcast %cst_53 : f32 to vector<8x32xf32>
    %186 = arith.select %184, %170, %185 : vector<8x32xi1>, vector<8x32xf32>
    %187 = arith.index_cast %110 : i32 to index
    %c0_54 = arith.constant 0 : index
    %c0_55 = arith.constant 0 : index
    %188 = vector.load %arg22[%187, %c0_54, %c0_55] : memref<8x8x32xf32, #tpu.memory_space<vmem>>, vector<1x8x32xf32>
    %189 = vector.shape_cast %188 : vector<1x8x32xf32> to vector<8x32xf32>
    %190 = vector.shape_cast %186 : vector<8x32xf32> to vector<1x8x32xf32>
    tpu.vector_store %arg22[%187, %c0_54, %c0_55], %190 {strides = array<i32>} : memref<8x8x32xf32, #tpu.memory_space<vmem>>, vector<1x8x32xf32>,
    %191 = vector.shape_cast %172 : vector<8x1xi1> to vector<8x1xi1>
    %192 = vector.broadcast %191 : vector<8x1xi1> to vector<8x32xi1>
    %193 = arith.select %192, %145, %100 : vector<8x32xi1>, vector<8x32xf32>
    %194 = vector.shape_cast %172 : vector<8x1xi1> to vector<8x1xi1>
    %195 = vector.broadcast %194 : vector<8x1xi1> to vector<8x32xi1>
    %196 = arith.select %195, %143, %103 : vector<8x32xi1>, vector<8x32xf32>
    %197 = vector.shape_cast %174 : vector<8x1xi1> to vector<8x1xi1>
    %198 = vector.broadcast %197 : vector<8x1xi1> to vector<8x32xi1>
    %199 = arith.select %198, %170, %106 : vector<8x32xi1>, vector<8x32xf32>
    %200 = vector.shape_cast %174 : vector<8x1xi1> to vector<8x1xi1>
    %201 = vector.broadcast %200 : vector<8x1xi1> to vector<8x32xi1>
    %202 = arith.select %201, %168, %109 : vector<8x32xi1>, vector<8x32xf32>
    %c2_i32 = arith.constant 2 : i32
    %c7_i32_56 = arith.constant 7 : i32
    %203 = arith.subi %c7_i32_56, %c2_i32 : i32
    %204 = arith.index_cast %c2_i32 : i32 to index
    %c0_57 = arith.constant 0 : index
    %c0_58 = arith.constant 0 : index
    %205 = vector.load %arg19[%204, %c0_57, %c0_58] : memref<8x8x128xf32, #tpu.memory_space<vmem>>, vector<1x8x128xf32>
    %206 = vector.shape_cast %205 : vector<1x8x128xf32> to vector<8x128xf32>
    %cst_59 = arith.constant dense<0.000000e+00> : vector<8x128xf32>
    %207 = tpu.matmul %193, %13, %cst_59 {dimension_numbers = #tpu.dot_dimension_numbers<[1], [0], [0], [1], [0, 0, 1, 1], [], []>} : vector<8x32xf32>, vector<32x128xf32>, vector<8x128xf32> -> vector<8x128xf32>
    %208 = arith.addf %206, %207 : vector<8x128xf32>
    %209 = arith.index_cast %203 : i32 to index
    %c0_60 = arith.constant 0 : index
    %c0_61 = arith.constant 0 : index
    %210 = vector.load %arg20[%209, %c0_60, %c0_61] : memref<8x8x128xf32, #tpu.memory_space<vmem>>, vector<1x8x128xf32>
    %211 = vector.shape_cast %210 : vector<1x8x128xf32> to vector<8x128xf32>
    %cst_62 = arith.constant dense<0.000000e+00> : vector<8x128xf32>
    %212 = tpu.matmul %199, %14, %cst_62 {dimension_numbers = #tpu.dot_dimension_numbers<[1], [0], [0], [1], [0, 0, 1, 1], [], []>} : vector<8x32xf32>, vector<32x128xf32>, vector<8x128xf32> -> vector<8x128xf32>
    %213 = arith.addf %211, %212 : vector<8x128xf32>
    %214 = vector.extract_strided_slice %208 {offsets = [0, 0], sizes = [8, 32], strides = [1, 1]} : vector<8x128xf32> to vector<8x32xf32>
    %215 = arith.negf %214 : vector<8x32xf32>
    %216 = math.exp %215 : vector<8x32xf32>
    %cst_63 = arith.constant 1.000000e+00 : f32
    %217 = vector.broadcast %cst_63 : f32 to vector<8x32xf32>
    %218 = arith.addf %217, %216 : vector<8x32xf32>
    %219 = arith.divf %217, %218 : vector<8x32xf32>
    %220 = vector.extract_strided_slice %208 {offsets = [0, 32], sizes = [8, 32], strides = [1, 1]} : vector<8x128xf32> to vector<8x32xf32>
    %221 = arith.negf %220 : vector<8x32xf32>
    %222 = math.exp %221 : vector<8x32xf32>
    %cst_64 = arith.constant 1.000000e+00 : f32
    %223 = vector.broadcast %cst_64 : f32 to vector<8x32xf32>
    %224 = arith.addf %223, %222 : vector<8x32xf32>
    %225 = arith.divf %223, %224 : vector<8x32xf32>
    %226 = vector.extract_strided_slice %208 {offsets = [0, 64], sizes = [8, 32], strides = [1, 1]} : vector<8x128xf32> to vector<8x32xf32>
    %227 = math.tanh %226 : vector<8x32xf32>
    %228 = vector.extract_strided_slice %208 {offsets = [0, 96], sizes = [8, 32], strides = [1, 1]} : vector<8x128xf32> to vector<8x32xf32>
    %229 = arith.negf %228 : vector<8x32xf32>
    %230 = math.exp %229 : vector<8x32xf32>
    %cst_65 = arith.constant 1.000000e+00 : f32
    %231 = vector.broadcast %cst_65 : f32 to vector<8x32xf32>
    %232 = arith.addf %231, %230 : vector<8x32xf32>
    %233 = arith.divf %231, %232 : vector<8x32xf32>
    %234 = arith.mulf %225, %196 : vector<8x32xf32>
    %235 = arith.mulf %219, %227 : vector<8x32xf32>
    %236 = arith.addf %234, %235 : vector<8x32xf32>
    %237 = math.tanh %236 : vector<8x32xf32>
    %238 = arith.mulf %233, %237 : vector<8x32xf32>
    %239 = vector.extract_strided_slice %213 {offsets = [0, 0], sizes = [8, 32], strides = [1, 1]} : vector<8x128xf32> to vector<8x32xf32>
    %240 = arith.negf %239 : vector<8x32xf32>
    %241 = math.exp %240 : vector<8x32xf32>
    %cst_66 = arith.constant 1.000000e+00 : f32
    %242 = vector.broadcast %cst_66 : f32 to vector<8x32xf32>
    %243 = arith.addf %242, %241 : vector<8x32xf32>
    %244 = arith.divf %242, %243 : vector<8x32xf32>
    %245 = vector.extract_strided_slice %213 {offsets = [0, 32], sizes = [8, 32], strides = [1, 1]} : vector<8x128xf32> to vector<8x32xf32>
    %246 = arith.negf %245 : vector<8x32xf32>
    %247 = math.exp %246 : vector<8x32xf32>
    %cst_67 = arith.constant 1.000000e+00 : f32
    %248 = vector.broadcast %cst_67 : f32 to vector<8x32xf32>
    %249 = arith.addf %248, %247 : vector<8x32xf32>
    %250 = arith.divf %248, %249 : vector<8x32xf32>
    %251 = vector.extract_strided_slice %213 {offsets = [0, 64], sizes = [8, 32], strides = [1, 1]} : vector<8x128xf32> to vector<8x32xf32>
    %252 = math.tanh %251 : vector<8x32xf32>
    %253 = vector.extract_strided_slice %213 {offsets = [0, 96], sizes = [8, 32], strides = [1, 1]} : vector<8x128xf32> to vector<8x32xf32>
    %254 = arith.negf %253 : vector<8x32xf32>
    %255 = math.exp %254 : vector<8x32xf32>
    %cst_68 = arith.constant 1.000000e+00 : f32
    %256 = vector.broadcast %cst_68 : f32 to vector<8x32xf32>
    %257 = arith.addf %256, %255 : vector<8x32xf32>
    %258 = arith.divf %256, %257 : vector<8x32xf32>
    %259 = arith.mulf %250, %202 : vector<8x32xf32>
    %260 = arith.mulf %244, %252 : vector<8x32xf32>
    %261 = arith.addf %259, %260 : vector<8x32xf32>
    %262 = math.tanh %261 : vector<8x32xf32>
    %263 = arith.mulf %258, %262 : vector<8x32xf32>
    %264 = vector.broadcast %c2_i32 : i32 to vector<8x1xi32>
    %265 = arith.cmpi sgt, %15, %264 : vector<8x1xi32>
    %266 = vector.broadcast %203 : i32 to vector<8x1xi32>
    %267 = arith.cmpi sgt, %15, %266 : vector<8x1xi32>
    %cst_69 = arith.constant 0.000000e+00 : f32
    %268 = vector.shape_cast %265 : vector<8x1xi1> to vector<8x1xi1>
    %269 = vector.broadcast %268 : vector<8x1xi1> to vector<8x32xi1>
    %270 = vector.broadcast %cst_69 : f32 to vector<8x32xf32>
    %271 = arith.select %269, %238, %270 : vector<8x32xi1>, vector<8x32xf32>
    %272 = arith.index_cast %c2_i32 : i32 to index
    %c0_70 = arith.constant 0 : index
    %c0_71 = arith.constant 0 : index
    %273 = vector.load %arg21[%272, %c0_70, %c0_71] : memref<8x8x32xf32, #tpu.memory_space<vmem>>, vector<1x8x32xf32>
    %274 = vector.shape_cast %273 : vector<1x8x32xf32> to vector<8x32xf32>
    %275 = vector.shape_cast %271 : vector<8x32xf32> to vector<1x8x32xf32>
    tpu.vector_store %arg21[%272, %c0_70, %c0_71], %275 {strides = array<i32>} : memref<8x8x32xf32, #tpu.memory_space<vmem>>, vector<1x8x32xf32>,
    %cst_72 = arith.constant 0.000000e+00 : f32
    %276 = vector.shape_cast %267 : vector<8x1xi1> to vector<8x1xi1>
    %277 = vector.broadcast %276 : vector<8x1xi1> to vector<8x32xi1>
    %278 = vector.broadcast %cst_72 : f32 to vector<8x32xf32>
    %279 = arith.select %277, %263, %278 : vector<8x32xi1>, vector<8x32xf32>
    %280 = arith.index_cast %203 : i32 to index
    %c0_73 = arith.constant 0 : index
    %c0_74 = arith.constant 0 : index
    %281 = vector.load %arg22[%280, %c0_73, %c0_74] : memref<8x8x32xf32, #tpu.memory_space<vmem>>, vector<1x8x32xf32>
    %282 = vector.shape_cast %281 : vector<1x8x32xf32> to vector<8x32xf32>
    %283 = vector.shape_cast %279 : vector<8x32xf32> to vector<1x8x32xf32>
    tpu.vector_store %arg22[%280, %c0_73, %c0_74], %283 {strides = array<i32>} : memref<8x8x32xf32, #tpu.memory_space<vmem>>, vector<1x8x32xf32>,
    %284 = vector.shape_cast %265 : vector<8x1xi1> to vector<8x1xi1>
    %285 = vector.broadcast %284 : vector<8x1xi1> to vector<8x32xi1>
    %286 = arith.select %285, %238, %193 : vector<8x32xi1>, vector<8x32xf32>
    %287 = vector.shape_cast %265 : vector<8x1xi1> to vector<8x1xi1>
    %288 = vector.broadcast %287 : vector<8x1xi1> to vector<8x32xi1>
    %289 = arith.select %288, %236, %196 : vector<8x32xi1>, vector<8x32xf32>
    %290 = vector.shape_cast %267 : vector<8x1xi1> to vector<8x1xi1>
    %291 = vector.broadcast %290 : vector<8x1xi1> to vector<8x32xi1>
    %292 = arith.select %291, %263, %199 : vector<8x32xi1>, vector<8x32xf32>
    %293 = vector.shape_cast %267 : vector<8x1xi1> to vector<8x1xi1>
    %294 = vector.broadcast %293 : vector<8x1xi1> to vector<8x32xi1>
    %295 = arith.select %294, %261, %202 : vector<8x32xi1>, vector<8x32xf32>
    %c3_i32 = arith.constant 3 : i32
    %c7_i32_75 = arith.constant 7 : i32
    %296 = arith.subi %c7_i32_75, %c3_i32 : i32
    %297 = arith.index_cast %c3_i32 : i32 to index
    %c0_76 = arith.constant 0 : index
    %c0_77 = arith.constant 0 : index
    %298 = vector.load %arg19[%297, %c0_76, %c0_77] : memref<8x8x128xf32, #tpu.memory_space<vmem>>, vector<1x8x128xf32>
    %299 = vector.shape_cast %298 : vector<1x8x128xf32> to vector<8x128xf32>
    %cst_78 = arith.constant dense<0.000000e+00> : vector<8x128xf32>
    %300 = tpu.matmul %286, %13, %cst_78 {dimension_numbers = #tpu.dot_dimension_numbers<[1], [0], [0], [1], [0, 0, 1, 1], [], []>} : vector<8x32xf32>, vector<32x128xf32>, vector<8x128xf32> -> vector<8x128xf32>
    %301 = arith.addf %299, %300 : vector<8x128xf32>
    %302 = arith.index_cast %296 : i32 to index
    %c0_79 = arith.constant 0 : index
    %c0_80 = arith.constant 0 : index
    %303 = vector.load %arg20[%302, %c0_79, %c0_80] : memref<8x8x128xf32, #tpu.memory_space<vmem>>, vector<1x8x128xf32>
    %304 = vector.shape_cast %303 : vector<1x8x128xf32> to vector<8x128xf32>
    %cst_81 = arith.constant dense<0.000000e+00> : vector<8x128xf32>
    %305 = tpu.matmul %292, %14, %cst_81 {dimension_numbers = #tpu.dot_dimension_numbers<[1], [0], [0], [1], [0, 0, 1, 1], [], []>} : vector<8x32xf32>, vector<32x128xf32>, vector<8x128xf32> -> vector<8x128xf32>
    %306 = arith.addf %304, %305 : vector<8x128xf32>
    %307 = vector.extract_strided_slice %301 {offsets = [0, 0], sizes = [8, 32], strides = [1, 1]} : vector<8x128xf32> to vector<8x32xf32>
    %308 = arith.negf %307 : vector<8x32xf32>
    %309 = math.exp %308 : vector<8x32xf32>
    %cst_82 = arith.constant 1.000000e+00 : f32
    %310 = vector.broadcast %cst_82 : f32 to vector<8x32xf32>
    %311 = arith.addf %310, %309 : vector<8x32xf32>
    %312 = arith.divf %310, %311 : vector<8x32xf32>
    %313 = vector.extract_strided_slice %301 {offsets = [0, 32], sizes = [8, 32], strides = [1, 1]} : vector<8x128xf32> to vector<8x32xf32>
    %314 = arith.negf %313 : vector<8x32xf32>
    %315 = math.exp %314 : vector<8x32xf32>
    %cst_83 = arith.constant 1.000000e+00 : f32
    %316 = vector.broadcast %cst_83 : f32 to vector<8x32xf32>
    %317 = arith.addf %316, %315 : vector<8x32xf32>
    %318 = arith.divf %316, %317 : vector<8x32xf32>
    %319 = vector.extract_strided_slice %301 {offsets = [0, 64], sizes = [8, 32], strides = [1, 1]} : vector<8x128xf32> to vector<8x32xf32>
    %320 = math.tanh %319 : vector<8x32xf32>
    %321 = vector.extract_strided_slice %301 {offsets = [0, 96], sizes = [8, 32], strides = [1, 1]} : vector<8x128xf32> to vector<8x32xf32>
    %322 = arith.negf %321 : vector<8x32xf32>
    %323 = math.exp %322 : vector<8x32xf32>
    %cst_84 = arith.constant 1.000000e+00 : f32
    %324 = vector.broadcast %cst_84 : f32 to vector<8x32xf32>
    %325 = arith.addf %324, %323 : vector<8x32xf32>
    %326 = arith.divf %324, %325 : vector<8x32xf32>
    %327 = arith.mulf %318, %289 : vector<8x32xf32>
    %328 = arith.mulf %312, %320 : vector<8x32xf32>
    %329 = arith.addf %327, %328 : vector<8x32xf32>
    %330 = math.tanh %329 : vector<8x32xf32>
    %331 = arith.mulf %326, %330 : vector<8x32xf32>
    %332 = vector.extract_strided_slice %306 {offsets = [0, 0], sizes = [8, 32], strides = [1, 1]} : vector<8x128xf32> to vector<8x32xf32>
    %333 = arith.negf %332 : vector<8x32xf32>
    %334 = math.exp %333 : vector<8x32xf32>
    %cst_85 = arith.constant 1.000000e+00 : f32
    %335 = vector.broadcast %cst_85 : f32 to vector<8x32xf32>
    %336 = arith.addf %335, %334 : vector<8x32xf32>
    %337 = arith.divf %335, %336 : vector<8x32xf32>
    %338 = vector.extract_strided_slice %306 {offsets = [0, 32], sizes = [8, 32], strides = [1, 1]} : vector<8x128xf32> to vector<8x32xf32>
    %339 = arith.negf %338 : vector<8x32xf32>
    %340 = math.exp %339 : vector<8x32xf32>
    %cst_86 = arith.constant 1.000000e+00 : f32
    %341 = vector.broadcast %cst_86 : f32 to vector<8x32xf32>
    %342 = arith.addf %341, %340 : vector<8x32xf32>
    %343 = arith.divf %341, %342 : vector<8x32xf32>
    %344 = vector.extract_strided_slice %306 {offsets = [0, 64], sizes = [8, 32], strides = [1, 1]} : vector<8x128xf32> to vector<8x32xf32>
    %345 = math.tanh %344 : vector<8x32xf32>
    %346 = vector.extract_strided_slice %306 {offsets = [0, 96], sizes = [8, 32], strides = [1, 1]} : vector<8x128xf32> to vector<8x32xf32>
    %347 = arith.negf %346 : vector<8x32xf32>
    %348 = math.exp %347 : vector<8x32xf32>
    %cst_87 = arith.constant 1.000000e+00 : f32
    %349 = vector.broadcast %cst_87 : f32 to vector<8x32xf32>
    %350 = arith.addf %349, %348 : vector<8x32xf32>
    %351 = arith.divf %349, %350 : vector<8x32xf32>
    %352 = arith.mulf %343, %295 : vector<8x32xf32>
    %353 = arith.mulf %337, %345 : vector<8x32xf32>
    %354 = arith.addf %352, %353 : vector<8x32xf32>
    %355 = math.tanh %354 : vector<8x32xf32>
    %356 = arith.mulf %351, %355 : vector<8x32xf32>
    %357 = vector.broadcast %c3_i32 : i32 to vector<8x1xi32>
    %358 = arith.cmpi sgt, %15, %357 : vector<8x1xi32>
    %359 = vector.broadcast %296 : i32 to vector<8x1xi32>
    %360 = arith.cmpi sgt, %15, %359 : vector<8x1xi32>
    %cst_88 = arith.constant 0.000000e+00 : f32
    %361 = vector.shape_cast %358 : vector<8x1xi1> to vector<8x1xi1>
    %362 = vector.broadcast %361 : vector<8x1xi1> to vector<8x32xi1>
    %363 = vector.broadcast %cst_88 : f32 to vector<8x32xf32>
    %364 = arith.select %362, %331, %363 : vector<8x32xi1>, vector<8x32xf32>
    %365 = arith.index_cast %c3_i32 : i32 to index
    %c0_89 = arith.constant 0 : index
    %c0_90 = arith.constant 0 : index
    %366 = vector.load %arg21[%365, %c0_89, %c0_90] : memref<8x8x32xf32, #tpu.memory_space<vmem>>, vector<1x8x32xf32>
    %367 = vector.shape_cast %366 : vector<1x8x32xf32> to vector<8x32xf32>
    %368 = vector.shape_cast %364 : vector<8x32xf32> to vector<1x8x32xf32>
    tpu.vector_store %arg21[%365, %c0_89, %c0_90], %368 {strides = array<i32>} : memref<8x8x32xf32, #tpu.memory_space<vmem>>, vector<1x8x32xf32>,
    %cst_91 = arith.constant 0.000000e+00 : f32
    %369 = vector.shape_cast %360 : vector<8x1xi1> to vector<8x1xi1>
    %370 = vector.broadcast %369 : vector<8x1xi1> to vector<8x32xi1>
    %371 = vector.broadcast %cst_91 : f32 to vector<8x32xf32>
    %372 = arith.select %370, %356, %371 : vector<8x32xi1>, vector<8x32xf32>
    %373 = arith.index_cast %296 : i32 to index
    %c0_92 = arith.constant 0 : index
    %c0_93 = arith.constant 0 : index
    %374 = vector.load %arg22[%373, %c0_92, %c0_93] : memref<8x8x32xf32, #tpu.memory_space<vmem>>, vector<1x8x32xf32>
    %375 = vector.shape_cast %374 : vector<1x8x32xf32> to vector<8x32xf32>
    %376 = vector.shape_cast %372 : vector<8x32xf32> to vector<1x8x32xf32>
    tpu.vector_store %arg22[%373, %c0_92, %c0_93], %376 {strides = array<i32>} : memref<8x8x32xf32, #tpu.memory_space<vmem>>, vector<1x8x32xf32>,
    %377 = vector.shape_cast %358 : vector<8x1xi1> to vector<8x1xi1>
    %378 = vector.broadcast %377 : vector<8x1xi1> to vector<8x32xi1>
    %379 = arith.select %378, %331, %286 : vector<8x32xi1>, vector<8x32xf32>
    %380 = vector.shape_cast %358 : vector<8x1xi1> to vector<8x1xi1>
    %381 = vector.broadcast %380 : vector<8x1xi1> to vector<8x32xi1>
    %382 = arith.select %381, %329, %289 : vector<8x32xi1>, vector<8x32xf32>
    %383 = vector.shape_cast %360 : vector<8x1xi1> to vector<8x1xi1>
    %384 = vector.broadcast %383 : vector<8x1xi1> to vector<8x32xi1>
    %385 = arith.select %384, %356, %292 : vector<8x32xi1>, vector<8x32xf32>
    %386 = vector.shape_cast %360 : vector<8x1xi1> to vector<8x1xi1>
    %387 = vector.broadcast %386 : vector<8x1xi1> to vector<8x32xi1>
    %388 = arith.select %387, %354, %295 : vector<8x32xi1>, vector<8x32xf32>
    %c4_i32 = arith.constant 4 : i32
    %c7_i32_94 = arith.constant 7 : i32
    %389 = arith.subi %c7_i32_94, %c4_i32 : i32
    %390 = arith.index_cast %c4_i32 : i32 to index
    %c0_95 = arith.constant 0 : index
    %c0_96 = arith.constant 0 : index
    %391 = vector.load %arg19[%390, %c0_95, %c0_96] : memref<8x8x128xf32, #tpu.memory_space<vmem>>, vector<1x8x128xf32>
    %392 = vector.shape_cast %391 : vector<1x8x128xf32> to vector<8x128xf32>
    %cst_97 = arith.constant dense<0.000000e+00> : vector<8x128xf32>
    %393 = tpu.matmul %379, %13, %cst_97 {dimension_numbers = #tpu.dot_dimension_numbers<[1], [0], [0], [1], [0, 0, 1, 1], [], []>} : vector<8x32xf32>, vector<32x128xf32>, vector<8x128xf32> -> vector<8x128xf32>
    %394 = arith.addf %392, %393 : vector<8x128xf32>
    %395 = arith.index_cast %389 : i32 to index
    %c0_98 = arith.constant 0 : index
    %c0_99 = arith.constant 0 : index
    %396 = vector.load %arg20[%395, %c0_98, %c0_99] : memref<8x8x128xf32, #tpu.memory_space<vmem>>, vector<1x8x128xf32>
    %397 = vector.shape_cast %396 : vector<1x8x128xf32> to vector<8x128xf32>
    %cst_100 = arith.constant dense<0.000000e+00> : vector<8x128xf32>
    %398 = tpu.matmul %385, %14, %cst_100 {dimension_numbers = #tpu.dot_dimension_numbers<[1], [0], [0], [1], [0, 0, 1, 1], [], []>} : vector<8x32xf32>, vector<32x128xf32>, vector<8x128xf32> -> vector<8x128xf32>
    %399 = arith.addf %397, %398 : vector<8x128xf32>
    %400 = vector.extract_strided_slice %394 {offsets = [0, 0], sizes = [8, 32], strides = [1, 1]} : vector<8x128xf32> to vector<8x32xf32>
    %401 = arith.negf %400 : vector<8x32xf32>
    %402 = math.exp %401 : vector<8x32xf32>
    %cst_101 = arith.constant 1.000000e+00 : f32
    %403 = vector.broadcast %cst_101 : f32 to vector<8x32xf32>
    %404 = arith.addf %403, %402 : vector<8x32xf32>
    %405 = arith.divf %403, %404 : vector<8x32xf32>
    %406 = vector.extract_strided_slice %394 {offsets = [0, 32], sizes = [8, 32], strides = [1, 1]} : vector<8x128xf32> to vector<8x32xf32>
    %407 = arith.negf %406 : vector<8x32xf32>
    %408 = math.exp %407 : vector<8x32xf32>
    %cst_102 = arith.constant 1.000000e+00 : f32
    %409 = vector.broadcast %cst_102 : f32 to vector<8x32xf32>
    %410 = arith.addf %409, %408 : vector<8x32xf32>
    %411 = arith.divf %409, %410 : vector<8x32xf32>
    %412 = vector.extract_strided_slice %394 {offsets = [0, 64], sizes = [8, 32], strides = [1, 1]} : vector<8x128xf32> to vector<8x32xf32>
    %413 = math.tanh %412 : vector<8x32xf32>
    %414 = vector.extract_strided_slice %394 {offsets = [0, 96], sizes = [8, 32], strides = [1, 1]} : vector<8x128xf32> to vector<8x32xf32>
    %415 = arith.negf %414 : vector<8x32xf32>
    %416 = math.exp %415 : vector<8x32xf32>
    %cst_103 = arith.constant 1.000000e+00 : f32
    %417 = vector.broadcast %cst_103 : f32 to vector<8x32xf32>
    %418 = arith.addf %417, %416 : vector<8x32xf32>
    %419 = arith.divf %417, %418 : vector<8x32xf32>
    %420 = arith.mulf %411, %382 : vector<8x32xf32>
    %421 = arith.mulf %405, %413 : vector<8x32xf32>
    %422 = arith.addf %420, %421 : vector<8x32xf32>
    %423 = math.tanh %422 : vector<8x32xf32>
    %424 = arith.mulf %419, %423 : vector<8x32xf32>
    %425 = vector.extract_strided_slice %399 {offsets = [0, 0], sizes = [8, 32], strides = [1, 1]} : vector<8x128xf32> to vector<8x32xf32>
    %426 = arith.negf %425 : vector<8x32xf32>
    %427 = math.exp %426 : vector<8x32xf32>
    %cst_104 = arith.constant 1.000000e+00 : f32
    %428 = vector.broadcast %cst_104 : f32 to vector<8x32xf32>
    %429 = arith.addf %428, %427 : vector<8x32xf32>
    %430 = arith.divf %428, %429 : vector<8x32xf32>
    %431 = vector.extract_strided_slice %399 {offsets = [0, 32], sizes = [8, 32], strides = [1, 1]} : vector<8x128xf32> to vector<8x32xf32>
    %432 = arith.negf %431 : vector<8x32xf32>
    %433 = math.exp %432 : vector<8x32xf32>
    %cst_105 = arith.constant 1.000000e+00 : f32
    %434 = vector.broadcast %cst_105 : f32 to vector<8x32xf32>
    %435 = arith.addf %434, %433 : vector<8x32xf32>
    %436 = arith.divf %434, %435 : vector<8x32xf32>
    %437 = vector.extract_strided_slice %399 {offsets = [0, 64], sizes = [8, 32], strides = [1, 1]} : vector<8x128xf32> to vector<8x32xf32>
    %438 = math.tanh %437 : vector<8x32xf32>
    %439 = vector.extract_strided_slice %399 {offsets = [0, 96], sizes = [8, 32], strides = [1, 1]} : vector<8x128xf32> to vector<8x32xf32>
    %440 = arith.negf %439 : vector<8x32xf32>
    %441 = math.exp %440 : vector<8x32xf32>
    %cst_106 = arith.constant 1.000000e+00 : f32
    %442 = vector.broadcast %cst_106 : f32 to vector<8x32xf32>
    %443 = arith.addf %442, %441 : vector<8x32xf32>
    %444 = arith.divf %442, %443 : vector<8x32xf32>
    %445 = arith.mulf %436, %388 : vector<8x32xf32>
    %446 = arith.mulf %430, %438 : vector<8x32xf32>
    %447 = arith.addf %445, %446 : vector<8x32xf32>
    %448 = math.tanh %447 : vector<8x32xf32>
    %449 = arith.mulf %444, %448 : vector<8x32xf32>
    %450 = vector.broadcast %c4_i32 : i32 to vector<8x1xi32>
    %451 = arith.cmpi sgt, %15, %450 : vector<8x1xi32>
    %452 = vector.broadcast %389 : i32 to vector<8x1xi32>
    %453 = arith.cmpi sgt, %15, %452 : vector<8x1xi32>
    %cst_107 = arith.constant 0.000000e+00 : f32
    %454 = vector.shape_cast %451 : vector<8x1xi1> to vector<8x1xi1>
    %455 = vector.broadcast %454 : vector<8x1xi1> to vector<8x32xi1>
    %456 = vector.broadcast %cst_107 : f32 to vector<8x32xf32>
    %457 = arith.select %455, %424, %456 : vector<8x32xi1>, vector<8x32xf32>
    %458 = arith.index_cast %c4_i32 : i32 to index
    %c0_108 = arith.constant 0 : index
    %c0_109 = arith.constant 0 : index
    %459 = vector.load %arg21[%458, %c0_108, %c0_109] : memref<8x8x32xf32, #tpu.memory_space<vmem>>, vector<1x8x32xf32>
    %460 = vector.shape_cast %459 : vector<1x8x32xf32> to vector<8x32xf32>
    %461 = vector.shape_cast %457 : vector<8x32xf32> to vector<1x8x32xf32>
    tpu.vector_store %arg21[%458, %c0_108, %c0_109], %461 {strides = array<i32>} : memref<8x8x32xf32, #tpu.memory_space<vmem>>, vector<1x8x32xf32>,
    %cst_110 = arith.constant 0.000000e+00 : f32
    %462 = vector.shape_cast %453 : vector<8x1xi1> to vector<8x1xi1>
    %463 = vector.broadcast %462 : vector<8x1xi1> to vector<8x32xi1>
    %464 = vector.broadcast %cst_110 : f32 to vector<8x32xf32>
    %465 = arith.select %463, %449, %464 : vector<8x32xi1>, vector<8x32xf32>
    %466 = arith.index_cast %389 : i32 to index
    %c0_111 = arith.constant 0 : index
    %c0_112 = arith.constant 0 : index
    %467 = vector.load %arg22[%466, %c0_111, %c0_112] : memref<8x8x32xf32, #tpu.memory_space<vmem>>, vector<1x8x32xf32>
    %468 = vector.shape_cast %467 : vector<1x8x32xf32> to vector<8x32xf32>
    %469 = vector.shape_cast %465 : vector<8x32xf32> to vector<1x8x32xf32>
    tpu.vector_store %arg22[%466, %c0_111, %c0_112], %469 {strides = array<i32>} : memref<8x8x32xf32, #tpu.memory_space<vmem>>, vector<1x8x32xf32>,
    %470 = vector.shape_cast %451 : vector<8x1xi1> to vector<8x1xi1>
    %471 = vector.broadcast %470 : vector<8x1xi1> to vector<8x32xi1>
    %472 = arith.select %471, %424, %379 : vector<8x32xi1>, vector<8x32xf32>
    %473 = vector.shape_cast %451 : vector<8x1xi1> to vector<8x1xi1>
    %474 = vector.broadcast %473 : vector<8x1xi1> to vector<8x32xi1>
    %475 = arith.select %474, %422, %382 : vector<8x32xi1>, vector<8x32xf32>
    %476 = vector.shape_cast %453 : vector<8x1xi1> to vector<8x1xi1>
    %477 = vector.broadcast %476 : vector<8x1xi1> to vector<8x32xi1>
    %478 = arith.select %477, %449, %385 : vector<8x32xi1>, vector<8x32xf32>
    %479 = vector.shape_cast %453 : vector<8x1xi1> to vector<8x1xi1>
    %480 = vector.broadcast %479 : vector<8x1xi1> to vector<8x32xi1>
    %481 = arith.select %480, %447, %388 : vector<8x32xi1>, vector<8x32xf32>
    %c5_i32 = arith.constant 5 : i32
    %c7_i32_113 = arith.constant 7 : i32
    %482 = arith.subi %c7_i32_113, %c5_i32 : i32
    %483 = arith.index_cast %c5_i32 : i32 to index
    %c0_114 = arith.constant 0 : index
    %c0_115 = arith.constant 0 : index
    %484 = vector.load %arg19[%483, %c0_114, %c0_115] : memref<8x8x128xf32, #tpu.memory_space<vmem>>, vector<1x8x128xf32>
    %485 = vector.shape_cast %484 : vector<1x8x128xf32> to vector<8x128xf32>
    %cst_116 = arith.constant dense<0.000000e+00> : vector<8x128xf32>
    %486 = tpu.matmul %472, %13, %cst_116 {dimension_numbers = #tpu.dot_dimension_numbers<[1], [0], [0], [1], [0, 0, 1, 1], [], []>} : vector<8x32xf32>, vector<32x128xf32>, vector<8x128xf32> -> vector<8x128xf32>
    %487 = arith.addf %485, %486 : vector<8x128xf32>
    %488 = arith.index_cast %482 : i32 to index
    %c0_117 = arith.constant 0 : index
    %c0_118 = arith.constant 0 : index
    %489 = vector.load %arg20[%488, %c0_117, %c0_118] : memref<8x8x128xf32, #tpu.memory_space<vmem>>, vector<1x8x128xf32>
    %490 = vector.shape_cast %489 : vector<1x8x128xf32> to vector<8x128xf32>
    %cst_119 = arith.constant dense<0.000000e+00> : vector<8x128xf32>
    %491 = tpu.matmul %478, %14, %cst_119 {dimension_numbers = #tpu.dot_dimension_numbers<[1], [0], [0], [1], [0, 0, 1, 1], [], []>} : vector<8x32xf32>, vector<32x128xf32>, vector<8x128xf32> -> vector<8x128xf32>
    %492 = arith.addf %490, %491 : vector<8x128xf32>
    %493 = vector.extract_strided_slice %487 {offsets = [0, 0], sizes = [8, 32], strides = [1, 1]} : vector<8x128xf32> to vector<8x32xf32>
    %494 = arith.negf %493 : vector<8x32xf32>
    %495 = math.exp %494 : vector<8x32xf32>
    %cst_120 = arith.constant 1.000000e+00 : f32
    %496 = vector.broadcast %cst_120 : f32 to vector<8x32xf32>
    %497 = arith.addf %496, %495 : vector<8x32xf32>
    %498 = arith.divf %496, %497 : vector<8x32xf32>
    %499 = vector.extract_strided_slice %487 {offsets = [0, 32], sizes = [8, 32], strides = [1, 1]} : vector<8x128xf32> to vector<8x32xf32>
    %500 = arith.negf %499 : vector<8x32xf32>
    %501 = math.exp %500 : vector<8x32xf32>
    %cst_121 = arith.constant 1.000000e+00 : f32
    %502 = vector.broadcast %cst_121 : f32 to vector<8x32xf32>
    %503 = arith.addf %502, %501 : vector<8x32xf32>
    %504 = arith.divf %502, %503 : vector<8x32xf32>
    %505 = vector.extract_strided_slice %487 {offsets = [0, 64], sizes = [8, 32], strides = [1, 1]} : vector<8x128xf32> to vector<8x32xf32>
    %506 = math.tanh %505 : vector<8x32xf32>
    %507 = vector.extract_strided_slice %487 {offsets = [0, 96], sizes = [8, 32], strides = [1, 1]} : vector<8x128xf32> to vector<8x32xf32>
    %508 = arith.negf %507 : vector<8x32xf32>
    %509 = math.exp %508 : vector<8x32xf32>
    %cst_122 = arith.constant 1.000000e+00 : f32
    %510 = vector.broadcast %cst_122 : f32 to vector<8x32xf32>
    %511 = arith.addf %510, %509 : vector<8x32xf32>
    %512 = arith.divf %510, %511 : vector<8x32xf32>
    %513 = arith.mulf %504, %475 : vector<8x32xf32>
    %514 = arith.mulf %498, %506 : vector<8x32xf32>
    %515 = arith.addf %513, %514 : vector<8x32xf32>
    %516 = math.tanh %515 : vector<8x32xf32>
    %517 = arith.mulf %512, %516 : vector<8x32xf32>
    %518 = vector.extract_strided_slice %492 {offsets = [0, 0], sizes = [8, 32], strides = [1, 1]} : vector<8x128xf32> to vector<8x32xf32>
    %519 = arith.negf %518 : vector<8x32xf32>
    %520 = math.exp %519 : vector<8x32xf32>
    %cst_123 = arith.constant 1.000000e+00 : f32
    %521 = vector.broadcast %cst_123 : f32 to vector<8x32xf32>
    %522 = arith.addf %521, %520 : vector<8x32xf32>
    %523 = arith.divf %521, %522 : vector<8x32xf32>
    %524 = vector.extract_strided_slice %492 {offsets = [0, 32], sizes = [8, 32], strides = [1, 1]} : vector<8x128xf32> to vector<8x32xf32>
    %525 = arith.negf %524 : vector<8x32xf32>
    %526 = math.exp %525 : vector<8x32xf32>
    %cst_124 = arith.constant 1.000000e+00 : f32
    %527 = vector.broadcast %cst_124 : f32 to vector<8x32xf32>
    %528 = arith.addf %527, %526 : vector<8x32xf32>
    %529 = arith.divf %527, %528 : vector<8x32xf32>
    %530 = vector.extract_strided_slice %492 {offsets = [0, 64], sizes = [8, 32], strides = [1, 1]} : vector<8x128xf32> to vector<8x32xf32>
    %531 = math.tanh %530 : vector<8x32xf32>
    %532 = vector.extract_strided_slice %492 {offsets = [0, 96], sizes = [8, 32], strides = [1, 1]} : vector<8x128xf32> to vector<8x32xf32>
    %533 = arith.negf %532 : vector<8x32xf32>
    %534 = math.exp %533 : vector<8x32xf32>
    %cst_125 = arith.constant 1.000000e+00 : f32
    %535 = vector.broadcast %cst_125 : f32 to vector<8x32xf32>
    %536 = arith.addf %535, %534 : vector<8x32xf32>
    %537 = arith.divf %535, %536 : vector<8x32xf32>
    %538 = arith.mulf %529, %481 : vector<8x32xf32>
    %539 = arith.mulf %523, %531 : vector<8x32xf32>
    %540 = arith.addf %538, %539 : vector<8x32xf32>
    %541 = math.tanh %540 : vector<8x32xf32>
    %542 = arith.mulf %537, %541 : vector<8x32xf32>
    %543 = vector.broadcast %c5_i32 : i32 to vector<8x1xi32>
    %544 = arith.cmpi sgt, %15, %543 : vector<8x1xi32>
    %545 = vector.broadcast %482 : i32 to vector<8x1xi32>
    %546 = arith.cmpi sgt, %15, %545 : vector<8x1xi32>
    %cst_126 = arith.constant 0.000000e+00 : f32
    %547 = vector.shape_cast %544 : vector<8x1xi1> to vector<8x1xi1>
    %548 = vector.broadcast %547 : vector<8x1xi1> to vector<8x32xi1>
    %549 = vector.broadcast %cst_126 : f32 to vector<8x32xf32>
    %550 = arith.select %548, %517, %549 : vector<8x32xi1>, vector<8x32xf32>
    %551 = arith.index_cast %c5_i32 : i32 to index
    %c0_127 = arith.constant 0 : index
    %c0_128 = arith.constant 0 : index
    %552 = vector.load %arg21[%551, %c0_127, %c0_128] : memref<8x8x32xf32, #tpu.memory_space<vmem>>, vector<1x8x32xf32>
    %553 = vector.shape_cast %552 : vector<1x8x32xf32> to vector<8x32xf32>
    %554 = vector.shape_cast %550 : vector<8x32xf32> to vector<1x8x32xf32>
    tpu.vector_store %arg21[%551, %c0_127, %c0_128], %554 {strides = array<i32>} : memref<8x8x32xf32, #tpu.memory_space<vmem>>, vector<1x8x32xf32>,
    %cst_129 = arith.constant 0.000000e+00 : f32
    %555 = vector.shape_cast %546 : vector<8x1xi1> to vector<8x1xi1>
    %556 = vector.broadcast %555 : vector<8x1xi1> to vector<8x32xi1>
    %557 = vector.broadcast %cst_129 : f32 to vector<8x32xf32>
    %558 = arith.select %556, %542, %557 : vector<8x32xi1>, vector<8x32xf32>
    %559 = arith.index_cast %482 : i32 to index
    %c0_130 = arith.constant 0 : index
    %c0_131 = arith.constant 0 : index
    %560 = vector.load %arg22[%559, %c0_130, %c0_131] : memref<8x8x32xf32, #tpu.memory_space<vmem>>, vector<1x8x32xf32>
    %561 = vector.shape_cast %560 : vector<1x8x32xf32> to vector<8x32xf32>
    %562 = vector.shape_cast %558 : vector<8x32xf32> to vector<1x8x32xf32>
    tpu.vector_store %arg22[%559, %c0_130, %c0_131], %562 {strides = array<i32>} : memref<8x8x32xf32, #tpu.memory_space<vmem>>, vector<1x8x32xf32>,
    %563 = vector.shape_cast %544 : vector<8x1xi1> to vector<8x1xi1>
    %564 = vector.broadcast %563 : vector<8x1xi1> to vector<8x32xi1>
    %565 = arith.select %564, %517, %472 : vector<8x32xi1>, vector<8x32xf32>
    %566 = vector.shape_cast %544 : vector<8x1xi1> to vector<8x1xi1>
    %567 = vector.broadcast %566 : vector<8x1xi1> to vector<8x32xi1>
    %568 = arith.select %567, %515, %475 : vector<8x32xi1>, vector<8x32xf32>
    %569 = vector.shape_cast %546 : vector<8x1xi1> to vector<8x1xi1>
    %570 = vector.broadcast %569 : vector<8x1xi1> to vector<8x32xi1>
    %571 = arith.select %570, %542, %478 : vector<8x32xi1>, vector<8x32xf32>
    %572 = vector.shape_cast %546 : vector<8x1xi1> to vector<8x1xi1>
    %573 = vector.broadcast %572 : vector<8x1xi1> to vector<8x32xi1>
    %574 = arith.select %573, %540, %481 : vector<8x32xi1>, vector<8x32xf32>
    %c6_i32 = arith.constant 6 : i32
    %c7_i32_132 = arith.constant 7 : i32
    %575 = arith.subi %c7_i32_132, %c6_i32 : i32
    %576 = arith.index_cast %c6_i32 : i32 to index
    %c0_133 = arith.constant 0 : index
    %c0_134 = arith.constant 0 : index
    %577 = vector.load %arg19[%576, %c0_133, %c0_134] : memref<8x8x128xf32, #tpu.memory_space<vmem>>, vector<1x8x128xf32>
    %578 = vector.shape_cast %577 : vector<1x8x128xf32> to vector<8x128xf32>
    %cst_135 = arith.constant dense<0.000000e+00> : vector<8x128xf32>
    %579 = tpu.matmul %565, %13, %cst_135 {dimension_numbers = #tpu.dot_dimension_numbers<[1], [0], [0], [1], [0, 0, 1, 1], [], []>} : vector<8x32xf32>, vector<32x128xf32>, vector<8x128xf32> -> vector<8x128xf32>
    %580 = arith.addf %578, %579 : vector<8x128xf32>
    %581 = arith.index_cast %575 : i32 to index
    %c0_136 = arith.constant 0 : index
    %c0_137 = arith.constant 0 : index
    %582 = vector.load %arg20[%581, %c0_136, %c0_137] : memref<8x8x128xf32, #tpu.memory_space<vmem>>, vector<1x8x128xf32>
    %583 = vector.shape_cast %582 : vector<1x8x128xf32> to vector<8x128xf32>
    %cst_138 = arith.constant dense<0.000000e+00> : vector<8x128xf32>
    %584 = tpu.matmul %571, %14, %cst_138 {dimension_numbers = #tpu.dot_dimension_numbers<[1], [0], [0], [1], [0, 0, 1, 1], [], []>} : vector<8x32xf32>, vector<32x128xf32>, vector<8x128xf32> -> vector<8x128xf32>
    %585 = arith.addf %583, %584 : vector<8x128xf32>
    %586 = vector.extract_strided_slice %580 {offsets = [0, 0], sizes = [8, 32], strides = [1, 1]} : vector<8x128xf32> to vector<8x32xf32>
    %587 = arith.negf %586 : vector<8x32xf32>
    %588 = math.exp %587 : vector<8x32xf32>
    %cst_139 = arith.constant 1.000000e+00 : f32
    %589 = vector.broadcast %cst_139 : f32 to vector<8x32xf32>
    %590 = arith.addf %589, %588 : vector<8x32xf32>
    %591 = arith.divf %589, %590 : vector<8x32xf32>
    %592 = vector.extract_strided_slice %580 {offsets = [0, 32], sizes = [8, 32], strides = [1, 1]} : vector<8x128xf32> to vector<8x32xf32>
    %593 = arith.negf %592 : vector<8x32xf32>
    %594 = math.exp %593 : vector<8x32xf32>
    %cst_140 = arith.constant 1.000000e+00 : f32
    %595 = vector.broadcast %cst_140 : f32 to vector<8x32xf32>
    %596 = arith.addf %595, %594 : vector<8x32xf32>
    %597 = arith.divf %595, %596 : vector<8x32xf32>
    %598 = vector.extract_strided_slice %580 {offsets = [0, 64], sizes = [8, 32], strides = [1, 1]} : vector<8x128xf32> to vector<8x32xf32>
    %599 = math.tanh %598 : vector<8x32xf32>
    %600 = vector.extract_strided_slice %580 {offsets = [0, 96], sizes = [8, 32], strides = [1, 1]} : vector<8x128xf32> to vector<8x32xf32>
    %601 = arith.negf %600 : vector<8x32xf32>
    %602 = math.exp %601 : vector<8x32xf32>
    %cst_141 = arith.constant 1.000000e+00 : f32
    %603 = vector.broadcast %cst_141 : f32 to vector<8x32xf32>
    %604 = arith.addf %603, %602 : vector<8x32xf32>
    %605 = arith.divf %603, %604 : vector<8x32xf32>
    %606 = arith.mulf %597, %568 : vector<8x32xf32>
    %607 = arith.mulf %591, %599 : vector<8x32xf32>
    %608 = arith.addf %606, %607 : vector<8x32xf32>
    %609 = math.tanh %608 : vector<8x32xf32>
    %610 = arith.mulf %605, %609 : vector<8x32xf32>
    %611 = vector.extract_strided_slice %585 {offsets = [0, 0], sizes = [8, 32], strides = [1, 1]} : vector<8x128xf32> to vector<8x32xf32>
    %612 = arith.negf %611 : vector<8x32xf32>
    %613 = math.exp %612 : vector<8x32xf32>
    %cst_142 = arith.constant 1.000000e+00 : f32
    %614 = vector.broadcast %cst_142 : f32 to vector<8x32xf32>
    %615 = arith.addf %614, %613 : vector<8x32xf32>
    %616 = arith.divf %614, %615 : vector<8x32xf32>
    %617 = vector.extract_strided_slice %585 {offsets = [0, 32], sizes = [8, 32], strides = [1, 1]} : vector<8x128xf32> to vector<8x32xf32>
    %618 = arith.negf %617 : vector<8x32xf32>
    %619 = math.exp %618 : vector<8x32xf32>
    %cst_143 = arith.constant 1.000000e+00 : f32
    %620 = vector.broadcast %cst_143 : f32 to vector<8x32xf32>
    %621 = arith.addf %620, %619 : vector<8x32xf32>
    %622 = arith.divf %620, %621 : vector<8x32xf32>
    %623 = vector.extract_strided_slice %585 {offsets = [0, 64], sizes = [8, 32], strides = [1, 1]} : vector<8x128xf32> to vector<8x32xf32>
    %624 = math.tanh %623 : vector<8x32xf32>
    %625 = vector.extract_strided_slice %585 {offsets = [0, 96], sizes = [8, 32], strides = [1, 1]} : vector<8x128xf32> to vector<8x32xf32>
    %626 = arith.negf %625 : vector<8x32xf32>
    %627 = math.exp %626 : vector<8x32xf32>
    %cst_144 = arith.constant 1.000000e+00 : f32
    %628 = vector.broadcast %cst_144 : f32 to vector<8x32xf32>
    %629 = arith.addf %628, %627 : vector<8x32xf32>
    %630 = arith.divf %628, %629 : vector<8x32xf32>
    %631 = arith.mulf %622, %574 : vector<8x32xf32>
    %632 = arith.mulf %616, %624 : vector<8x32xf32>
    %633 = arith.addf %631, %632 : vector<8x32xf32>
    %634 = math.tanh %633 : vector<8x32xf32>
    %635 = arith.mulf %630, %634 : vector<8x32xf32>
    %636 = vector.broadcast %c6_i32 : i32 to vector<8x1xi32>
    %637 = arith.cmpi sgt, %15, %636 : vector<8x1xi32>
    %638 = vector.broadcast %575 : i32 to vector<8x1xi32>
    %639 = arith.cmpi sgt, %15, %638 : vector<8x1xi32>
    %cst_145 = arith.constant 0.000000e+00 : f32
    %640 = vector.shape_cast %637 : vector<8x1xi1> to vector<8x1xi1>
    %641 = vector.broadcast %640 : vector<8x1xi1> to vector<8x32xi1>
    %642 = vector.broadcast %cst_145 : f32 to vector<8x32xf32>
    %643 = arith.select %641, %610, %642 : vector<8x32xi1>, vector<8x32xf32>
    %644 = arith.index_cast %c6_i32 : i32 to index
    %c0_146 = arith.constant 0 : index
    %c0_147 = arith.constant 0 : index
    %645 = vector.load %arg21[%644, %c0_146, %c0_147] : memref<8x8x32xf32, #tpu.memory_space<vmem>>, vector<1x8x32xf32>
    %646 = vector.shape_cast %645 : vector<1x8x32xf32> to vector<8x32xf32>
    %647 = vector.shape_cast %643 : vector<8x32xf32> to vector<1x8x32xf32>
    tpu.vector_store %arg21[%644, %c0_146, %c0_147], %647 {strides = array<i32>} : memref<8x8x32xf32, #tpu.memory_space<vmem>>, vector<1x8x32xf32>,
    %cst_148 = arith.constant 0.000000e+00 : f32
    %648 = vector.shape_cast %639 : vector<8x1xi1> to vector<8x1xi1>
    %649 = vector.broadcast %648 : vector<8x1xi1> to vector<8x32xi1>
    %650 = vector.broadcast %cst_148 : f32 to vector<8x32xf32>
    %651 = arith.select %649, %635, %650 : vector<8x32xi1>, vector<8x32xf32>
    %652 = arith.index_cast %575 : i32 to index
    %c0_149 = arith.constant 0 : index
    %c0_150 = arith.constant 0 : index
    %653 = vector.load %arg22[%652, %c0_149, %c0_150] : memref<8x8x32xf32, #tpu.memory_space<vmem>>, vector<1x8x32xf32>
    %654 = vector.shape_cast %653 : vector<1x8x32xf32> to vector<8x32xf32>
    %655 = vector.shape_cast %651 : vector<8x32xf32> to vector<1x8x32xf32>
    tpu.vector_store %arg22[%652, %c0_149, %c0_150], %655 {strides = array<i32>} : memref<8x8x32xf32, #tpu.memory_space<vmem>>, vector<1x8x32xf32>,
    %656 = vector.shape_cast %637 : vector<8x1xi1> to vector<8x1xi1>
    %657 = vector.broadcast %656 : vector<8x1xi1> to vector<8x32xi1>
    %658 = arith.select %657, %610, %565 : vector<8x32xi1>, vector<8x32xf32>
    %659 = vector.shape_cast %637 : vector<8x1xi1> to vector<8x1xi1>
    %660 = vector.broadcast %659 : vector<8x1xi1> to vector<8x32xi1>
    %661 = arith.select %660, %608, %568 : vector<8x32xi1>, vector<8x32xf32>
    %662 = vector.shape_cast %639 : vector<8x1xi1> to vector<8x1xi1>
    %663 = vector.broadcast %662 : vector<8x1xi1> to vector<8x32xi1>
    %664 = arith.select %663, %635, %571 : vector<8x32xi1>, vector<8x32xf32>
    %665 = vector.shape_cast %639 : vector<8x1xi1> to vector<8x1xi1>
    %666 = vector.broadcast %665 : vector<8x1xi1> to vector<8x32xi1>
    %667 = arith.select %666, %633, %574 : vector<8x32xi1>, vector<8x32xf32>
    %c7_i32_151 = arith.constant 7 : i32
    %c7_i32_152 = arith.constant 7 : i32
    %668 = arith.subi %c7_i32_152, %c7_i32_151 : i32
    %669 = arith.index_cast %c7_i32_151 : i32 to index
    %c0_153 = arith.constant 0 : index
    %c0_154 = arith.constant 0 : index
    %670 = vector.load %arg19[%669, %c0_153, %c0_154] : memref<8x8x128xf32, #tpu.memory_space<vmem>>, vector<1x8x128xf32>
    %671 = vector.shape_cast %670 : vector<1x8x128xf32> to vector<8x128xf32>
    %cst_155 = arith.constant dense<0.000000e+00> : vector<8x128xf32>
    %672 = tpu.matmul %658, %13, %cst_155 {dimension_numbers = #tpu.dot_dimension_numbers<[1], [0], [0], [1], [0, 0, 1, 1], [], []>} : vector<8x32xf32>, vector<32x128xf32>, vector<8x128xf32> -> vector<8x128xf32>
    %673 = arith.addf %671, %672 : vector<8x128xf32>
    %674 = arith.index_cast %668 : i32 to index
    %c0_156 = arith.constant 0 : index
    %c0_157 = arith.constant 0 : index
    %675 = vector.load %arg20[%674, %c0_156, %c0_157] : memref<8x8x128xf32, #tpu.memory_space<vmem>>, vector<1x8x128xf32>
    %676 = vector.shape_cast %675 : vector<1x8x128xf32> to vector<8x128xf32>
    %cst_158 = arith.constant dense<0.000000e+00> : vector<8x128xf32>
    %677 = tpu.matmul %664, %14, %cst_158 {dimension_numbers = #tpu.dot_dimension_numbers<[1], [0], [0], [1], [0, 0, 1, 1], [], []>} : vector<8x32xf32>, vector<32x128xf32>, vector<8x128xf32> -> vector<8x128xf32>
    %678 = arith.addf %676, %677 : vector<8x128xf32>
    %679 = vector.extract_strided_slice %673 {offsets = [0, 0], sizes = [8, 32], strides = [1, 1]} : vector<8x128xf32> to vector<8x32xf32>
    %680 = arith.negf %679 : vector<8x32xf32>
    %681 = math.exp %680 : vector<8x32xf32>
    %cst_159 = arith.constant 1.000000e+00 : f32
    %682 = vector.broadcast %cst_159 : f32 to vector<8x32xf32>
    %683 = arith.addf %682, %681 : vector<8x32xf32>
    %684 = arith.divf %682, %683 : vector<8x32xf32>
    %685 = vector.extract_strided_slice %673 {offsets = [0, 32], sizes = [8, 32], strides = [1, 1]} : vector<8x128xf32> to vector<8x32xf32>
    %686 = arith.negf %685 : vector<8x32xf32>
    %687 = math.exp %686 : vector<8x32xf32>
    %cst_160 = arith.constant 1.000000e+00 : f32
    %688 = vector.broadcast %cst_160 : f32 to vector<8x32xf32>
    %689 = arith.addf %688, %687 : vector<8x32xf32>
    %690 = arith.divf %688, %689 : vector<8x32xf32>
    %691 = vector.extract_strided_slice %673 {offsets = [0, 64], sizes = [8, 32], strides = [1, 1]} : vector<8x128xf32> to vector<8x32xf32>
    %692 = math.tanh %691 : vector<8x32xf32>
    %693 = vector.extract_strided_slice %673 {offsets = [0, 96], sizes = [8, 32], strides = [1, 1]} : vector<8x128xf32> to vector<8x32xf32>
    %694 = arith.negf %693 : vector<8x32xf32>
    %695 = math.exp %694 : vector<8x32xf32>
    %cst_161 = arith.constant 1.000000e+00 : f32
    %696 = vector.broadcast %cst_161 : f32 to vector<8x32xf32>
    %697 = arith.addf %696, %695 : vector<8x32xf32>
    %698 = arith.divf %696, %697 : vector<8x32xf32>
    %699 = arith.mulf %690, %661 : vector<8x32xf32>
    %700 = arith.mulf %684, %692 : vector<8x32xf32>
    %701 = arith.addf %699, %700 : vector<8x32xf32>
    %702 = math.tanh %701 : vector<8x32xf32>
    %703 = arith.mulf %698, %702 : vector<8x32xf32>
    %704 = vector.extract_strided_slice %678 {offsets = [0, 0], sizes = [8, 32], strides = [1, 1]} : vector<8x128xf32> to vector<8x32xf32>
    %705 = arith.negf %704 : vector<8x32xf32>
    %706 = math.exp %705 : vector<8x32xf32>
    %cst_162 = arith.constant 1.000000e+00 : f32
    %707 = vector.broadcast %cst_162 : f32 to vector<8x32xf32>
    %708 = arith.addf %707, %706 : vector<8x32xf32>
    %709 = arith.divf %707, %708 : vector<8x32xf32>
    %710 = vector.extract_strided_slice %678 {offsets = [0, 32], sizes = [8, 32], strides = [1, 1]} : vector<8x128xf32> to vector<8x32xf32>
    %711 = arith.negf %710 : vector<8x32xf32>
    %712 = math.exp %711 : vector<8x32xf32>
    %cst_163 = arith.constant 1.000000e+00 : f32
    %713 = vector.broadcast %cst_163 : f32 to vector<8x32xf32>
    %714 = arith.addf %713, %712 : vector<8x32xf32>
    %715 = arith.divf %713, %714 : vector<8x32xf32>
    %716 = vector.extract_strided_slice %678 {offsets = [0, 64], sizes = [8, 32], strides = [1, 1]} : vector<8x128xf32> to vector<8x32xf32>
    %717 = math.tanh %716 : vector<8x32xf32>
    %718 = vector.extract_strided_slice %678 {offsets = [0, 96], sizes = [8, 32], strides = [1, 1]} : vector<8x128xf32> to vector<8x32xf32>
    %719 = arith.negf %718 : vector<8x32xf32>
    %720 = math.exp %719 : vector<8x32xf32>
    %cst_164 = arith.constant 1.000000e+00 : f32
    %721 = vector.broadcast %cst_164 : f32 to vector<8x32xf32>
    %722 = arith.addf %721, %720 : vector<8x32xf32>
    %723 = arith.divf %721, %722 : vector<8x32xf32>
    %724 = arith.mulf %715, %667 : vector<8x32xf32>
    %725 = arith.mulf %709, %717 : vector<8x32xf32>
    %726 = arith.addf %724, %725 : vector<8x32xf32>
    %727 = math.tanh %726 : vector<8x32xf32>
    %728 = arith.mulf %723, %727 : vector<8x32xf32>
    %729 = vector.broadcast %c7_i32_151 : i32 to vector<8x1xi32>
    %730 = arith.cmpi sgt, %15, %729 : vector<8x1xi32>
    %731 = vector.broadcast %668 : i32 to vector<8x1xi32>
    %732 = arith.cmpi sgt, %15, %731 : vector<8x1xi32>
    %cst_165 = arith.constant 0.000000e+00 : f32
    %733 = vector.shape_cast %730 : vector<8x1xi1> to vector<8x1xi1>
    %734 = vector.broadcast %733 : vector<8x1xi1> to vector<8x32xi1>
    %735 = vector.broadcast %cst_165 : f32 to vector<8x32xf32>
    %736 = arith.select %734, %703, %735 : vector<8x32xi1>, vector<8x32xf32>
    %737 = arith.index_cast %c7_i32_151 : i32 to index
    %c0_166 = arith.constant 0 : index
    %c0_167 = arith.constant 0 : index
    %738 = vector.load %arg21[%737, %c0_166, %c0_167] : memref<8x8x32xf32, #tpu.memory_space<vmem>>, vector<1x8x32xf32>
    %739 = vector.shape_cast %738 : vector<1x8x32xf32> to vector<8x32xf32>
    %740 = vector.shape_cast %736 : vector<8x32xf32> to vector<1x8x32xf32>
    tpu.vector_store %arg21[%737, %c0_166, %c0_167], %740 {strides = array<i32>} : memref<8x8x32xf32, #tpu.memory_space<vmem>>, vector<1x8x32xf32>,
    %cst_168 = arith.constant 0.000000e+00 : f32
    %741 = vector.shape_cast %732 : vector<8x1xi1> to vector<8x1xi1>
    %742 = vector.broadcast %741 : vector<8x1xi1> to vector<8x32xi1>
    %743 = vector.broadcast %cst_168 : f32 to vector<8x32xf32>
    %744 = arith.select %742, %728, %743 : vector<8x32xi1>, vector<8x32xf32>
    %745 = arith.index_cast %668 : i32 to index
    %c0_169 = arith.constant 0 : index
    %c0_170 = arith.constant 0 : index
    %746 = vector.load %arg22[%745, %c0_169, %c0_170] : memref<8x8x32xf32, #tpu.memory_space<vmem>>, vector<1x8x32xf32>
    %747 = vector.shape_cast %746 : vector<1x8x32xf32> to vector<8x32xf32>
    %748 = vector.shape_cast %744 : vector<8x32xf32> to vector<1x8x32xf32>
    tpu.vector_store %arg22[%745, %c0_169, %c0_170], %748 {strides = array<i32>} : memref<8x8x32xf32, #tpu.memory_space<vmem>>, vector<1x8x32xf32>,
    %749 = vector.shape_cast %730 : vector<8x1xi1> to vector<8x1xi1>
    %750 = vector.broadcast %749 : vector<8x1xi1> to vector<8x32xi1>
    %751 = arith.select %750, %703, %658 : vector<8x32xi1>, vector<8x32xf32>
    %752 = vector.shape_cast %730 : vector<8x1xi1> to vector<8x1xi1>
    %753 = vector.broadcast %752 : vector<8x1xi1> to vector<8x32xi1>
    %754 = arith.select %753, %701, %661 : vector<8x32xi1>, vector<8x32xf32>
    %755 = vector.shape_cast %732 : vector<8x1xi1> to vector<8x1xi1>
    %756 = vector.broadcast %755 : vector<8x1xi1> to vector<8x32xi1>
    %757 = arith.select %756, %728, %664 : vector<8x32xi1>, vector<8x32xf32>
    %758 = vector.shape_cast %732 : vector<8x1xi1> to vector<8x1xi1>
    %759 = vector.broadcast %758 : vector<8x1xi1> to vector<8x32xi1>
    %760 = arith.select %759, %726, %667 : vector<8x32xi1>, vector<8x32xf32>
    %c8_i32 = arith.constant 8 : i32
    %c0_171 = arith.constant 0 : index
    %c0_172 = arith.constant 0 : index
    %c0_173 = arith.constant 0 : index
    %761 = vector.load %arg21[%c0_171, %c0_172, %c0_173] : memref<8x8x32xf32, #tpu.memory_space<vmem>>, vector<8x8x32xf32>
    %762 = vector.shape_cast %761 : vector<8x8x32xf32> to vector<64x32xf32>
    %c0_174 = arith.constant 0 : index
    %c0_175 = arith.constant 0 : index
    %c0_176 = arith.constant 0 : index
    %763 = vector.load %arg22[%c0_174, %c0_175, %c0_176] : memref<8x8x32xf32, #tpu.memory_space<vmem>>, vector<8x8x32xf32>
    %764 = vector.shape_cast %763 : vector<8x8x32xf32> to vector<64x32xf32>
    %c0_177 = arith.constant 0 : index
    %c0_178 = arith.constant 0 : index
    %765 = vector.load %arg8[%c0_177, %c0_178] : memref<32x32xf32, #tpu.memory_space<vmem>>, vector<32x32xf32>
    %cst_179 = arith.constant dense<0.000000e+00> : vector<64x32xf32>
    %766 = tpu.matmul %762, %765, %cst_179 {dimension_numbers = #tpu.dot_dimension_numbers<[1], [0], [0], [1], [0, 0, 1, 1], [], []>} : vector<64x32xf32>, vector<32x32xf32>, vector<64x32xf32> -> vector<64x32xf32>
    %c0_180 = arith.constant 0 : index
    %c0_181 = arith.constant 0 : index
    %767 = vector.load %arg9[%c0_180, %c0_181] : memref<32x32xf32, #tpu.memory_space<vmem>>, vector<32x32xf32>
    %cst_182 = arith.constant dense<0.000000e+00> : vector<64x32xf32>
    %768 = tpu.matmul %764, %767, %cst_182 {dimension_numbers = #tpu.dot_dimension_numbers<[1], [0], [0], [1], [0, 0, 1, 1], [], []>} : vector<64x32xf32>, vector<32x32xf32>, vector<64x32xf32> -> vector<64x32xf32>
    %769 = arith.addf %766, %768 : vector<64x32xf32>
    %c0_183 = arith.constant 0 : index
    %c0_184 = arith.constant 0 : index
    %770 = vector.load %arg10[%c0_183, %c0_184] : memref<1x32xf32, #tpu.memory_space<vmem>>, vector<1x32xf32>
    %771 = vector.broadcast %770 : vector<1x32xf32> to vector<64x32xf32>
    %772 = arith.addf %769, %771 : vector<64x32xf32>
    %773 = math.tanh %772 : vector<64x32xf32>
    %c0_185 = arith.constant 0 : index
    %c0_186 = arith.constant 0 : index
    %774 = vector.load %arg11[%c0_185, %c0_186] : memref<1x32xf32, #tpu.memory_space<vmem>>, vector<1x32xf32>
    %775 = vector.broadcast %774 : vector<1x32xf32> to vector<64x32xf32>
    %776 = arith.mulf %773, %775 : vector<64x32xf32>
    %cst_187 = arith.constant dense<0.000000e+00> : vector<64xf32>
    %777 = vector.multi_reduction <add>, %776, %cst_187 [1] : vector<64x32xf32> to vector<64xf32>
    %778 = vector.shape_cast %777 : vector<64xf32> to vector<64x1xf32>
    %779 = vector.shape_cast %778 : vector<64x1xf32> to vector<8x8xf32>
    %780 = tpu.transpose %779, [1, 0] : vector<8x8xf32> -> vector<8x8xf32>
    %c0_188 = arith.constant 0 : index
    %c0_189 = arith.constant 0 : index
    %781 = vector.load %arg2[%c0_188, %c0_189] : memref<8x8xf32, #tpu.memory_space<vmem>>, vector<8x8xf32>
    %cst_190 = arith.constant 0.000000e+00 : f32
    %782 = vector.broadcast %cst_190 : f32 to vector<8x8xf32>
    %783 = arith.cmpf ogt, %781, %782 : vector<8x8xf32>
    %cst_191 = arith.constant -1.000000e+09 : f32
    %784 = vector.broadcast %cst_191 : f32 to vector<8x8xf32>
    %785 = arith.select %783, %780, %784 : vector<8x8xi1>, vector<8x8xf32>
    %cst_192 = arith.constant dense<0xFF800000> : vector<8xf32>
    %786 = vector.multi_reduction <maximumf>, %785, %cst_192 [1] : vector<8x8xf32> to vector<8xf32>
    %787 = vector.shape_cast %786 : vector<8xf32> to vector<8x1xf32>
    %788 = vector.broadcast %787 : vector<8x1xf32> to vector<8x8xf32>
    %789 = arith.subf %785, %788 : vector<8x8xf32>
    %790 = math.exp %789 : vector<8x8xf32>
    %cst_193 = arith.constant dense<0.000000e+00> : vector<8xf32>
    %791 = vector.multi_reduction <add>, %790, %cst_193 [1] : vector<8x8xf32> to vector<8xf32>
    %792 = vector.shape_cast %791 : vector<8xf32> to vector<8x1xf32>
    %793 = tpu.reciprocal %792 {approx = true} : vector<8x1xf32> -> vector<8x1xf32>
    %794 = vector.broadcast %793 : vector<8x1xf32> to vector<8x8xf32>
    %795 = arith.mulf %790, %794 : vector<8x8xf32>
    %c0_194 = arith.constant 0 : index
    %c0_195 = arith.constant 0 : index
    %796 = vector.load %arg18[%c0_194, %c0_195] : memref<8x8xf32, #tpu.memory_space<vmem>>, vector<8x8xf32>
    tpu.vector_store %arg18[%c0_194, %c0_195], %795 {strides = array<i32>} : memref<8x8xf32, #tpu.memory_space<vmem>>, vector<8x8xf32>,
    %797 = tpu.transpose %795, [1, 0] : vector<8x8xf32> -> vector<8x8xf32>
    %798 = vector.shape_cast %797 : vector<8x8xf32> to vector<8x8x1xf32>
    %c0_196 = arith.constant 0 : index
    %c0_197 = arith.constant 0 : index
    %c0_198 = arith.constant 0 : index
    %799 = vector.load %arg21[%c0_196, %c0_197, %c0_198] : memref<8x8x32xf32, #tpu.memory_space<vmem>>, vector<8x8x32xf32>
    %800 = vector.broadcast %798 : vector<8x8x1xf32> to vector<8x8x32xf32>
    %801 = arith.mulf %800, %799 : vector<8x8x32xf32>
    %cst_199 = arith.constant dense<0.000000e+00> : vector<8x32xf32>
    %802 = vector.multi_reduction <add>, %801, %cst_199 [0] : vector<8x8x32xf32> to vector<8x32xf32>
    %c0_200 = arith.constant 0 : index
    %c0_201 = arith.constant 0 : index
    %c0_202 = arith.constant 0 : index
    %803 = vector.load %arg22[%c0_200, %c0_201, %c0_202] : memref<8x8x32xf32, #tpu.memory_space<vmem>>, vector<8x8x32xf32>
    %804 = vector.broadcast %798 : vector<8x8x1xf32> to vector<8x8x32xf32>
    %805 = arith.mulf %804, %803 : vector<8x8x32xf32>
    %cst_203 = arith.constant dense<0.000000e+00> : vector<8x32xf32>
    %806 = vector.multi_reduction <add>, %805, %cst_203 [0] : vector<8x8x32xf32> to vector<8x32xf32>
    %c0_204 = arith.constant 0 : index
    %c0_205 = arith.constant 0 : index
    %807 = vector.load %arg12[%c0_204, %c0_205] : memref<32x32xf32, #tpu.memory_space<vmem>>, vector<32x32xf32>
    %cst_206 = arith.constant dense<0.000000e+00> : vector<8x32xf32>
    %808 = tpu.matmul %802, %807, %cst_206 {dimension_numbers = #tpu.dot_dimension_numbers<[1], [0], [0], [1], [0, 0, 1, 1], [], []>} : vector<8x32xf32>, vector<32x32xf32>, vector<8x32xf32> -> vector<8x32xf32>
    %c0_207 = arith.constant 0 : index
    %c0_208 = arith.constant 0 : index
    %809 = vector.load %arg13[%c0_207, %c0_208] : memref<32x32xf32, #tpu.memory_space<vmem>>, vector<32x32xf32>
    %cst_209 = arith.constant dense<0.000000e+00> : vector<8x32xf32>
    %810 = tpu.matmul %806, %809, %cst_209 {dimension_numbers = #tpu.dot_dimension_numbers<[1], [0], [0], [1], [0, 0, 1, 1], [], []>} : vector<8x32xf32>, vector<32x32xf32>, vector<8x32xf32> -> vector<8x32xf32>
    %811 = arith.addf %808, %810 : vector<8x32xf32>
    %c0_210 = arith.constant 0 : index
    %c0_211 = arith.constant 0 : index
    %812 = vector.load %arg14[%c0_210, %c0_211] : memref<1x32xf32, #tpu.memory_space<vmem>>, vector<1x32xf32>
    %813 = vector.broadcast %812 : vector<1x32xf32> to vector<8x32xf32>
    %814 = arith.addf %811, %813 : vector<8x32xf32>
    %c0_212 = arith.constant 0 : index
    %c0_213 = arith.constant 0 : index
    %815 = vector.load %arg15[%c0_212, %c0_213] : memref<32x128xf32, #tpu.memory_space<vmem>>, vector<32x128xf32>
    %cst_214 = arith.constant dense<0.000000e+00> : vector<8x128xf32>
    %816 = tpu.matmul %814, %815, %cst_214 {dimension_numbers = #tpu.dot_dimension_numbers<[1], [0], [0], [1], [0, 0, 1, 1], [], []>} : vector<8x32xf32>, vector<32x128xf32>, vector<8x128xf32> -> vector<8x128xf32>
    %c0_215 = arith.constant 0 : index
    %c0_216 = arith.constant 0 : index
    %817 = vector.load %arg16[%c0_215, %c0_216] : memref<1x128xf32, #tpu.memory_space<vmem>>, vector<1x128xf32>
    %818 = vector.broadcast %817 : vector<1x128xf32> to vector<8x128xf32>
    %819 = arith.addf %816, %818 : vector<8x128xf32>
    %c0_217 = arith.constant 0 : index
    %c0_218 = arith.constant 0 : index
    %820 = vector.load %arg17[%c0_217, %c0_218] : memref<8x128xf32, #tpu.memory_space<vmem>>, vector<8x128xf32>
    tpu.vector_store %arg17[%c0_217, %c0_218], %819 {strides = array<i32>} : memref<8x128xf32, #tpu.memory_space<vmem>>, vector<8x128xf32>,
    return
  }
  func.func @transform_0(%arg0: i32) -> (i32, i32) {
    %c0_i32 = arith.constant 0 : i32
    %c0_i32_0 = arith.constant 0 : i32
    return %arg0, %c0_i32 : i32, i32
  }
  func.func @transform_1(%arg0: i32) -> (i32, i32) {
    %c0_i32 = arith.constant 0 : i32
    %c0_i32_0 = arith.constant 0 : i32
    return %arg0, %c0_i32 : i32, i32
  }
  func.func @transform_2(%arg0: i32) -> (i32, i32, i32) {
    %c0_i32 = arith.constant 0 : i32
    %c0_i32_0 = arith.constant 0 : i32
    %c0_i32_1 = arith.constant 0 : i32
    return %c0_i32, %arg0, %c0_i32_0 : i32, i32, i32
  }
  func.func @transform_3(%arg0: i32) -> (i32, i32) {
    %c0_i32 = arith.constant 0 : i32
    %c0_i32_0 = arith.constant 0 : i32
    %c0_i32_1 = arith.constant 0 : i32
    return %c0_i32, %c0_i32_0 : i32, i32
  }
  func.func @transform_4(%arg0: i32) -> (i32, i32) {
    %c0_i32 = arith.constant 0 : i32
    %c0_i32_0 = arith.constant 0 : i32
    %c0_i32_1 = arith.constant 0 : i32
    return %c0_i32, %c0_i32_0 : i32, i32
  }
  func.func @transform_5(%arg0: i32) -> (i32, i32) {
    %c0_i32 = arith.constant 0 : i32
    %c0_i32_0 = arith.constant 0 : i32
    %c0_i32_1 = arith.constant 0 : i32
    return %c0_i32, %c0_i32_0 : i32, i32
  }
  func.func @transform_6(%arg0: i32) -> (i32, i32) {
    %c0_i32 = arith.constant 0 : i32
    %c0_i32_0 = arith.constant 0 : i32
    %c0_i32_1 = arith.constant 0 : i32
    return %c0_i32, %c0_i32_0 : i32, i32
  }
  func.func @transform_7(%arg0: i32) -> (i32, i32) {
    %c0_i32 = arith.constant 0 : i32
    %c0_i32_0 = arith.constant 0 : i32
    %c0_i32_1 = arith.constant 0 : i32
    return %c0_i32, %c0_i32_0 : i32, i32
  }
  func.func @transform_8(%arg0: i32) -> (i32, i32) {
    %c0_i32 = arith.constant 0 : i32
    %c0_i32_0 = arith.constant 0 : i32
    %c0_i32_1 = arith.constant 0 : i32
    return %c0_i32, %c0_i32_0 : i32, i32
  }
  func.func @transform_9(%arg0: i32) -> (i32, i32) {
    %c0_i32 = arith.constant 0 : i32
    %c0_i32_0 = arith.constant 0 : i32
    %c0_i32_1 = arith.constant 0 : i32
    return %c0_i32, %c0_i32_0 : i32, i32
  }
  func.func @transform_10(%arg0: i32) -> (i32, i32) {
    %c0_i32 = arith.constant 0 : i32
    %c0_i32_0 = arith.constant 0 : i32
    %c0_i32_1 = arith.constant 0 : i32
    return %c0_i32, %c0_i32_0 : i32, i32
  }
  func.func @transform_11(%arg0: i32) -> (i32, i32) {
    %c0_i32 = arith.constant 0 : i32
    %c0_i32_0 = arith.constant 0 : i32
    %c0_i32_1 = arith.constant 0 : i32
    return %c0_i32, %c0_i32_0 : i32, i32
  }
  func.func @transform_12(%arg0: i32) -> (i32, i32) {
    %c0_i32 = arith.constant 0 : i32
    %c0_i32_0 = arith.constant 0 : i32
    %c0_i32_1 = arith.constant 0 : i32
    return %c0_i32, %c0_i32_0 : i32, i32
  }
  func.func @transform_13(%arg0: i32) -> (i32, i32) {
    %c0_i32 = arith.constant 0 : i32
    %c0_i32_0 = arith.constant 0 : i32
    %c0_i32_1 = arith.constant 0 : i32
    return %c0_i32, %c0_i32_0 : i32, i32
  }
  func.func @transform_14(%arg0: i32) -> (i32, i32) {
    %c0_i32 = arith.constant 0 : i32
    %c0_i32_0 = arith.constant 0 : i32
    %c0_i32_1 = arith.constant 0 : i32
    return %c0_i32, %c0_i32_0 : i32, i32
  }
  func.func @transform_15(%arg0: i32) -> (i32, i32) {
    %c0_i32 = arith.constant 0 : i32
    %c0_i32_0 = arith.constant 0 : i32
    %c0_i32_1 = arith.constant 0 : i32
    return %c0_i32, %c0_i32_0 : i32, i32
  }
  func.func @transform_16(%arg0: i32) -> (i32, i32) {
    %c0_i32 = arith.constant 0 : i32
    %c0_i32_0 = arith.constant 0 : i32
    return %arg0, %c0_i32 : i32, i32
  }
  func.func @transform_17(%arg0: i32) -> (i32, i32) {
    %c0_i32 = arith.constant 0 : i32
    %c0_i32_0 = arith.constant 0 : i32
    return %arg0, %c0_i32 : i32, i32
  }
}

</mosaic_0001>

<llo_original>
// kernel: tpu_custom_call.1
$region0: #{tpu_custom_call.1}
  #allocation0 [shape = 'u32[]', space=smem, size = 0x4, offset = 0x4, fixed_abs, tag = 'smem constant byte address 0x4 - core index']
  #allocation1 [shape = 'u32[144,128]{1,0:T(1,128)}', space=vmem, size = 0x12000, scoped, tag = 'internal scratch']
  #allocation2 [shape = 'f32[8,8,128]{2,1,0:T(8,128)}', space=vmem, size = 0x8000, scoped, tag = 'scratch operand']
  #allocation3 [shape = 'f32[8,8,128]{2,1,0:T(8,128)}', space=vmem, size = 0x8000, scoped, tag = 'scratch operand']
  #allocation4 [shape = 'f32[8,8,32]{2,1,0:T(8,128)}', space=vmem, size = 0x8000, scoped, tag = 'scratch operand']
  #allocation5 [shape = 'f32[8,8,32]{2,1,0:T(8,128)}', space=vmem, size = 0x8000, scoped, tag = 'scratch operand']
  %s0 = inlined_call_operand.vmem [shape: s32[8,1], index: 0, kind: input, shape index: {}]
  %s1 = inlined_call_operand.hbm [shape: f32[8,8], index: 1, kind: input, shape index: {}]
  %s2 = inlined_call_operand.hbm [shape: f32[8,8,16], index: 2, kind: input, shape index: {}]
  %s3 = inlined_call_operand.hbm [shape: f32[16,256], index: 3, kind: input, shape index: {}]
  %s4 = inlined_call_operand.vmem [shape: f32[1,256], index: 4, kind: input, shape index: {}]
  %s5 = inlined_call_operand.hbm [shape: f32[32,128], index: 5, kind: input, shape index: {}]
  %s6 = inlined_call_operand.hbm [shape: f32[32,128], index: 6, kind: input, shape index: {}]
  %s7 = inlined_call_operand.vmem [shape: f32[32,32], index: 7, kind: input, shape index: {}]
  %s8 = inlined_call_operand.hbm [shape: f32[32,32], index: 8, kind: input, shape index: {}]
  %s9 = inlined_call_operand.vmem [shape: f32[1,32], index: 9, kind: input, shape index: {}]
  %s10 = inlined_call_operand.vmem [shape: f32[1,32], index: 10, kind: input, shape index: {}]
  %s11 = inlined_call_operand.hbm [shape: f32[32,32], index: 11, kind: input, shape index: {}]
  %s12 = inlined_call_operand.hbm [shape: f32[32,32], index: 12, kind: input, shape index: {}]
  %s13 = inlined_call_operand.vmem [shape: f32[1,32], index: 13, kind: input, shape index: {}]
  %s14 = inlined_call_operand.hbm [shape: f32[32,128], index: 14, kind: input, shape index: {}]
  %s15 = inlined_call_operand.vmem [shape: f32[1,128], index: 15, kind: input, shape index: {}]
  %s16 = inlined_call_operand.hbm [shape: f32[8,128], index: 16, kind: output, shape index: {0}]
  %s17 = inlined_call_operand.hbm [shape: f32[8,8], index: 17, kind: output, shape index: {1}]
  %18 = xla_tuple %s16, %s17
  %s19 = sld [smem:[#allocation0]]
  $region118: #{tpu_custom_call.1} parent=0
    _
  %s21 = ssub.s32 1, %s19
  %s22 = scalar_select 0, %s21, %s19
  $region1: #{tpu_custom_call.1} parent=0
    #allocation6 [shape = 'u8[4096]{0}', space=vmem, size = 0x1000, scoped, tag = 'input window, operand 1, single buffered']
    #allocation7 [shape = 's32[1]{0}', space=sflag, size = 0x4, scoped, tag = 'scoped memory for tpu_custom_call.1']
    #allocation8 [shape = 's32[1]{0}', space=sflag, size = 0x4, scoped, tag = 'scoped memory for tpu_custom_call.1']
    #allocation9 [shape = 'u8[32768]{0}', space=vmem, size = 0x8000, scoped, tag = 'input window, operand 2, single buffered']
    #allocation10 [shape = 's32[1]{0}', space=sflag, size = 0x4, scoped, tag = 'scoped memory for tpu_custom_call.1']
    #allocation11 [shape = 'u8[16384]{0}', space=vmem, size = 0x4000, scoped, tag = 'input window, operand 3, single buffered']
    #allocation12 [shape = 'u8[16384]{0}', space=vmem, size = 0x4000, scoped, tag = 'input window, operand 5, single buffered']
    #allocation13 [shape = 's32[1]{0}', space=sflag, size = 0x4, scoped, tag = 'scoped memory for tpu_custom_call.1']
    #allocation14 [shape = 'u8[16384]{0}', space=vmem, size = 0x4000, scoped, tag = 'input window, operand 6, single buffered']
    #allocation15 [shape = 'u8[16384]{0}', space=vmem, size = 0x4000, scoped, tag = 'input window, operand 8, single buffered']
    #allocation16 [shape = 's32[1]{0}', space=sflag, size = 0x4, scoped, tag = 'scoped memory for tpu_custom_call.1']
    #allocation17 [shape = 'u8[16384]{0}', space=vmem, size = 0x4000, scoped, tag = 'input window, operand 11, single buffered']
    #allocation18 [shape = 'u8[16384]{0}', space=vmem, size = 0x4000, scoped, tag = 'input window, operand 12, single buffered']
    #allocation19 [shape = 's32[1]{0}', space=sflag, size = 0x4, scoped, tag = 'scoped memory for tpu_custom_call.1']
    #allocation20 [shape = 'u8[16384]{0}', space=vmem, size = 0x4000, scoped, tag = 'input window, operand 14, single buffered']
    #allocation21 [shape = 'u8[4096]{0}', space=vmem, size = 0x1000, scoped, tag = 'output window, operand 0, single buffered']
    #allocation22 [shape = 'u8[4096]{0}', space=vmem, size = 0x1000, scoped, tag = 'output window, operand 1, single buffered']
    #allocation23 [shape = 's32[1]{0}', space=sflag, size = 0x4, scoped, tag = 'scoped memory for tpu_custom_call.1']
    %23 = vsyncpa [#allocation7], 0
    %24 = vsyncpa [#allocation10], 0
    %25 = vsyncpa [#allocation13], 0
    %26 = vsyncpa [#allocation16], 0
    %27 = vsyncpa [#allocation19], 0
    %28 = vsyncpa [#allocation8], 0
    %29 = vsyncpa [#allocation23], 0
    // Predicated region
    $region2: #{tpu_custom_call.1} parent=1 // pred_check
      _
    $region3: #{tpu_custom_call.1} parent=1 // pred_check_branch
      %31 = sbr.rel (0) target = $region5
    $region4: #{tpu_custom_call.1} parent=1 // pred_region
      _
    $region5: #{tpu_custom_call.1} parent=1 // pred_fallthru
      _
    // Predicated region
    $region6: #{tpu_custom_call.1} parent=1 // pred_check
      _
    $region7: #{tpu_custom_call.1} parent=1 // pred_check_branch
      %33 = sbr.rel (0) target = $region9
    $region8: #{tpu_custom_call.1} parent=1 // pred_region
      %s35 = ssub.s32 128, 128
      %36 = vsyncadd [#allocation7], %s35
      %s38 = sshll.u32 [#allocation6], 4
      %s39 = int_to_ptr.vmem [resolvable:$true] %s38
      %41 = dma.hbm_to_vmem [thread:$0]  %s1, 128, %s39, [#allocation7]
    $region9: #{tpu_custom_call.1} parent=1 // pred_fallthru
      _
    // Predicated region
    $region10: #{tpu_custom_call.1} parent=1 // pred_check
      _
    $region11: #{tpu_custom_call.1} parent=1 // pred_check_branch
      %43 = sbr.rel (0) target = $region13
    $region12: #{tpu_custom_call.1} parent=1 // pred_region
      %s45 = ssub.s32 1024, 1024
      %46 = vsyncadd [#allocation10], %s45
      %s47 = sshll.u32 [#allocation9], 4
      %s48 = int_to_ptr.vmem [resolvable:$true] %s47
      %53 = dma.hbm_to_vmem [thread:$0]  %s2, 1024, %s48, [#allocation10], 128, 128, 8
    $region13: #{tpu_custom_call.1} parent=1 // pred_fallthru
      _
    // Predicated region
    $region14: #{tpu_custom_call.1} parent=1 // pred_check
      _
    $region15: #{tpu_custom_call.1} parent=1 // pred_check_branch
      %55 = sbr.rel (0) target = $region17
    $region16: #{tpu_custom_call.1} parent=1 // pred_region
      %s57 = ssub.s32 512, 512
      %58 = vsyncadd [#allocation10], %s57
      %s59 = sshll.u32 [#allocation11], 4
      %s60 = int_to_ptr.vmem [resolvable:$true] %s59
      %65 = dma.hbm_to_vmem [thread:$0]  %s3, 512, %s60, [#allocation10], 256, 256, 16
    $region17: #{tpu_custom_call.1} parent=1 // pred_fallthru
      _
    // Predicated region
    $region18: #{tpu_custom_call.1} parent=1 // pred_check
      _
    $region19: #{tpu_custom_call.1} parent=1 // pred_check_branch
      %67 = sbr.rel (0) target = $region21
    $region20: #{tpu_custom_call.1} parent=1 // pred_region
      _
    $region21: #{tpu_custom_call.1} parent=1 // pred_fallthru
      _
    // Predicated region
    $region22: #{tpu_custom_call.1} parent=1 // pred_check
      _
    $region23: #{tpu_custom_call.1} parent=1 // pred_check_branch
      %69 = sbr.rel (0) target = $region25
    $region24: #{tpu_custom_call.1} parent=1 // pred_region
      %s71 = ssub.s32 512, 512
      %72 = vsyncadd [#allocation13], %s71
      %s73 = sshll.u32 [#allocation12], 4
      %s74 = int_to_ptr.vmem [resolvable:$true] %s73
      %79 = dma.hbm_to_vmem [thread:$0]  %s5, 512, %s74, [#allocation13], 128, 128, 8
    $region25: #{tpu_custom_call.1} parent=1 // pred_fallthru
      _
    // Predicated region
    $region26: #{tpu_custom_call.1} parent=1 // pred_check
      _
    $region27: #{tpu_custom_call.1} parent=1 // pred_check_branch
      %81 = sbr.rel (0) target = $region29
    $region28: #{tpu_custom_call.1} parent=1 // pred_region
      %s83 = ssub.s32 512, 512
      %84 = vsyncadd [#allocation13], %s83
      %s85 = sshll.u32 [#allocation14], 4
      %s86 = int_to_ptr.vmem [resolvable:$true] %s85
      %91 = dma.hbm_to_vmem [thread:$0]  %s6, 512, %s86, [#allocation13], 128, 128, 8
    $region29: #{tpu_custom_call.1} parent=1 // pred_fallthru
      _
    // Predicated region
    $region30: #{tpu_custom_call.1} parent=1 // pred_check
      _
    $region31: #{tpu_custom_call.1} parent=1 // pred_check_branch
      %93 = sbr.rel (0) target = $region33
    $region32: #{tpu_custom_call.1} parent=1 // pred_region
      _
    $region33: #{tpu_custom_call.1} parent=1 // pred_fallthru
      _
    // Predicated region
    $region34: #{tpu_custom_call.1} parent=1 // pred_check
      _
    $region35: #{tpu_custom_call.1} parent=1 // pred_check_branch
      %95 = sbr.rel (0) target = $region37
    $region36: #{tpu_custom_call.1} parent=1 // pred_region
      %s97 = ssub.s32 512, 512
      %98 = vsyncadd [#allocation16], %s97
      %s99 = sshll.u32 [#allocation15], 4
      %s100 = int_to_ptr.vmem [resolvable:$true] %s99
      %105 = dma.hbm_to_vmem [thread:$0]  %s8, 512, %s100, [#allocation16], 128, 128, 8
    $region37: #{tpu_custom_call.1} parent=1 // pred_fallthru
      _
    // Predicated region
    $region38: #{tpu_custom_call.1} parent=1 // pred_check
      _
    $region39: #{tpu_custom_call.1} parent=1 // pred_check_branch
      %107 = sbr.rel (0) target = $region41
    $region40: #{tpu_custom_call.1} parent=1 // pred_region
      _
    $region41: #{tpu_custom_call.1} parent=1 // pred_fallthru
      _
    // Predicated region
    $region42: #{tpu_custom_call.1} parent=1 // pred_check
      _
    $region43: #{tpu_custom_call.1} parent=1 // pred_check_branch
      %109 = sbr.rel (0) target = $region45
    $region44: #{tpu_custom_call.1} parent=1 // pred_region
      _
    $region45: #{tpu_custom_call.1} parent=1 // pred_fallthru
      _
    // Predicated region
    $region46: #{tpu_custom_call.1} parent=1 // pred_check
      _
    $region47: #{tpu_custom_call.1} parent=1 // pred_check_branch
      %111 = sbr.rel (0) target = $region49
    $region48: #{tpu_custom_call.1} parent=1 // pred_region
      %s113 = ssub.s32 512, 512
      %114 = vsyncadd [#allocation16], %s113
      %s115 = sshll.u32 [#allocation17], 4
      %s116 = int_to_ptr.vmem [resolvable:$true] %s115
      %121 = dma.hbm_to_vmem [thread:$0]  %s11, 512, %s116, [#allocation16], 128, 128, 8
    $region49: #{tpu_custom_call.1} parent=1 // pred_fallthru
      _
    // Predicated region
    $region50: #{tpu_custom_call.1} parent=1 // pred_check
      _
    $region51: #{tpu_custom_call.1} parent=1 // pred_check_branch
      %123 = sbr.rel (0) target = $region53
    $region52: #{tpu_custom_call.1} parent=1 // pred_region
      %s125 = ssub.s32 512, 512
      %126 = vsyncadd [#allocation19], %s125
      %s127 = sshll.u32 [#allocation18], 4
      %s128 = int_to_ptr.vmem [resolvable:$true] %s127
      %133 = dma.hbm_to_vmem [thread:$0]  %s12, 512, %s128, [#allocation19], 128, 128, 8
    $region53: #{tpu_custom_call.1} parent=1 // pred_fallthru
      _
    // Predicated region
    $region54: #{tpu_custom_call.1} parent=1 // pred_check
      _
    $region55: #{tpu_custom_call.1} parent=1 // pred_check_branch
      %135 = sbr.rel (0) target = $region57
    $region56: #{tpu_custom_call.1} parent=1 // pred_region
      _
    $region57: #{tpu_custom_call.1} parent=1 // pred_fallthru
      _
    // Predicated region
    $region58: #{tpu_custom_call.1} parent=1 // pred_check
      _
    $region59: #{tpu_custom_call.1} parent=1 // pred_check_branch
      %137 = sbr.rel (0) target = $region61
    $region60: #{tpu_custom_call.1} parent=1 // pred_region
      %s139 = ssub.s32 512, 512
      %140 = vsyncadd [#allocation19], %s139
      %s141 = sshll.u32 [#allocation20], 4
      %s142 = int_to_ptr.vmem [resolvable:$true] %s141
      %147 = dma.hbm_to_vmem [thread:$0]  %s14, 512, %s142, [#allocation19], 128, 128, 8
    $region61: #{tpu_custom_call.1} parent=1 // pred_fallthru
      _
    // Predicated region
    $region62: #{tpu_custom_call.1} parent=1 // pred_check
      _
    $region63: #{tpu_custom_call.1} parent=1 // pred_check_branch
      %149 = sbr.rel (0) target = $region65
    $region64: #{tpu_custom_call.1} parent=1 // pred_region
      _
    $region65: #{tpu_custom_call.1} parent=1 // pred_fallthru
      _
    // Predicated region
    $region66: #{tpu_custom_call.1} parent=1 // pred_check
      _
    $region67: #{tpu_custom_call.1} parent=1 // pred_check_branch
      %151 = sbr.rel (0) target = $region69
    $region68: #{tpu_custom_call.1} parent=1 // pred_region
      %152 = dma.done [#allocation7], 128
    $region69: #{tpu_custom_call.1} parent=1 // pred_fallthru
      _
    // Predicated region
    $region70: #{tpu_custom_call.1} parent=1 // pred_check
      _
    $region71: #{tpu_custom_call.1} parent=1 // pred_check_branch
      %154 = sbr.rel (0) target = $region73
    $region72: #{tpu_custom_call.1} parent=1 // pred_region
      %155 = dma.done [#allocation10], 1024
    $region73: #{tpu_custom_call.1} parent=1 // pred_fallthru
      _
    // Predicated region
    $region74: #{tpu_custom_call.1} parent=1 // pred_check
      _
    $region75: #{tpu_custom_call.1} parent=1 // pred_check_branch
      %157 = sbr.rel (0) target = $region77
    $region76: #{tpu_custom_call.1} parent=1 // pred_region
      %158 = dma.done [#allocation10], 512
    $region77: #{tpu_custom_call.1} parent=1 // pred_fallthru
      _
    // Predicated region
    $region78: #{tpu_custom_call.1} parent=1 // pred_check
      _
    $region79: #{tpu_custom_call.1} parent=1 // pred_check_branch
      %160 = sbr.rel (0) target = $region81
    $region80: #{tpu_custom_call.1} parent=1 // pred_region
      %161 = dma.done [#allocation13], 512
    $region81: #{tpu_custom_call.1} parent=1 // pred_fallthru
      _
    // Predicated region
    $region82: #{tpu_custom_call.1} parent=1 // pred_check
      _
    $region83: #{tpu_custom_call.1} parent=1 // pred_check_branch
      %163 = sbr.rel (0) target = $region85
    $region84: #{tpu_custom_call.1} parent=1 // pred_region
      %164 = dma.done [#allocation13], 512
    $region85: #{tpu_custom_call.1} parent=1 // pred_fallthru
      _
    // Predicated region
    $region86: #{tpu_custom_call.1} parent=1 // pred_check
      _
    $region87: #{tpu_custom_call.1} parent=1 // pred_check_branch
      %166 = sbr.rel (0) target = $region89
    $region88: #{tpu_custom_call.1} parent=1 // pred_region
      %167 = dma.done [#allocation16], 512
    $region89: #{tpu_custom_call.1} parent=1 // pred_fallthru
      _
    // Predicated region
    $region90: #{tpu_custom_call.1} parent=1 // pred_check
      _
    $region91: #{tpu_custom_call.1} parent=1 // pred_check_branch
      %169 = sbr.rel (0) target = $region93
    $region92: #{tpu_custom_call.1} parent=1 // pred_region
      %170 = dma.done [#allocation16], 512
    $region93: #{tpu_custom_call.1} parent=1 // pred_fallthru
      _
    // Predicated region
    $region94: #{tpu_custom_call.1} parent=1 // pred_check
      _
    $region95: #{tpu_custom_call.1} parent=1 // pred_check_branch
      %172 = sbr.rel (0) target = $region97
    $region96: #{tpu_custom_call.1} parent=1 // pred_region
      %173 = dma.done [#allocation19], 512
    $region97: #{tpu_custom_call.1} parent=1 // pred_fallthru
      _
    // Predicated region
    $region98: #{tpu_custom_call.1} parent=1 // pred_check
      _
    $region99: #{tpu_custom_call.1} parent=1 // pred_check_branch
      %175 = sbr.rel (0) target = $region101
    $region100: #{tpu_custom_call.1} parent=1 // pred_region
      %176 = dma.done [#allocation19], 512
    $region101: #{tpu_custom_call.1} parent=1 // pred_fallthru
      _
    %v177 = vld [vmem:[#allocation9] sm:$0xff]
    %v178 = vld [vmem:[#allocation9 + $0x8] sm:$0xff]
    %v179 = vld [vmem:[#allocation9 + $0x10] sm:$0xff]
    %v180 = vld [vmem:[#allocation9 + $0x18] sm:$0xff]
    %v181 = vld [vmem:[#allocation9 + $0x20] sm:$0xff]
    %v182 = vld [vmem:[#allocation9 + $0x28] sm:$0xff]
    %v183 = vld [vmem:[#allocation9 + $0x30] sm:$0xff]
    %v184 = vld [vmem:[#allocation9 + $0x38] sm:$0xff]
    %v185 = vld [vmem:[#allocation11] sm:$0xff]
    %v186 = vld [vmem:[#allocation11 + $0x8] sm:$0xff]
    %v187 = vld [vmem:[#allocation11 + $0x10] sm:$0xff]
    %v188 = vld [vmem:[#allocation11 + $0x18] sm:$0xff]
    %v189 = vld [vmem:[%s4] sm:$0x3]
    %v191 = vlaneseq
    %v192 = vshrl.u32 %v191, 7
    %v193 = vsub.s32 0, %v192
    %v194 = vrot.slane %v189, %v193
    %v195 = vlaneseq
    %v196 = vshrl.u32 %v195, 7
    %v197 = vsub.s32 1, %v196
    %v198 = vrot.slane %v189, %v197
    %vm201 = vcmask 130048
    %v203 = vsel %vm201, %v177, 0
    %v206 = vsel %vm201, %v178, 0
    %v209 = vsel %vm201, %v179, 0
    %v212 = vsel %vm201, %v180, 0
    %v215 = vsel %vm201, %v181, 0
    %v218 = vsel %vm201, %v182, 0
    %v221 = vsel %vm201, %v183, 0
    %v224 = vsel %vm201, %v184, 0
    %226 = vmatprep.subr.mxu0 %v186
    %227 = vmatpush1.msra.mxu0 %v185
    %228 = vmatprep.subr.mxu0 %v188
    %229 = vmatpush1.msra.mxu0 %v187
    %230 = vmatprep.subr.mxu0 0.0
    %231 = vmatpush1.msra.mxu0 0.0
    %232 = vmatprep.subr.mxu0 0.0
    %233 = vmatpush1.msra.mxu0 0.0
    %234 = vmatprep.subr.mxu0 0.0
    %235 = vmatpush1.msra.mxu0 0.0
    %236 = vmatprep.subr.mxu0 0.0
    %237 = vmatpush1.msra.mxu0 0.0
    %238 = vmatprep.subr.mxu0 0.0
    %239 = vmatpush1.msra.mxu0 0.0
    %240 = vmatprep.subr.mxu0 0.0
    %241 = vmatpush1.msra.mxu0 0.0
    %242 = vmatprep.subr.mxu0 0.0
    %243 = vmatpush1.msra.mxu0 0.0
    %244 = vmatprep.subr.mxu0 0.0
    %245 = vmatpush1.msra.mxu0 0.0
    %246 = vmatprep.subr.mxu0 0.0
    %247 = vmatpush1.msra.mxu0 0.0
    %248 = vmatprep.subr.mxu0 0.0
    %249 = vmatpush1.msra.mxu0 0.0
    %250 = vmatprep.subr.mxu0 0.0
    %251 = vmatpush1.msra.mxu0 0.0
    %252 = vmatprep.subr.mxu0 0.0
    %253 = vmatpush1.msra.mxu0 0.0
    %254 = vmatprep.subr.mxu0 0.0
    %255 = vmatpush1.msra.mxu0 0.0
    %256 = vmatprep.subr.mxu0 0.0
    %257 = vmatpush1.msra.mxu0 0.0
    %258 = vmatprep.subr.mxu0 0.0
    %259 = vmatpush1.msra.mxu0 0.0
    %260 = vmatprep.subr.mxu0 0.0
    %261 = vmatpush1.msra.mxu0 0.0
    %262 = vmatprep.subr.mxu0 0.0
    %263 = vmatpush1.msra.mxu0 0.0
    %264 = vmatprep.subr.mxu0 0.0
    %265 = vmatpush1.msra.mxu0 0.0
    %266 = vmatprep.subr.mxu0 0.0
    %267 = vmatpush1.msra.mxu0 0.0
    %268 = vmatprep.subr.mxu0 0.0
    %269 = vmatpush1.msra.mxu0 0.0
    %270 = vmatprep.subr.mxu0 0.0
    %271 = vmatpush1.msra.mxu0 0.0
    %272 = vmatprep.subr.mxu0 0.0
    %273 = vmatpush1.msra.mxu0 0.0
    %274 = vmatprep.subr.mxu0 0.0
    %275 = vmatpush1.msra.mxu0 0.0
    %276 = vmatprep.subr.mxu0 0.0
    %277 = vmatpush1.msra.mxu0 0.0
    %278 = vmatprep.subr.mxu0 0.0
    %279 = vmatpush1.msra.mxu0 0.0
    %280 = vmatprep.subr.mxu0 0.0
    %281 = vmatpush1.msra.mxu0 0.0
    %282 = vmatprep.subr.mxu0 0.0
    %283 = vmatpush1.msra.mxu0 0.0
    %284 = vmatprep.subr.mxu0 0.0
    %285 = vmatpush1.msra.mxu0 0.0
    %286 = vmatprep.subr.mxu0 0.0
    %287 = vmatpush1.msra.mxu0 0.0
    %288 = vmatprep.subr.mxu0 0.0
    %289 = vmatpush1.msra.mxu0 0.0
    %290 = vmatprep.mubr.f32.mxu0 0.0
    %291 = vmatmul.mubr.f32.gmra.mrb[0].mxu0 %v203
    %v292 = vpop.f32.mrb[0].mxu0
    %v293 = vadd.f32 %v194, %v292
    %v294 = vpop.f32.mrb[0].mxu0
    %v295 = vadd.f32 %v198, %v294
    %296 = vmatprep.mubr.f32.mxu0 0.0
    %297 = vmatmul.mubr.f32.gmra.mrb[0].mxu0 %v206
    %v298 = vpop.f32.mrb[0].mxu0
    %v299 = vadd.f32 %v194, %v298
    %v300 = vpop.f32.mrb[0].mxu0
    %v301 = vadd.f32 %v198, %v300
    %302 = vmatprep.mubr.f32.mxu0 0.0
    %303 = vmatmul.mubr.f32.gmra.mrb[0].mxu0 %v209
    %v304 = vpop.f32.mrb[0].mxu0
    %v305 = vadd.f32 %v194, %v304
    %v306 = vpop.f32.mrb[0].mxu0
    %v307 = vadd.f32 %v198, %v306
    %308 = vmatprep.mubr.f32.mxu0 0.0
    %309 = vmatmul.mubr.f32.gmra.mrb[0].mxu0 %v212
    %v310 = vpop.f32.mrb[0].mxu0
    %v311 = vadd.f32 %v194, %v310
    %v312 = vpop.f32.mrb[0].mxu0
    %v313 = vadd.f32 %v198, %v312
    %314 = vmatprep.mubr.f32.mxu0 0.0
    %315 = vmatmul.mubr.f32.gmra.mrb[0].mxu0 %v215
    %v316 = vpop.f32.mrb[0].mxu0
    %v317 = vadd.f32 %v194, %v316
    %v318 = vpop.f32.mrb[0].mxu0
    %v319 = vadd.f32 %v198, %v318
    %320 = vmatprep.mubr.f32.mxu0 0.0
    %321 = vmatmul.mubr.f32.gmra.mrb[0].mxu0 %v218
    %v322 = vpop.f32.mrb[0].mxu0
    %v323 = vadd.f32 %v194, %v322
    %v324 = vpop.f32.mrb[0].mxu0
    %v325 = vadd.f32 %v198, %v324
    %326 = vmatprep.mubr.f32.mxu0 0.0
    %327 = vmatmul.mubr.f32.gmra.mrb[0].mxu0 %v221
    %v328 = vpop.f32.mrb[0].mxu0
    %v329 = vadd.f32 %v194, %v328
    %v330 = vpop.f32.mrb[0].mxu0
    %v331 = vadd.f32 %v198, %v330
    %332 = vmatprep.mubr.f32.mxu0 0.0
    %333 = vmatmul.mubr.f32.gmra.mrb[0].mxu0 %v224
    %v334 = vpop.f32.mrb[0].mxu0
    %v335 = vadd.f32 %v194, %v334
    %v336 = vpop.f32.mrb[0].mxu0
    %v337 = vadd.f32 %v198, %v336
    %338 = vdwg.mxu0
    %339 = vst [vmem:[#allocation2] sm:$0xff] %v293
    %340 = vst [vmem:[#allocation2 + $0x8] sm:$0xff] %v299
    %341 = vst [vmem:[#allocation2 + $0x10] sm:$0xff] %v305
    %342 = vst [vmem:[#allocation2 + $0x18] sm:$0xff] %v311
    %343 = vst [vmem:[#allocation2 + $0x20] sm:$0xff] %v317
    %344 = vst [vmem:[#allocation2 + $0x28] sm:$0xff] %v323
    %345 = vst [vmem:[#allocation2 + $0x30] sm:$0xff] %v329
    %346 = vst [vmem:[#allocation2 + $0x38] sm:$0xff] %v335
    %347 = vst [vmem:[#allocation3] sm:$0xff] %v295
    %348 = vst [vmem:[#allocation3 + $0x8] sm:$0xff] %v301
    %349 = vst [vmem:[#allocation3 + $0x10] sm:$0xff] %v307
    %350 = vst [vmem:[#allocation3 + $0x18] sm:$0xff] %v313
    %351 = vst [vmem:[#allocation3 + $0x20] sm:$0xff] %v319
    %352 = vst [vmem:[#allocation3 + $0x28] sm:$0xff] %v325
    %353 = vst [vmem:[#allocation3 + $0x30] sm:$0xff] %v331
    %354 = vst [vmem:[#allocation3 + $0x38] sm:$0xff] %v337
    %v355 = vld [vmem:[#allocation12] sm:$0xff]
    %v356 = vld [vmem:[#allocation12 + $0x8] sm:$0xff]
    %v357 = vld [vmem:[#allocation12 + $0x10] sm:$0xff]
    %v358 = vld [vmem:[#allocation12 + $0x18] sm:$0xff]
    %v359 = vld [vmem:[#allocation14] sm:$0xff]
    %v360 = vld [vmem:[#allocation14 + $0x8] sm:$0xff]
    %v361 = vld [vmem:[#allocation14 + $0x10] sm:$0xff]
    %v362 = vld [vmem:[#allocation14 + $0x18] sm:$0xff]
    %v363 = vld [vmem:[%s0] sm:$0xff]
    %v364 = vld [vmem:[#allocation2] sm:$0xff]
    %vm365 = vcmask 261120
    %v367 = vsel %vm365, 0.0, 0
    %369 = vmatprep.subr.mxu0 0.0
    %370 = vmatpush1.msra.mxu0 %v355
    %371 = vmatprep.subr.mxu0 0.0
    %372 = vmatpush1.msra.mxu0 %v356
    %373 = vmatprep.subr.mxu0 0.0
    %374 = vmatpush1.msra.mxu0 %v357
    %375 = vmatprep.subr.mxu0 0.0
    %376 = vmatpush1.msra.mxu0 %v358
    %377 = vmatprep.subr.mxu0 0.0
    %378 = vmatpush1.msra.mxu0 0.0
    %379 = vmatprep.subr.mxu0 0.0
    %380 = vmatpush1.msra.mxu0 0.0
    %381 = vmatprep.subr.mxu0 0.0
    %382 = vmatpush1.msra.mxu0 0.0
    %383 = vmatprep.subr.mxu0 0.0
    %384 = vmatpush1.msra.mxu0 0.0
    %385 = vmatprep.subr.mxu0 0.0
    %386 = vmatpush1.msra.mxu0 0.0
    %387 = vmatprep.subr.mxu0 0.0
    %388 = vmatpush1.msra.mxu0 0.0
    %389 = vmatprep.subr.mxu0 0.0
    %390 = vmatpush1.msra.mxu0 0.0
    %391 = vmatprep.subr.mxu0 0.0
    %392 = vmatpush1.msra.mxu0 0.0
    %393 = vmatprep.subr.mxu0 0.0
    %394 = vmatpush1.msra.mxu0 0.0
    %395 = vmatprep.subr.mxu0 0.0
    %396 = vmatpush1.msra.mxu0 0.0
    %397 = vmatprep.subr.mxu0 0.0
    %398 = vmatpush1.msra.mxu0 0.0
    %399 = vmatprep.subr.mxu0 0.0
    %400 = vmatpush1.msra.mxu0 0.0
    %401 = vmatprep.subr.mxu0 0.0
    %402 = vmatpush1.msra.mxu0 0.0
    %403 = vmatprep.subr.mxu0 0.0
    %404 = vmatpush1.msra.mxu0 0.0
    %405 = vmatprep.subr.mxu0 0.0
    %406 = vmatpush1.msra.mxu0 0.0
    %407 = vmatprep.subr.mxu0 0.0
    %408 = vmatpush1.msra.mxu0 0.0
    %409 = vmatprep.subr.mxu0 0.0
    %410 = vmatpush1.msra.mxu0 0.0
    %411 = vmatprep.subr.mxu0 0.0
    %412 = vmatpush1.msra.mxu0 0.0
    %413 = vmatprep.subr.mxu0 0.0
    %414 = vmatpush1.msra.mxu0 0.0
    %415 = vmatprep.subr.mxu0 0.0
    %416 = vmatpush1.msra.mxu0 0.0
    %417 = vmatprep.subr.mxu0 0.0
    %418 = vmatpush1.msra.mxu0 0.0
    %419 = vmatprep.subr.mxu0 0.0
    %420 = vmatpush1.msra.mxu0 0.0
    %421 = vmatprep.subr.mxu0 0.0
    %422 = vmatpush1.msra.mxu0 0.0
    %423 = vmatprep.subr.mxu0 0.0
    %424 = vmatpush1.msra.mxu0 0.0
    %425 = vmatprep.subr.mxu0 0.0
    %426 = vmatpush1.msra.mxu0 0.0
    %427 = vmatprep.subr.mxu0 0.0
    %428 = vmatpush1.msra.mxu0 0.0
    %429 = vmatprep.subr.mxu0 0.0
    %430 = vmatpush1.msra.mxu0 0.0
    %431 = vmatprep.subr.mxu0 0.0
    %432 = vmatpush1.msra.mxu0 0.0
    %433 = vmatprep.mubr.f32.mxu0 0.0
    %434 = vmatmul.mubr.f32.gmra.mrb[0].mxu0 %v367
    %v435 = vpop.f32.mrb[0].mxu0
    %v436 = vadd.f32 0.0, %v435
    %v437 = vpop.f32.mrb[0].mxu0
    %438 = vdwg.mxu0
    %v439 = vadd.f32 %v364, %v436
    %s440 = scalar_lea.vmem [#allocation3], 56
    %v441 = vld [vmem:[%s440] sm:$0xff]
    %442 = vmatprep.subr.mxu0 0.0
    %443 = vmatpush1.msra.mxu0 %v359
    %444 = vmatprep.subr.mxu0 0.0
    %445 = vmatpush1.msra.mxu0 %v360
    %446 = vmatprep.subr.mxu0 0.0
    %447 = vmatpush1.msra.mxu0 %v361
    %448 = vmatprep.subr.mxu0 0.0
    %449 = vmatpush1.msra.mxu0 %v362
    %450 = vmatprep.subr.mxu0 0.0
    %451 = vmatpush1.msra.mxu0 0.0
    %452 = vmatprep.subr.mxu0 0.0
    %453 = vmatpush1.msra.mxu0 0.0
    %454 = vmatprep.subr.mxu0 0.0
    %455 = vmatpush1.msra.mxu0 0.0
    %456 = vmatprep.subr.mxu0 0.0
    %457 = vmatpush1.msra.mxu0 0.0
    %458 = vmatprep.subr.mxu0 0.0
    %459 = vmatpush1.msra.mxu0 0.0
    %460 = vmatprep.subr.mxu0 0.0
    %461 = vmatpush1.msra.mxu0 0.0
    %462 = vmatprep.subr.mxu0 0.0
    %463 = vmatpush1.msra.mxu0 0.0
    %464 = vmatprep.subr.mxu0 0.0
    %465 = vmatpush1.msra.mxu0 0.0
    %466 = vmatprep.subr.mxu0 0.0
    %467 = vmatpush1.msra.mxu0 0.0
    %468 = vmatprep.subr.mxu0 0.0
    %469 = vmatpush1.msra.mxu0 0.0
    %470 = vmatprep.subr.mxu0 0.0
    %471 = vmatpush1.msra.mxu0 0.0
    %472 = vmatprep.subr.mxu0 0.0
    %473 = vmatpush1.msra.mxu0 0.0
    %474 = vmatprep.subr.mxu0 0.0
    %475 = vmatpush1.msra.mxu0 0.0
    %476 = vmatprep.subr.mxu0 0.0
    %477 = vmatpush1.msra.mxu0 0.0
    %478 = vmatprep.subr.mxu0 0.0
    %479 = vmatpush1.msra.mxu0 0.0
    %480 = vmatprep.subr.mxu0 0.0
    %481 = vmatpush1.msra.mxu0 0.0
    %482 = vmatprep.subr.mxu0 0.0
    %483 = vmatpush1.msra.mxu0 0.0
    %484 = vmatprep.subr.mxu0 0.0
    %485 = vmatpush1.msra.mxu0 0.0
    %486 = vmatprep.subr.mxu0 0.0
    %487 = vmatpush1.msra.mxu0 0.0
    %488 = vmatprep.subr.mxu0 0.0
    %489 = vmatpush1.msra.mxu0 0.0
    %490 = vmatprep.subr.mxu0 0.0
    %491 = vmatpush1.msra.mxu0 0.0
    %492 = vmatprep.subr.mxu0 0.0
    %493 = vmatpush1.msra.mxu0 0.0
    %494 = vmatprep.subr.mxu0 0.0
    %495 = vmatpush1.msra.mxu0 0.0
    %496 = vmatprep.subr.mxu0 0.0
    %497 = vmatpush1.msra.mxu0 0.0
    %498 = vmatprep.subr.mxu0 0.0
    %499 = vmatpush1.msra.mxu0 0.0
    %500 = vmatprep.subr.mxu0 0.0
    %501 = vmatpush1.msra.mxu0 0.0
    %502 = vmatprep.subr.mxu0 0.0
    %503 = vmatpush1.msra.mxu0 0.0
    %504 = vmatprep.subr.mxu0 0.0
    %505 = vmatpush1.msra.mxu0 0.0
    %506 = vmatprep.mubr.f32.mxu0 0.0
    %507 = vmatmul.mubr.f32.gmra.mrb[0].mxu0 %v367
    %v508 = vpop.f32.mrb[0].mxu0
    %v509 = vadd.f32 0.0, %v508
    %v510 = vpop.f32.mrb[0].mxu0
    %511 = vdwg.mxu0
    %v512 = vadd.f32 %v441, %v509
    %v513 = vxor.u32 %v439, 2147483648
    %v514 = vmul.f32 %v513, 1.442695
    %v515 = vpow.pop %v514
    %v516 = vadd.f32 %v515, 1.0
    %v517 = vrcp.pop %v516
    %v518 = vmul.f32 1.0, %v517
    %v519 = vtanh.pop %v439
    %v520 = vmul.f32 %v518, 0.0
    %522 = vrot.lane.b32.xlu0 %v519, 64
    %v523 = vpop.permute.xlu0 %522
    %v525 = vmul.f32 %v518, %v523
    %527 = vrot.lane.b32.xlu0 %v525, 32
    %v528 = vpop.permute.xlu0 %527
    %v530 = vadd.f32 %v520, %v528
    %v531 = vtanh.pop %v530
    %533 = vrot.lane.b32.xlu0 %v531, 64
    %v534 = vpop.permute.xlu0 %533
    %v536 = vmul.f32 %v518, %v534
    %v537 = vxor.u32 %v512, 2147483648
    %v538 = vmul.f32 %v537, 1.442695
    %v539 = vpow.pop %v538
    %v540 = vadd.f32 %v539, 1.0
    %v541 = vrcp.pop %v540
    %v542 = vmul.f32 1.0, %v541
    %v543 = vtanh.pop %v512
    %v544 = vmul.f32 %v542, 0.0
    %546 = vrot.lane.b32.xlu0 %v543, 64
    %v547 = vpop.permute.xlu0 %546
    %v549 = vmul.f32 %v542, %v547
    %551 = vrot.lane.b32.xlu0 %v549, 32
    %v552 = vpop.permute.xlu0 %551
    %v554 = vadd.f32 %v544, %v552
    %v555 = vtanh.pop %v554
    %557 = vrot.lane.b32.xlu0 %v555, 64
    %v558 = vpop.permute.xlu0 %557
    %v560 = vmul.f32 %v542, %v558
    %vm561 = vcmp.gt.s32.totalorder %v363, 0
    %vm562 = vcmp.gt.s32.totalorder %v363, 7
    %v563 = vsel %vm561, 1, 0
    %564 = vset.pattern.permute.xlu0 0
    %565 = vperm.xlu0 %564, %v563
    %v566 = vpop.permute.xlu0 %565
    %vm567 = vcmp.eq.s32.totalorder %v566, 1
    %v568 = vsel %vm567, %v536, 0.0
    %570 = vrot.lane.b32.xlu0 %v568, 32
    %v571 = vpop.permute.xlu0 %570
    %573 = vst.msk [vmem:[#allocation4] sm:$0xff] %vm365, %v571
    %v574 = vsel %vm562, 1, 0
    %575 = vset.pattern.permute.xlu0 0
    %576 = vperm.xlu0 %575, %v574
    %v577 = vpop.permute.xlu0 %576
    %vm578 = vcmp.eq.s32.totalorder %v577, 1
    %v579 = vsel %vm578, %v560, 0.0
    %581 = vrot.lane.b32.xlu0 %v579, 32
    %v582 = vpop.permute.xlu0 %581
    %s584 = scalar_lea.vmem [#allocation5], 56
    %585 = vst.msk [vmem:[%s584] sm:$0xff] %vm365, %v582
    %v586 = vsel %vm567, %v530, 0.0
    %v587 = vsel %vm578, %v554, 0.0
    %s588 = scalar_lea.vmem [#allocation2], 8
    %v589 = vld [vmem:[%s588] sm:$0xff]
    %v590 = vsel %vm365, %v571, 0
    %592 = vmatprep.subr.mxu0 0.0
    %593 = vmatpush1.msra.mxu0 %v355
    %594 = vmatprep.subr.mxu0 0.0
    %595 = vmatpush1.msra.mxu0 %v356
    %596 = vmatprep.subr.mxu0 0.0
    %597 = vmatpush1.msra.mxu0 %v357
    %598 = vmatprep.subr.mxu0 0.0
    %599 = vmatpush1.msra.mxu0 %v358
    %600 = vmatprep.subr.mxu0 0.0
    %601 = vmatpush1.msra.mxu0 0.0
    %602 = vmatprep.subr.mxu0 0.0
    %603 = vmatpush1.msra.mxu0 0.0
    %604 = vmatprep.subr.mxu0 0.0
    %605 = vmatpush1.msra.mxu0 0.0
    %606 = vmatprep.subr.mxu0 0.0
    %607 = vmatpush1.msra.mxu0 0.0
    %608 = vmatprep.subr.mxu0 0.0
    %609 = vmatpush1.msra.mxu0 0.0
    %610 = vmatprep.subr.mxu0 0.0
    %611 = vmatpush1.msra.mxu0 0.0
    %612 = vmatprep.subr.mxu0 0.0
    %613 = vmatpush1.msra.mxu0 0.0
    %614 = vmatprep.subr.mxu0 0.0
    %615 = vmatpush1.msra.mxu0 0.0
    %616 = vmatprep.subr.mxu0 0.0
    %617 = vmatpush1.msra.mxu0 0.0
    %618 = vmatprep.subr.mxu0 0.0
    %619 = vmatpush1.msra.mxu0 0.0
    %620 = vmatprep.subr.mxu0 0.0
    %621 = vmatpush1.msra.mxu0 0.0
    %622 = vmatprep.subr.mxu0 0.0
    %623 = vmatpush1.msra.mxu0 0.0
    %624 = vmatprep.subr.mxu0 0.0
    %625 = vmatpush1.msra.mxu0 0.0
    %626 = vmatprep.subr.mxu0 0.0
    %627 = vmatpush1.msra.mxu0 0.0
    %628 = vmatprep.subr.mxu0 0.0
    %629 = vmatpush1.msra.mxu0 0.0
    %630 = vmatprep.subr.mxu0 0.0
    %631 = vmatpush1.msra.mxu0 0.0
    %632 = vmatprep.subr.mxu0 0.0
    %633 = vmatpush1.msra.mxu0 0.0
    %634 = vmatprep.subr.mxu0 0.0
    %635 = vmatpush1.msra.mxu0 0.0
    %636 = vmatprep.subr.mxu0 0.0
    %637 = vmatpush1.msra.mxu0 0.0
    %638 = vmatprep.subr.mxu0 0.0
    %639 = vmatpush1.msra.mxu0 0.0
    %640 = vmatprep.subr.mxu0 0.0
    %641 = vmatpush1.msra.mxu0 0.0
    %642 = vmatprep.subr.mxu0 0.0
    %643 = vmatpush1.msra.mxu0 0.0
    %644 = vmatprep.subr.mxu0 0.0
    %645 = vmatpush1.msra.mxu0 0.0
    %646 = vmatprep.subr.mxu0 0.0
    %647 = vmatpush1.msra.mxu0 0.0
    %648 = vmatprep.subr.mxu0 0.0
    %649 = vmatpush1.msra.mxu0 0.0
    %650 = vmatprep.subr.mxu0 0.0
    %651 = vmatpush1.msra.mxu0 0.0
    %652 = vmatprep.subr.mxu0 0.0
    %653 = vmatpush1.msra.mxu0 0.0
    %654 = vmatprep.subr.mxu0 0.0
    %655 = vmatpush1.msra.mxu0 0.0
    %656 = vmatprep.mubr.f32.mxu0 0.0
    %657 = vmatmul.mubr.f32.gmra.mrb[0].mxu0 %v590
    %v658 = vpop.f32.mrb[0].mxu0
    %v659 = vadd.f32 0.0, %v658
    %v660 = vpop.f32.mrb[0].mxu0
    %661 = vdwg.mxu0
    %v662 = vadd.f32 %v589, %v659
    %s663 = scalar_lea.vmem [#allocation3], 48
    %v664 = vld [vmem:[%s663] sm:$0xff]
    %v665 = vsel %vm365, %v582, 0
    %667 = vmatprep.subr.mxu0 0.0
    %668 = vmatpush1.msra.mxu0 %v359
    %669 = vmatprep.subr.mxu0 0.0
    %670 = vmatpush1.msra.mxu0 %v360
    %671 = vmatprep.subr.mxu0 0.0
    %672 = vmatpush1.msra.mxu0 %v361
    %673 = vmatprep.subr.mxu0 0.0
    %674 = vmatpush1.msra.mxu0 %v362
    %675 = vmatprep.subr.mxu0 0.0
    %676 = vmatpush1.msra.mxu0 0.0
    %677 = vmatprep.subr.mxu0 0.0
    %678 = vmatpush1.msra.mxu0 0.0
    %679 = vmatprep.subr.mxu0 0.0
    %680 = vmatpush1.msra.mxu0 0.0
    %681 = vmatprep.subr.mxu0 0.0
    %682 = vmatpush1.msra.mxu0 0.0
    %683 = vmatprep.subr.mxu0 0.0
    %684 = vmatpush1.msra.mxu0 0.0
    %685 = vmatprep.subr.mxu0 0.0
    %686 = vmatpush1.msra.mxu0 0.0
    %687 = vmatprep.subr.mxu0 0.0
    %688 = vmatpush1.msra.mxu0 0.0
    %689 = vmatprep.subr.mxu0 0.0
    %690 = vmatpush1.msra.mxu0 0.0
    %691 = vmatprep.subr.mxu0 0.0
    %692 = vmatpush1.msra.mxu0 0.0
    %693 = vmatprep.subr.mxu0 0.0
    %694 = vmatpush1.msra.mxu0 0.0
    %695 = vmatprep.subr.mxu0 0.0
    %696 = vmatpush1.msra.mxu0 0.0
    %697 = vmatprep.subr.mxu0 0.0
    %698 = vmatpush1.msra.mxu0 0.0
    %699 = vmatprep.subr.mxu0 0.0
    %700 = vmatpush1.msra.mxu0 0.0
    %701 = vmatprep.subr.mxu0 0.0
    %702 = vmatpush1.msra.mxu0 0.0
    %703 = vmatprep.subr.mxu0 0.0
    %704 = vmatpush1.msra.mxu0 0.0
    %705 = vmatprep.subr.mxu0 0.0
    %706 = vmatpush1.msra.mxu0 0.0
    %707 = vmatprep.subr.mxu0 0.0
    %708 = vmatpush1.msra.mxu0 0.0
    %709 = vmatprep.subr.mxu0 0.0
    %710 = vmatpush1.msra.mxu0 0.0
    %711 = vmatprep.subr.mxu0 0.0
    %712 = vmatpush1.msra.mxu0 0.0
    %713 = vmatprep.subr.mxu0 0.0
    %714 = vmatpush1.msra.mxu0 0.0
    %715 = vmatprep.subr.mxu0 0.0
    %716 = vmatpush1.msra.mxu0 0.0
    %717 = vmatprep.subr.mxu0 0.0
    %718 = vmatpush1.msra.mxu0 0.0
    %719 = vmatprep.subr.mxu0 0.0
    %720 = vmatpush1.msra.mxu0 0.0
    %721 = vmatprep.subr.mxu0 0.0
    %722 = vmatpush1.msra.mxu0 0.0
    %723 = vmatprep.subr.mxu0 0.0
    %724 = vmatpush1.msra.mxu0 0.0
    %725 = vmatprep.subr.mxu0 0.0
    %726 = vmatpush1.msra.mxu0 0.0
    %727 = vmatprep.subr.mxu0 0.0
    %728 = vmatpush1.msra.mxu0 0.0
    %729 = vmatprep.subr.mxu0 0.0
    %730 = vmatpush1.msra.mxu0 0.0
    %731 = vmatprep.mubr.f32.mxu0 0.0
    %732 = vmatmul.mubr.f32.gmra.mrb[0].mxu0 %v665
    %v733 = vpop.f32.mrb[0].mxu0
    %v734 = vadd.f32 0.0, %v733
    %v735 = vpop.f32.mrb[0].mxu0
    %736 = vdwg.mxu0
    %v737 = vadd.f32 %v664, %v734
    %v738 = vxor.u32 %v662, 2147483648
    %v739 = vmul.f32 %v738, 1.442695
    %v740 = vpow.pop %v739
    %v741 = vadd.f32 %v740, 1.0
    %v742 = vrcp.pop %v741
    %v743 = vmul.f32 1.0, %v742
    %v744 = vtanh.pop %v662
    %v745 = vmul.f32 %v743, %v586
    %747 = vrot.lane.b32.xlu0 %v744, 64
    %v748 = vpop.permute.xlu0 %747
    %v750 = vmul.f32 %v743, %v748
    %752 = vrot.lane.b32.xlu0 %v750, 32
    %v753 = vpop.permute.xlu0 %752
    %v755 = vadd.f32 %v745, %v753
    %v756 = vtanh.pop %v755
    %758 = vrot.lane.b32.xlu0 %v756, 64
    %v759 = vpop.permute.xlu0 %758
    %v761 = vmul.f32 %v743, %v759
    %v762 = vxor.u32 %v737, 2147483648
    %v763 = vmul.f32 %v762, 1.442695
    %v764 = vpow.pop %v763
    %v765 = vadd.f32 %v764, 1.0
    %v766 = vrcp.pop %v765
    %v767 = vmul.f32 1.0, %v766
    %v768 = vtanh.pop %v737
    %v769 = vmul.f32 %v767, %v587
    %771 = vrot.lane.b32.xlu0 %v768, 64
    %v772 = vpop.permute.xlu0 %771
    %v774 = vmul.f32 %v767, %v772
    %776 = vrot.lane.b32.xlu0 %v774, 32
    %v777 = vpop.permute.xlu0 %776
    %v779 = vadd.f32 %v769, %v777
    %v780 = vtanh.pop %v779
    %782 = vrot.lane.b32.xlu0 %v780, 64
    %v783 = vpop.permute.xlu0 %782
    %v785 = vmul.f32 %v767, %v783
    %vm786 = vcmp.gt.s32.totalorder %v363, 1
    %vm787 = vcmp.gt.s32.totalorder %v363, 6
    %v788 = vsel %vm786, 1, 0
    %789 = vset.pattern.permute.xlu0 0
    %790 = vperm.xlu0 %789, %v788
    %v791 = vpop.permute.xlu0 %790
    %vm792 = vcmp.eq.s32.totalorder %v791, 1
    %v793 = vsel %vm792, %v761, 0.0
    %795 = vrot.lane.b32.xlu0 %v793, 32
    %v796 = vpop.permute.xlu0 %795
    %s798 = scalar_lea.vmem [#allocation4], 8
    %799 = vst.msk [vmem:[%s798] sm:$0xff] %vm365, %v796
    %v800 = vsel %vm787, 1, 0
    %801 = vset.pattern.permute.xlu0 0
    %802 = vperm.xlu0 %801, %v800
    %v803 = vpop.permute.xlu0 %802
    %vm804 = vcmp.eq.s32.totalorder %v803, 1
    %v805 = vsel %vm804, %v785, 0.0
    %807 = vrot.lane.b32.xlu0 %v805, 32
    %v808 = vpop.permute.xlu0 %807
    %s810 = scalar_lea.vmem [#allocation5], 48
    %811 = vst.msk [vmem:[%s810] sm:$0xff] %vm365, %v808
    %v812 = vsel %vm792, %v761, %v568
    %v813 = vsel %vm792, %v755, %v586
    %v814 = vsel %vm804, %v785, %v579
    %v815 = vsel %vm804, %v779, %v587
    %s816 = scalar_lea.vmem [#allocation2], 16
    %v817 = vld [vmem:[%s816] sm:$0xff]
    %819 = vrot.lane.b32.xlu0 %v812, 32
    %v820 = vpop.permute.xlu0 %819
    %v821 = vsel %vm365, %v820, 0
    %823 = vmatprep.subr.mxu0 0.0
    %824 = vmatpush1.msra.mxu0 %v355
    %825 = vmatprep.subr.mxu0 0.0
    %826 = vmatpush1.msra.mxu0 %v356
    %827 = vmatprep.subr.mxu0 0.0
    %828 = vmatpush1.msra.mxu0 %v357
    %829 = vmatprep.subr.mxu0 0.0
    %830 = vmatpush1.msra.mxu0 %v358
    %831 = vmatprep.subr.mxu0 0.0
    %832 = vmatpush1.msra.mxu0 0.0
    %833 = vmatprep.subr.mxu0 0.0
    %834 = vmatpush1.msra.mxu0 0.0
    %835 = vmatprep.subr.mxu0 0.0
    %836 = vmatpush1.msra.mxu0 0.0
    %837 = vmatprep.subr.mxu0 0.0
    %838 = vmatpush1.msra.mxu0 0.0
    %839 = vmatprep.subr.mxu0 0.0
    %840 = vmatpush1.msra.mxu0 0.0
    %841 = vmatprep.subr.mxu0 0.0
    %842 = vmatpush1.msra.mxu0 0.0
    %843 = vmatprep.subr.mxu0 0.0
    %844 = vmatpush1.msra.mxu0 0.0
    %845 = vmatprep.subr.mxu0 0.0
    %846 = vmatpush1.msra.mxu0 0.0
    %847 = vmatprep.subr.mxu0 0.0
    %848 = vmatpush1.msra.mxu0 0.0
    %849 = vmatprep.subr.mxu0 0.0
    %850 = vmatpush1.msra.mxu0 0.0
    %851 = vmatprep.subr.mxu0 0.0
    %852 = vmatpush1.msra.mxu0 0.0
    %853 = vmatprep.subr.mxu0 0.0
    %854 = vmatpush1.msra.mxu0 0.0
    %855 = vmatprep.subr.mxu0 0.0
    %856 = vmatpush1.msra.mxu0 0.0
    %857 = vmatprep.subr.mxu0 0.0
    %858 = vmatpush1.msra.mxu0 0.0
    %859 = vmatprep.subr.mxu0 0.0
    %860 = vmatpush1.msra.mxu0 0.0
    %861 = vmatprep.subr.mxu0 0.0
    %862 = vmatpush1.msra.mxu0 0.0
    %863 = vmatprep.subr.mxu0 0.0
    %864 = vmatpush1.msra.mxu0 0.0
    %865 = vmatprep.subr.mxu0 0.0
    %866 = vmatpush1.msra.mxu0 0.0
    %867 = vmatprep.subr.mxu0 0.0
    %868 = vmatpush1.msra.mxu0 0.0
    %869 = vmatprep.subr.mxu0 0.0
    %870 = vmatpush1.msra.mxu0 0.0
    %871 = vmatprep.subr.mxu0 0.0
    %872 = vmatpush1.msra.mxu0 0.0
    %873 = vmatprep.subr.mxu0 0.0
    %874 = vmatpush1.msra.mxu0 0.0
    %875 = vmatprep.subr.mxu0 0.0
    %876 = vmatpush1.msra.mxu0 0.0
    %877 = vmatprep.subr.mxu0 0.0
    %878 = vmatpush1.msra.mxu0 0.0
    %879 = vmatprep.subr.mxu0 0.0
    %880 = vmatpush1.msra.mxu0 0.0
    %881 = vmatprep.subr.mxu0 0.0
    %882 = vmatpush1.msra.mxu0 0.0
    %883 = vmatprep.subr.mxu0 0.0
    %884 = vmatpush1.msra.mxu0 0.0
    %885 = vmatprep.subr.mxu0 0.0
    %886 = vmatpush1.msra.mxu0 0.0
    %887 = vmatprep.mubr.f32.mxu0 0.0
    %888 = vmatmul.mubr.f32.gmra.mrb[0].mxu0 %v821
    %v889 = vpop.f32.mrb[0].mxu0
    %v890 = vadd.f32 0.0, %v889
    %v891 = vpop.f32.mrb[0].mxu0
    %892 = vdwg.mxu0
    %v893 = vadd.f32 %v817, %v890
    %s894 = scalar_lea.vmem [#allocation3], 40
    %v895 = vld [vmem:[%s894] sm:$0xff]
    %897 = vrot.lane.b32.xlu0 %v814, 32
    %v898 = vpop.permute.xlu0 %897
    %v899 = vsel %vm365, %v898, 0
    %901 = vmatprep.subr.mxu0 0.0
    %902 = vmatpush1.msra.mxu0 %v359
    %903 = vmatprep.subr.mxu0 0.0
    %904 = vmatpush1.msra.mxu0 %v360
    %905 = vmatprep.subr.mxu0 0.0
    %906 = vmatpush1.msra.mxu0 %v361
    %907 = vmatprep.subr.mxu0 0.0
    %908 = vmatpush1.msra.mxu0 %v362
    %909 = vmatprep.subr.mxu0 0.0
    %910 = vmatpush1.msra.mxu0 0.0
    %911 = vmatprep.subr.mxu0 0.0
    %912 = vmatpush1.msra.mxu0 0.0
    %913 = vmatprep.subr.mxu0 0.0
    %914 = vmatpush1.msra.mxu0 0.0
    %915 = vmatprep.subr.mxu0 0.0
    %916 = vmatpush1.msra.mxu0 0.0
    %917 = vmatprep.subr.mxu0 0.0
    %918 = vmatpush1.msra.mxu0 0.0
    %919 = vmatprep.subr.mxu0 0.0
    %920 = vmatpush1.msra.mxu0 0.0
    %921 = vmatprep.subr.mxu0 0.0
    %922 = vmatpush1.msra.mxu0 0.0
    %923 = vmatprep.subr.mxu0 0.0
    %924 = vmatpush1.msra.mxu0 0.0
    %925 = vmatprep.subr.mxu0 0.0
    %926 = vmatpush1.msra.mxu0 0.0
    %927 = vmatprep.subr.mxu0 0.0
    %928 = vmatpush1.msra.mxu0 0.0
    %929 = vmatprep.subr.mxu0 0.0
    %930 = vmatpush1.msra.mxu0 0.0
    %931 = vmatprep.subr.mxu0 0.0
    %932 = vmatpush1.msra.mxu0 0.0
    %933 = vmatprep.subr.mxu0 0.0
    %934 = vmatpush1.msra.mxu0 0.0
    %935 = vmatprep.subr.mxu0 0.0
    %936 = vmatpush1.msra.mxu0 0.0
    %937 = vmatprep.subr.mxu0 0.0
    %938 = vmatpush1.msra.mxu0 0.0
    %939 = vmatprep.subr.mxu0 0.0
    %940 = vmatpush1.msra.mxu0 0.0
    %941 = vmatprep.subr.mxu0 0.0
    %942 = vmatpush1.msra.mxu0 0.0
    %943 = vmatprep.subr.mxu0 0.0
    %944 = vmatpush1.msra.mxu0 0.0
    %945 = vmatprep.subr.mxu0 0.0
    %946 = vmatpush1.msra.mxu0 0.0
    %947 = vmatprep.subr.mxu0 0.0
    %948 = vmatpush1.msra.mxu0 0.0
    %949 = vmatprep.subr.mxu0 0.0
    %950 = vmatpush1.msra.mxu0 0.0
    %951 = vmatprep.subr.mxu0 0.0
    %952 = vmatpush1.msra.mxu0 0.0
    %953 = vmatprep.subr.mxu0 0.0
    %954 = vmatpush1.msra.mxu0 0.0
    %955 = vmatprep.subr.mxu0 0.0
    %956 = vmatpush1.msra.mxu0 0.0
    %957 = vmatprep.subr.mxu0 0.0
    %958 = vmatpush1.msra.mxu0 0.0
    %959 = vmatprep.subr.mxu0 0.0
    %960 = vmatpush1.msra.mxu0 0.0
    %961 = vmatprep.subr.mxu0 0.0
    %962 = vmatpush1.msra.mxu0 0.0
    %963 = vmatprep.subr.mxu0 0.0
    %964 = vmatpush1.msra.mxu0 0.0
    %965 = vmatprep.mubr.f32.mxu0 0.0
    %966 = vmatmul.mubr.f32.gmra.mrb[0].mxu0 %v899
    %v967 = vpop.f32.mrb[0].mxu0
    %v968 = vadd.f32 0.0, %v967
    %v969 = vpop.f32.mrb[0].mxu0
    %970 = vdwg.mxu0
    %v971 = vadd.f32 %v895, %v968
    %v972 = vxor.u32 %v893, 2147483648
    %v973 = vmul.f32 %v972, 1.442695
    %v974 = vpow.pop %v973
    %v975 = vadd.f32 %v974, 1.0
    %v976 = vrcp.pop %v975
    %v977 = vmul.f32 1.0, %v976
    %v978 = vtanh.pop %v893
    %v979 = vmul.f32 %v977, %v813
    %981 = vrot.lane.b32.xlu0 %v978, 64
    %v982 = vpop.permute.xlu0 %981
    %v984 = vmul.f32 %v977, %v982
    %986 = vrot.lane.b32.xlu0 %v984, 32
    %v987 = vpop.permute.xlu0 %986
    %v989 = vadd.f32 %v979, %v987
    %v990 = vtanh.pop %v989
    %992 = vrot.lane.b32.xlu0 %v990, 64
    %v993 = vpop.permute.xlu0 %992
    %v995 = vmul.f32 %v977, %v993
    %v996 = vxor.u32 %v971, 2147483648
    %v997 = vmul.f32 %v996, 1.442695
    %v998 = vpow.pop %v997
    %v999 = vadd.f32 %v998, 1.0
    %v1000 = vrcp.pop %v999
    %v1001 = vmul.f32 1.0, %v1000
    %v1002 = vtanh.pop %v971
    %v1003 = vmul.f32 %v1001, %v815
    %1005 = vrot.lane.b32.xlu0 %v1002, 64
    %v1006 = vpop.permute.xlu0 %1005
    %v1008 = vmul.f32 %v1001, %v1006
    %1010 = vrot.lane.b32.xlu0 %v1008, 32
    %v1011 = vpop.permute.xlu0 %1010
    %v1013 = vadd.f32 %v1003, %v1011
    %v1014 = vtanh.pop %v1013
    %1016 = vrot.lane.b32.xlu0 %v1014, 64
    %v1017 = vpop.permute.xlu0 %1016
    %v1019 = vmul.f32 %v1001, %v1017
    %vm1020 = vcmp.gt.s32.totalorder %v363, 2
    %vm1021 = vcmp.gt.s32.totalorder %v363, 5
    %v1022 = vsel %vm1020, 1, 0
    %1023 = vset.pattern.permute.xlu0 0
    %1024 = vperm.xlu0 %1023, %v1022
    %v1025 = vpop.permute.xlu0 %1024
    %vm1026 = vcmp.eq.s32.totalorder %v1025, 1
    %v1027 = vsel %vm1026, %v995, 0.0
    %1029 = vrot.lane.b32.xlu0 %v1027, 32
    %v1030 = vpop.permute.xlu0 %1029
    %s1032 = scalar_lea.vmem [#allocation4], 16
    %1033 = vst.msk [vmem:[%s1032] sm:$0xff] %vm365, %v1030
    %v1034 = vsel %vm1021, 1, 0
    %1035 = vset.pattern.permute.xlu0 0
    %1036 = vperm.xlu0 %1035, %v1034
    %v1037 = vpop.permute.xlu0 %1036
    %vm1038 = vcmp.eq.s32.totalorder %v1037, 1
    %v1039 = vsel %vm1038, %v1019, 0.0
    %1041 = vrot.lane.b32.xlu0 %v1039, 32
    %v1042 = vpop.permute.xlu0 %1041
    %s1044 = scalar_lea.vmem [#allocation5], 40
    %1045 = vst.msk [vmem:[%s1044] sm:$0xff] %vm365, %v1042
    %v1046 = vsel %vm1026, %v995, %v812
    %v1047 = vsel %vm1026, %v989, %v813
    %v1048 = vsel %vm1038, %v1019, %v814
    %v1049 = vsel %vm1038, %v1013, %v815
    %s1050 = scalar_lea.vmem [#allocation2], 24
    %v1051 = vld [vmem:[%s1050] sm:$0xff]
    %1053 = vrot.lane.b32.xlu0 %v1046, 32
    %v1054 = vpop.permute.xlu0 %1053
    %v1055 = vsel %vm365, %v1054, 0
    %1057 = vmatprep.subr.mxu0 0.0
    %1058 = vmatpush1.msra.mxu0 %v355
    %1059 = vmatprep.subr.mxu0 0.0
    %1060 = vmatpush1.msra.mxu0 %v356
    %1061 = vmatprep.subr.mxu0 0.0
    %1062 = vmatpush1.msra.mxu0 %v357
    %1063 = vmatprep.subr.mxu0 0.0
    %1064 = vmatpush1.msra.mxu0 %v358
    %1065 = vmatprep.subr.mxu0 0.0
    %1066 = vmatpush1.msra.mxu0 0.0
    %1067 = vmatprep.subr.mxu0 0.0
    %1068 = vmatpush1.msra.mxu0 0.0
    %1069 = vmatprep.subr.mxu0 0.0
    %1070 = vmatpush1.msra.mxu0 0.0
    %1071 = vmatprep.subr.mxu0 0.0
    %1072 = vmatpush1.msra.mxu0 0.0
    %1073 = vmatprep.subr.mxu0 0.0
    %1074 = vmatpush1.msra.mxu0 0.0
    %1075 = vmatprep.subr.mxu0 0.0
    %1076 = vmatpush1.msra.mxu0 0.0
    %1077 = vmatprep.subr.mxu0 0.0
    %1078 = vmatpush1.msra.mxu0 0.0
    %1079 = vmatprep.subr.mxu0 0.0
    %1080 = vmatpush1.msra.mxu0 0.0
    %1081 = vmatprep.subr.mxu0 0.0
    %1082 = vmatpush1.msra.mxu0 0.0
    %1083 = vmatprep.subr.mxu0 0.0
    %1084 = vmatpush1.msra.mxu0 0.0
    %1085 = vmatprep.subr.mxu0 0.0
    %1086 = vmatpush1.msra.mxu0 0.0
    %1087 = vmatprep.subr.mxu0 0.0
    %1088 = vmatpush1.msra.mxu0 0.0
    %1089 = vmatprep.subr.mxu0 0.0
    %1090 = vmatpush1.msra.mxu0 0.0
    %1091 = vmatprep.subr.mxu0 0.0
    %1092 = vmatpush1.msra.mxu0 0.0
    %1093 = vmatprep.subr.mxu0 0.0
    %1094 = vmatpush1.msra.mxu0 0.0
    %1095 = vmatprep.subr.mxu0 0.0
    %1096 = vmatpush1.msra.mxu0 0.0
    %1097 = vmatprep.subr.mxu0 0.0
    %1098 = vmatpush1.msra.mxu0 0.0
    %1099 = vmatprep.subr.mxu0 0.0
    %1100 = vmatpush1.msra.mxu0 0.0
    %1101 = vmatprep.subr.mxu0 0.0
    %1102 = vmatpush1.msra.mxu0 0.0
    %1103 = vmatprep.subr.mxu0 0.0
    %1104 = vmatpush1.msra.mxu0 0.0
    %1105 = vmatprep.subr.mxu0 0.0
    %1106 = vmatpush1.msra.mxu0 0.0
    %1107 = vmatprep.subr.mxu0 0.0
    %1108 = vmatpush1.msra.mxu0 0.0
    %1109 = vmatprep.subr.mxu0 0.0
    %1110 = vmatpush1.msra.mxu0 0.0
    %1111 = vmatprep.subr.mxu0 0.0
    %1112 = vmatpush1.msra.mxu0 0.0
    %1113 = vmatprep.subr.mxu0 0.0
    %1114 = vmatpush1.msra.mxu0 0.0
    %1115 = vmatprep.subr.mxu0 0.0
    %1116 = vmatpush1.msra.mxu0 0.0
    %1117 = vmatprep.subr.mxu0 0.0
    %1118 = vmatpush1.msra.mxu0 0.0
    %1119 = vmatprep.subr.mxu0 0.0
    %1120 = vmatpush1.msra.mxu0 0.0
    %1121 = vmatprep.mubr.f32.mxu0 0.0
    %1122 = vmatmul.mubr.f32.gmra.mrb[0].mxu0 %v1055
    %v1123 = vpop.f32.mrb[0].mxu0
    %v1124 = vadd.f32 0.0, %v1123
    %v1125 = vpop.f32.mrb[0].mxu0
    %1126 = vdwg.mxu0
    %v1127 = vadd.f32 %v1051, %v1124
    %s1128 = scalar_lea.vmem [#allocation3], 32
    %v1129 = vld [vmem:[%s1128] sm:$0xff]
    %1131 = vrot.lane.b32.xlu0 %v1048, 32
    %v1132 = vpop.permute.xlu0 %1131
    %v1133 = vsel %vm365, %v1132, 0
    %1135 = vmatprep.subr.mxu0 0.0
    %1136 = vmatpush1.msra.mxu0 %v359
    %1137 = vmatprep.subr.mxu0 0.0
    %1138 = vmatpush1.msra.mxu0 %v360
    %1139 = vmatprep.subr.mxu0 0.0
    %1140 = vmatpush1.msra.mxu0 %v361
    %1141 = vmatprep.subr.mxu0 0.0
    %1142 = vmatpush1.msra.mxu0 %v362
    %1143 = vmatprep.subr.mxu0 0.0
    %1144 = vmatpush1.msra.mxu0 0.0
    %1145 = vmatprep.subr.mxu0 0.0
    %1146 = vmatpush1.msra.mxu0 0.0
    %1147 = vmatprep.subr.mxu0 0.0
    %1148 = vmatpush1.msra.mxu0 0.0
    %1149 = vmatprep.subr.mxu0 0.0
    %1150 = vmatpush1.msra.mxu0 0.0
    %1151 = vmatprep.subr.mxu0 0.0
    %1152 = vmatpush1.msra.mxu0 0.0
    %1153 = vmatprep.subr.mxu0 0.0
    %1154 = vmatpush1.msra.mxu0 0.0
    %1155 = vmatprep.subr.mxu0 0.0
    %1156 = vmatpush1.msra.mxu0 0.0
    %1157 = vmatprep.subr.mxu0 0.0
    %1158 = vmatpush1.msra.mxu0 0.0
    %1159 = vmatprep.subr.mxu0 0.0
    %1160 = vmatpush1.msra.mxu0 0.0
    %1161 = vmatprep.subr.mxu0 0.0
    %1162 = vmatpush1.msra.mxu0 0.0
    %1163 = vmatprep.subr.mxu0 0.0
    %1164 = vmatpush1.msra.mxu0 0.0
    %1165 = vmatprep.subr.mxu0 0.0
    %1166 = vmatpush1.msra.mxu0 0.0
    %1167 = vmatprep.subr.mxu0 0.0
    %1168 = vmatpush1.msra.mxu0 0.0
    %1169 = vmatprep.subr.mxu0 0.0
    %1170 = vmatpush1.msra.mxu0 0.0
    %1171 = vmatprep.subr.mxu0 0.0
    %1172 = vmatpush1.msra.mxu0 0.0
    %1173 = vmatprep.subr.mxu0 0.0
    %1174 = vmatpush1.msra.mxu0 0.0
    %1175 = vmatprep.subr.mxu0 0.0
    %1176 = vmatpush1.msra.mxu0 0.0
    %1177 = vmatprep.subr.mxu0 0.0
    %1178 = vmatpush1.msra.mxu0 0.0
    %1179 = vmatprep.subr.mxu0 0.0
    %1180 = vmatpush1.msra.mxu0 0.0
    %1181 = vmatprep.subr.mxu0 0.0
    %1182 = vmatpush1.msra.mxu0 0.0
    %1183 = vmatprep.subr.mxu0 0.0
    %1184 = vmatpush1.msra.mxu0 0.0
    %1185 = vmatprep.subr.mxu0 0.0
    %1186 = vmatpush1.msra.mxu0 0.0
    %1187 = vmatprep.subr.mxu0 0.0
    %1188 = vmatpush1.msra.mxu0 0.0
    %1189 = vmatprep.subr.mxu0 0.0
    %1190 = vmatpush1.msra.mxu0 0.0
    %1191 = vmatprep.subr.mxu0 0.0
    %1192 = vmatpush1.msra.mxu0 0.0
    %1193 = vmatprep.subr.mxu0 0.0
    %1194 = vmatpush1.msra.mxu0 0.0
    %1195 = vmatprep.subr.mxu0 0.0
    %1196 = vmatpush1.msra.mxu0 0.0
    %1197 = vmatprep.subr.mxu0 0.0
    %1198 = vmatpush1.msra.mxu0 0.0
    %1199 = vmatprep.mubr.f32.mxu0 0.0
    %1200 = vmatmul.mubr.f32.gmra.mrb[0].mxu0 %v1133
    %v1201 = vpop.f32.mrb[0].mxu0
    %v1202 = vadd.f32 0.0, %v1201
    %v1203 = vpop.f32.mrb[0].mxu0
    %1204 = vdwg.mxu0
    %v1205 = vadd.f32 %v1129, %v1202
    %v1206 = vxor.u32 %v1127, 2147483648
    %v1207 = vmul.f32 %v1206, 1.442695
    %v1208 = vpow.pop %v1207
    %v1209 = vadd.f32 %v1208, 1.0
    %v1210 = vrcp.pop %v1209
    %v1211 = vmul.f32 1.0, %v1210
    %v1212 = vtanh.pop %v1127
    %v1213 = vmul.f32 %v1211, %v1047
    %1215 = vrot.lane.b32.xlu0 %v1212, 64
    %v1216 = vpop.permute.xlu0 %1215
    %v1218 = vmul.f32 %v1211, %v1216
    %1220 = vrot.lane.b32.xlu0 %v1218, 32
    %v1221 = vpop.permute.xlu0 %1220
    %v1223 = vadd.f32 %v1213, %v1221
    %v1224 = vtanh.pop %v1223
    %1226 = vrot.lane.b32.xlu0 %v1224, 64
    %v1227 = vpop.permute.xlu0 %1226
    %v1229 = vmul.f32 %v1211, %v1227
    %v1230 = vxor.u32 %v1205, 2147483648
    %v1231 = vmul.f32 %v1230, 1.442695
    %v1232 = vpow.pop %v1231
    %v1233 = vadd.f32 %v1232, 1.0
    %v1234 = vrcp.pop %v1233
    %v1235 = vmul.f32 1.0, %v1234
    %v1236 = vtanh.pop %v1205
    %v1237 = vmul.f32 %v1235, %v1049
    %1239 = vrot.lane.b32.xlu0 %v1236, 64
    %v1240 = vpop.permute.xlu0 %1239
    %v1242 = vmul.f32 %v1235, %v1240
    %1244 = vrot.lane.b32.xlu0 %v1242, 32
    %v1245 = vpop.permute.xlu0 %1244
    %v1247 = vadd.f32 %v1237, %v1245
    %v1248 = vtanh.pop %v1247
    %1250 = vrot.lane.b32.xlu0 %v1248, 64
    %v1251 = vpop.permute.xlu0 %1250
    %v1253 = vmul.f32 %v1235, %v1251
    %vm1254 = vcmp.gt.s32.totalorder %v363, 3
    %vm1255 = vcmp.gt.s32.totalorder %v363, 4
    %v1256 = vsel %vm1254, 1, 0
    %1257 = vset.pattern.permute.xlu0 0
    %1258 = vperm.xlu0 %1257, %v1256
    %v1259 = vpop.permute.xlu0 %1258
    %vm1260 = vcmp.eq.s32.totalorder %v1259, 1
    %v1261 = vsel %vm1260, %v1229, 0.0
    %1263 = vrot.lane.b32.xlu0 %v1261, 32
    %v1264 = vpop.permute.xlu0 %1263
    %s1266 = scalar_lea.vmem [#allocation4], 24
    %1267 = vst.msk [vmem:[%s1266] sm:$0xff] %vm365, %v1264
    %v1268 = vsel %vm1255, 1, 0
    %1269 = vset.pattern.permute.xlu0 0
    %1270 = vperm.xlu0 %1269, %v1268
    %v1271 = vpop.permute.xlu0 %1270
    %vm1272 = vcmp.eq.s32.totalorder %v1271, 1
    %v1273 = vsel %vm1272, %v1253, 0.0
    %1275 = vrot.lane.b32.xlu0 %v1273, 32
    %v1276 = vpop.permute.xlu0 %1275
    %s1278 = scalar_lea.vmem [#allocation5], 32
    %1279 = vst.msk [vmem:[%s1278] sm:$0xff] %vm365, %v1276
    %v1280 = vsel %vm1260, %v1229, %v1046
    %v1281 = vsel %vm1260, %v1223, %v1047
    %v1282 = vsel %vm1272, %v1253, %v1048
    %v1283 = vsel %vm1272, %v1247, %v1049
    %s1284 = scalar_lea.vmem [#allocation2], 32
    %v1285 = vld [vmem:[%s1284] sm:$0xff]
    %1287 = vrot.lane.b32.xlu0 %v1280, 32
    %v1288 = vpop.permute.xlu0 %1287
    %v1289 = vsel %vm365, %v1288, 0
    %1291 = vmatprep.subr.mxu0 0.0
    %1292 = vmatpush1.msra.mxu0 %v355
    %1293 = vmatprep.subr.mxu0 0.0
    %1294 = vmatpush1.msra.mxu0 %v356
    %1295 = vmatprep.subr.mxu0 0.0
    %1296 = vmatpush1.msra.mxu0 %v357
    %1297 = vmatprep.subr.mxu0 0.0
    %1298 = vmatpush1.msra.mxu0 %v358
    %1299 = vmatprep.subr.mxu0 0.0
    %1300 = vmatpush1.msra.mxu0 0.0
    %1301 = vmatprep.subr.mxu0 0.0
    %1302 = vmatpush1.msra.mxu0 0.0
    %1303 = vmatprep.subr.mxu0 0.0
    %1304 = vmatpush1.msra.mxu0 0.0
    %1305 = vmatprep.subr.mxu0 0.0
    %1306 = vmatpush1.msra.mxu0 0.0
    %1307 = vmatprep.subr.mxu0 0.0
    %1308 = vmatpush1.msra.mxu0 0.0
    %1309 = vmatprep.subr.mxu0 0.0
    %1310 = vmatpush1.msra.mxu0 0.0
    %1311 = vmatprep.subr.mxu0 0.0
    %1312 = vmatpush1.msra.mxu0 0.0
    %1313 = vmatprep.subr.mxu0 0.0
    %1314 = vmatpush1.msra.mxu0 0.0
    %1315 = vmatprep.subr.mxu0 0.0
    %1316 = vmatpush1.msra.mxu0 0.0
    %1317 = vmatprep.subr.mxu0 0.0
    %1318 = vmatpush1.msra.mxu0 0.0
    %1319 = vmatprep.subr.mxu0 0.0
    %1320 = vmatpush1.msra.mxu0 0.0
    %1321 = vmatprep.subr.mxu0 0.0
    %1322 = vmatpush1.msra.mxu0 0.0
    %1323 = vmatprep.subr.mxu0 0.0
    %1324 = vmatpush1.msra.mxu0 0.0
    %1325 = vmatprep.subr.mxu0 0.0
    %1326 = vmatpush1.msra.mxu0 0.0
    %1327 = vmatprep.subr.mxu0 0.0
    %1328 = vmatpush1.msra.mxu0 0.0
    %1329 = vmatprep.subr.mxu0 0.0
    %1330 = vmatpush1.msra.mxu0 0.0
    %1331 = vmatprep.subr.mxu0 0.0
    %1332 = vmatpush1.msra.mxu0 0.0
    %1333 = vmatprep.subr.mxu0 0.0
    %1334 = vmatpush1.msra.mxu0 0.0
    %1335 = vmatprep.subr.mxu0 0.0
    %1336 = vmatpush1.msra.mxu0 0.0
    %1337 = vmatprep.subr.mxu0 0.0
    %1338 = vmatpush1.msra.mxu0 0.0
    %1339 = vmatprep.subr.mxu0 0.0
    %1340 = vmatpush1.msra.mxu0 0.0
    %1341 = vmatprep.subr.mxu0 0.0
    %1342 = vmatpush1.msra.mxu0 0.0
    %1343 = vmatprep.subr.mxu0 0.0
    %1344 = vmatpush1.msra.mxu0 0.0
    %1345 = vmatprep.subr.mxu0 0.0
    %1346 = vmatpush1.msra.mxu0 0.0
    %1347 = vmatprep.subr.mxu0 0.0
    %1348 = vmatpush1.msra.mxu0 0.0
    %1349 = vmatprep.subr.mxu0 0.0
    %1350 = vmatpush1.msra.mxu0 0.0
    %1351 = vmatprep.subr.mxu0 0.0
    %1352 = vmatpush1.msra.mxu0 0.0
    %1353 = vmatprep.subr.mxu0 0.0
    %1354 = vmatpush1.msra.mxu0 0.0
    %1355 = vmatprep.mubr.f32.mxu0 0.0
    %1356 = vmatmul.mubr.f32.gmra.mrb[0].mxu0 %v1289
    %v1357 = vpop.f32.mrb[0].mxu0
    %v1358 = vadd.f32 0.0, %v1357
    %v1359 = vpop.f32.mrb[0].mxu0
    %1360 = vdwg.mxu0
    %v1361 = vadd.f32 %v1285, %v1358
    %s1362 = scalar_lea.vmem [#allocation3], 24
    %v1363 = vld [vmem:[%s1362] sm:$0xff]
    %1365 = vrot.lane.b32.xlu0 %v1282, 32
    %v1366 = vpop.permute.xlu0 %1365
    %v1367 = vsel %vm365, %v1366, 0
    %1369 = vmatprep.subr.mxu0 0.0
    %1370 = vmatpush1.msra.mxu0 %v359
    %1371 = vmatprep.subr.mxu0 0.0
    %1372 = vmatpush1.msra.mxu0 %v360
    %1373 = vmatprep.subr.mxu0 0.0
    %1374 = vmatpush1.msra.mxu0 %v361
    %1375 = vmatprep.subr.mxu0 0.0
    %1376 = vmatpush1.msra.mxu0 %v362
    %1377 = vmatprep.subr.mxu0 0.0
    %1378 = vmatpush1.msra.mxu0 0.0
    %1379 = vmatprep.subr.mxu0 0.0
    %1380 = vmatpush1.msra.mxu0 0.0
    %1381 = vmatprep.subr.mxu0 0.0
    %1382 = vmatpush1.msra.mxu0 0.0
    %1383 = vmatprep.subr.mxu0 0.0
    %1384 = vmatpush1.msra.mxu0 0.0
    %1385 = vmatprep.subr.mxu0 0.0
    %1386 = vmatpush1.msra.mxu0 0.0
    %1387 = vmatprep.subr.mxu0 0.0
    %1388 = vmatpush1.msra.mxu0 0.0
    %1389 = vmatprep.subr.mxu0 0.0
    %1390 = vmatpush1.msra.mxu0 0.0
    %1391 = vmatprep.subr.mxu0 0.0
    %1392 = vmatpush1.msra.mxu0 0.0
    %1393 = vmatprep.subr.mxu0 0.0
    %1394 = vmatpush1.msra.mxu0 0.0
    %1395 = vmatprep.subr.mxu0 0.0
    %1396 = vmatpush1.msra.mxu0 0.0
    %1397 = vmatprep.subr.mxu0 0.0
    %1398 = vmatpush1.msra.mxu0 0.0
    %1399 = vmatprep.subr.mxu0 0.0
    %1400 = vmatpush1.msra.mxu0 0.0
    %1401 = vmatprep.subr.mxu0 0.0
    %1402 = vmatpush1.msra.mxu0 0.0
    %1403 = vmatprep.subr.mxu0 0.0
    %1404 = vmatpush1.msra.mxu0 0.0
    %1405 = vmatprep.subr.mxu0 0.0
    %1406 = vmatpush1.msra.mxu0 0.0
    %1407 = vmatprep.subr.mxu0 0.0
    %1408 = vmatpush1.msra.mxu0 0.0
    %1409 = vmatprep.subr.mxu0 0.0
    %1410 = vmatpush1.msra.mxu0 0.0
    %1411 = vmatprep.subr.mxu0 0.0
    %1412 = vmatpush1.msra.mxu0 0.0
    %1413 = vmatprep.subr.mxu0 0.0
    %1414 = vmatpush1.msra.mxu0 0.0
    %1415 = vmatprep.subr.mxu0 0.0
    %1416 = vmatpush1.msra.mxu0 0.0
    %1417 = vmatprep.subr.mxu0 0.0
    %1418 = vmatpush1.msra.mxu0 0.0
    %1419 = vmatprep.subr.mxu0 0.0
    %1420 = vmatpush1.msra.mxu0 0.0
    %1421 = vmatprep.subr.mxu0 0.0
    %1422 = vmatpush1.msra.mxu0 0.0
    %1423 = vmatprep.subr.mxu0 0.0
    %1424 = vmatpush1.msra.mxu0 0.0
    %1425 = vmatprep.subr.mxu0 0.0
    %1426 = vmatpush1.msra.mxu0 0.0
    %1427 = vmatprep.subr.mxu0 0.0
    %1428 = vmatpush1.msra.mxu0 0.0
    %1429 = vmatprep.subr.mxu0 0.0
    %1430 = vmatpush1.msra.mxu0 0.0
    %1431 = vmatprep.subr.mxu0 0.0
    %1432 = vmatpush1.msra.mxu0 0.0
    %1433 = vmatprep.mubr.f32.mxu0 0.0
    %1434 = vmatmul.mubr.f32.gmra.mrb[0].mxu0 %v1367
    %v1435 = vpop.f32.mrb[0].mxu0
    %v1436 = vadd.f32 0.0, %v1435
    %v1437 = vpop.f32.mrb[0].mxu0
    %1438 = vdwg.mxu0
    %v1439 = vadd.f32 %v1363, %v1436
    %v1440 = vxor.u32 %v1361, 2147483648
    %v1441 = vmul.f32 %v1440, 1.442695
    %v1442 = vpow.pop %v1441
    %v1443 = vadd.f32 %v1442, 1.0
    %v1444 = vrcp.pop %v1443
    %v1445 = vmul.f32 1.0, %v1444
    %v1446 = vtanh.pop %v1361
    %v1447 = vmul.f32 %v1445, %v1281
    %1449 = vrot.lane.b32.xlu0 %v1446, 64
    %v1450 = vpop.permute.xlu0 %1449
    %v1452 = vmul.f32 %v1445, %v1450
    %1454 = vrot.lane.b32.xlu0 %v1452, 32
    %v1455 = vpop.permute.xlu0 %1454
    %v1457 = vadd.f32 %v1447, %v1455
    %v1458 = vtanh.pop %v1457
    %1460 = vrot.lane.b32.xlu0 %v1458, 64
    %v1461 = vpop.permute.xlu0 %1460
    %v1463 = vmul.f32 %v1445, %v1461
    %v1464 = vxor.u32 %v1439, 2147483648
    %v1465 = vmul.f32 %v1464, 1.442695
    %v1466 = vpow.pop %v1465
    %v1467 = vadd.f32 %v1466, 1.0
    %v1468 = vrcp.pop %v1467
    %v1469 = vmul.f32 1.0, %v1468
    %v1470 = vtanh.pop %v1439
    %v1471 = vmul.f32 %v1469, %v1283
    %1473 = vrot.lane.b32.xlu0 %v1470, 64
    %v1474 = vpop.permute.xlu0 %1473
    %v1476 = vmul.f32 %v1469, %v1474
    %1478 = vrot.lane.b32.xlu0 %v1476, 32
    %v1479 = vpop.permute.xlu0 %1478
    %v1481 = vadd.f32 %v1471, %v1479
    %v1482 = vtanh.pop %v1481
    %1484 = vrot.lane.b32.xlu0 %v1482, 64
    %v1485 = vpop.permute.xlu0 %1484
    %v1487 = vmul.f32 %v1469, %v1485
    %v1488 = vsel %vm1272, %v1463, 0.0
    %1490 = vrot.lane.b32.xlu0 %v1488, 32
    %v1491 = vpop.permute.xlu0 %1490
    %s1493 = scalar_lea.vmem [#allocation4], 32
    %1494 = vst.msk [vmem:[%s1493] sm:$0xff] %vm365, %v1491
    %v1495 = vsel %vm1260, %v1487, 0.0
    %1497 = vrot.lane.b32.xlu0 %v1495, 32
    %v1498 = vpop.permute.xlu0 %1497
    %s1500 = scalar_lea.vmem [#allocation5], 24
    %1501 = vst.msk [vmem:[%s1500] sm:$0xff] %vm365, %v1498
    %v1502 = vsel %vm1272, %v1463, %v1280
    %v1503 = vsel %vm1272, %v1457, %v1281
    %v1504 = vsel %vm1260, %v1487, %v1282
    %v1505 = vsel %vm1260, %v1481, %v1283
    %s1506 = scalar_lea.vmem [#allocation2], 40
    %v1507 = vld [vmem:[%s1506] sm:$0xff]
    %1509 = vrot.lane.b32.xlu0 %v1502, 32
    %v1510 = vpop.permute.xlu0 %1509
    %v1511 = vsel %vm365, %v1510, 0
    %1513 = vmatprep.subr.mxu0 0.0
    %1514 = vmatpush1.msra.mxu0 %v355
    %1515 = vmatprep.subr.mxu0 0.0
    %1516 = vmatpush1.msra.mxu0 %v356
    %1517 = vmatprep.subr.mxu0 0.0
    %1518 = vmatpush1.msra.mxu0 %v357
    %1519 = vmatprep.subr.mxu0 0.0
    %1520 = vmatpush1.msra.mxu0 %v358
    %1521 = vmatprep.subr.mxu0 0.0
    %1522 = vmatpush1.msra.mxu0 0.0
    %1523 = vmatprep.subr.mxu0 0.0
    %1524 = vmatpush1.msra.mxu0 0.0
    %1525 = vmatprep.subr.mxu0 0.0
    %1526 = vmatpush1.msra.mxu0 0.0
    %1527 = vmatprep.subr.mxu0 0.0
    %1528 = vmatpush1.msra.mxu0 0.0
    %1529 = vmatprep.subr.mxu0 0.0
    %1530 = vmatpush1.msra.mxu0 0.0
    %1531 = vmatprep.subr.mxu0 0.0
    %1532 = vmatpush1.msra.mxu0 0.0
    %1533 = vmatprep.subr.mxu0 0.0
    %1534 = vmatpush1.msra.mxu0 0.0
    %1535 = vmatprep.subr.mxu0 0.0
    %1536 = vmatpush1.msra.mxu0 0.0
    %1537 = vmatprep.subr.mxu0 0.0
    %1538 = vmatpush1.msra.mxu0 0.0
    %1539 = vmatprep.subr.mxu0 0.0
    %1540 = vmatpush1.msra.mxu0 0.0
    %1541 = vmatprep.subr.mxu0 0.0
    %1542 = vmatpush1.msra.mxu0 0.0
    %1543 = vmatprep.subr.mxu0 0.0
    %1544 = vmatpush1.msra.mxu0 0.0
    %1545 = vmatprep.subr.mxu0 0.0
    %1546 = vmatpush1.msra.mxu0 0.0
    %1547 = vmatprep.subr.mxu0 0.0
    %1548 = vmatpush1.msra.mxu0 0.0
    %1549 = vmatprep.subr.mxu0 0.0
    %1550 = vmatpush1.msra.mxu0 0.0
    %1551 = vmatprep.subr.mxu0 0.0
    %1552 = vmatpush1.msra.mxu0 0.0
    %1553 = vmatprep.subr.mxu0 0.0
    %1554 = vmatpush1.msra.mxu0 0.0
    %1555 = vmatprep.subr.mxu0 0.0
    %1556 = vmatpush1.msra.mxu0 0.0
    %1557 = vmatprep.subr.mxu0 0.0
    %1558 = vmatpush1.msra.mxu0 0.0
    %1559 = vmatprep.subr.mxu0 0.0
    %1560 = vmatpush1.msra.mxu0 0.0
    %1561 = vmatprep.subr.mxu0 0.0
    %1562 = vmatpush1.msra.mxu0 0.0
    %1563 = vmatprep.subr.mxu0 0.0
    %1564 = vmatpush1.msra.mxu0 0.0
    %1565 = vmatprep.subr.mxu0 0.0
    %1566 = vmatpush1.msra.mxu0 0.0
    %1567 = vmatprep.subr.mxu0 0.0
    %1568 = vmatpush1.msra.mxu0 0.0
    %1569 = vmatprep.subr.mxu0 0.0
    %1570 = vmatpush1.msra.mxu0 0.0
    %1571 = vmatprep.subr.mxu0 0.0
    %1572 = vmatpush1.msra.mxu0 0.0
    %1573 = vmatprep.subr.mxu0 0.0
    %1574 = vmatpush1.msra.mxu0 0.0
    %1575 = vmatprep.subr.mxu0 0.0
    %1576 = vmatpush1.msra.mxu0 0.0
    %1577 = vmatprep.mubr.f32.mxu0 0.0
    %1578 = vmatmul.mubr.f32.gmra.mrb[0].mxu0 %v1511
    %v1579 = vpop.f32.mrb[0].mxu0
    %v1580 = vadd.f32 0.0, %v1579
    %v1581 = vpop.f32.mrb[0].mxu0
    %1582 = vdwg.mxu0
    %v1583 = vadd.f32 %v1507, %v1580
    %s1584 = scalar_lea.vmem [#allocation3], 16
    %v1585 = vld [vmem:[%s1584] sm:$0xff]
    %1587 = vrot.lane.b32.xlu0 %v1504, 32
    %v1588 = vpop.permute.xlu0 %1587
    %v1589 = vsel %vm365, %v1588, 0
    %1591 = vmatprep.subr.mxu0 0.0
    %1592 = vmatpush1.msra.mxu0 %v359
    %1593 = vmatprep.subr.mxu0 0.0
    %1594 = vmatpush1.msra.mxu0 %v360
    %1595 = vmatprep.subr.mxu0 0.0
    %1596 = vmatpush1.msra.mxu0 %v361
    %1597 = vmatprep.subr.mxu0 0.0
    %1598 = vmatpush1.msra.mxu0 %v362
    %1599 = vmatprep.subr.mxu0 0.0
    %1600 = vmatpush1.msra.mxu0 0.0
    %1601 = vmatprep.subr.mxu0 0.0
    %1602 = vmatpush1.msra.mxu0 0.0
    %1603 = vmatprep.subr.mxu0 0.0
    %1604 = vmatpush1.msra.mxu0 0.0
    %1605 = vmatprep.subr.mxu0 0.0
    %1606 = vmatpush1.msra.mxu0 0.0
    %1607 = vmatprep.subr.mxu0 0.0
    %1608 = vmatpush1.msra.mxu0 0.0
    %1609 = vmatprep.subr.mxu0 0.0
    %1610 = vmatpush1.msra.mxu0 0.0
    %1611 = vmatprep.subr.mxu0 0.0
    %1612 = vmatpush1.msra.mxu0 0.0
    %1613 = vmatprep.subr.mxu0 0.0
    %1614 = vmatpush1.msra.mxu0 0.0
    %1615 = vmatprep.subr.mxu0 0.0
    %1616 = vmatpush1.msra.mxu0 0.0
    %1617 = vmatprep.subr.mxu0 0.0
    %1618 = vmatpush1.msra.mxu0 0.0
    %1619 = vmatprep.subr.mxu0 0.0
    %1620 = vmatpush1.msra.mxu0 0.0
    %1621 = vmatprep.subr.mxu0 0.0
    %1622 = vmatpush1.msra.mxu0 0.0
    %1623 = vmatprep.subr.mxu0 0.0
    %1624 = vmatpush1.msra.mxu0 0.0
    %1625 = vmatprep.subr.mxu0 0.0
    %1626 = vmatpush1.msra.mxu0 0.0
    %1627 = vmatprep.subr.mxu0 0.0
    %1628 = vmatpush1.msra.mxu0 0.0
    %1629 = vmatprep.subr.mxu0 0.0
    %1630 = vmatpush1.msra.mxu0 0.0
    %1631 = vmatprep.subr.mxu0 0.0
    %1632 = vmatpush1.msra.mxu0 0.0
    %1633 = vmatprep.subr.mxu0 0.0
    %1634 = vmatpush1.msra.mxu0 0.0
    %1635 = vmatprep.subr.mxu0 0.0
    %1636 = vmatpush1.msra.mxu0 0.0
    %1637 = vmatprep.subr.mxu0 0.0
    %1638 = vmatpush1.msra.mxu0 0.0
    %1639 = vmatprep.subr.mxu0 0.0
    %1640 = vmatpush1.msra.mxu0 0.0
    %1641 = vmatprep.subr.mxu0 0.0
    %1642 = vmatpush1.msra.mxu0 0.0
    %1643 = vmatprep.subr.mxu0 0.0
    %1644 = vmatpush1.msra.mxu0 0.0
    %1645 = vmatprep.subr.mxu0 0.0
    %1646 = vmatpush1.msra.mxu0 0.0
    %1647 = vmatprep.subr.mxu0 0.0
    %1648 = vmatpush1.msra.mxu0 0.0
    %1649 = vmatprep.subr.mxu0 0.0
    %1650 = vmatpush1.msra.mxu0 0.0
    %1651 = vmatprep.subr.mxu0 0.0
    %1652 = vmatpush1.msra.mxu0 0.0
    %1653 = vmatprep.subr.mxu0 0.0
    %1654 = vmatpush1.msra.mxu0 0.0
    %1655 = vmatprep.mubr.f32.mxu0 0.0
    %1656 = vmatmul.mubr.f32.gmra.mrb[0].mxu0 %v1589
    %v1657 = vpop.f32.mrb[0].mxu0
    %v1658 = vadd.f32 0.0, %v1657
    %v1659 = vpop.f32.mrb[0].mxu0
    %1660 = vdwg.mxu0
    %v1661 = vadd.f32 %v1585, %v1658
    %v1662 = vxor.u32 %v1583, 2147483648
    %v1663 = vmul.f32 %v1662, 1.442695
    %v1664 = vpow.pop %v1663
    %v1665 = vadd.f32 %v1664, 1.0
    %v1666 = vrcp.pop %v1665
    %v1667 = vmul.f32 1.0, %v1666
    %v1668 = vtanh.pop %v1583
    %v1669 = vmul.f32 %v1667, %v1503
    %1671 = vrot.lane.b32.xlu0 %v1668, 64
    %v1672 = vpop.permute.xlu0 %1671
    %v1674 = vmul.f32 %v1667, %v1672
    %1676 = vrot.lane.b32.xlu0 %v1674, 32
    %v1677 = vpop.permute.xlu0 %1676
    %v1679 = vadd.f32 %v1669, %v1677
    %v1680 = vtanh.pop %v1679
    %1682 = vrot.lane.b32.xlu0 %v1680, 64
    %v1683 = vpop.permute.xlu0 %1682
    %v1685 = vmul.f32 %v1667, %v1683
    %v1686 = vxor.u32 %v1661, 2147483648
    %v1687 = vmul.f32 %v1686, 1.442695
    %v1688 = vpow.pop %v1687
    %v1689 = vadd.f32 %v1688, 1.0
    %v1690 = vrcp.pop %v1689
    %v1691 = vmul.f32 1.0, %v1690
    %v1692 = vtanh.pop %v1661
    %v1693 = vmul.f32 %v1691, %v1505
    %1695 = vrot.lane.b32.xlu0 %v1692, 64
    %v1696 = vpop.permute.xlu0 %1695
    %v1698 = vmul.f32 %v1691, %v1696
    %1700 = vrot.lane.b32.xlu0 %v1698, 32
    %v1701 = vpop.permute.xlu0 %1700
    %v1703 = vadd.f32 %v1693, %v1701
    %v1704 = vtanh.pop %v1703
    %1706 = vrot.lane.b32.xlu0 %v1704, 64
    %v1707 = vpop.permute.xlu0 %1706
    %v1709 = vmul.f32 %v1691, %v1707
    %v1710 = vsel %vm1038, %v1685, 0.0
    %1712 = vrot.lane.b32.xlu0 %v1710, 32
    %v1713 = vpop.permute.xlu0 %1712
    %s1715 = scalar_lea.vmem [#allocation4], 40
    %1716 = vst.msk [vmem:[%s1715] sm:$0xff] %vm365, %v1713
    %v1717 = vsel %vm1026, %v1709, 0.0
    %1719 = vrot.lane.b32.xlu0 %v1717, 32
    %v1720 = vpop.permute.xlu0 %1719
    %s1722 = scalar_lea.vmem [#allocation5], 16
    %1723 = vst.msk [vmem:[%s1722] sm:$0xff] %vm365, %v1720
    %v1724 = vsel %vm1038, %v1685, %v1502
    %v1725 = vsel %vm1038, %v1679, %v1503
    %v1726 = vsel %vm1026, %v1709, %v1504
    %v1727 = vsel %vm1026, %v1703, %v1505
    %s1728 = scalar_lea.vmem [#allocation2], 48
    %v1729 = vld [vmem:[%s1728] sm:$0xff]
    %1731 = vrot.lane.b32.xlu0 %v1724, 32
    %v1732 = vpop.permute.xlu0 %1731
    %v1733 = vsel %vm365, %v1732, 0
    %1735 = vmatprep.subr.mxu0 0.0
    %1736 = vmatpush1.msra.mxu0 %v355
    %1737 = vmatprep.subr.mxu0 0.0
    %1738 = vmatpush1.msra.mxu0 %v356
    %1739 = vmatprep.subr.mxu0 0.0
    %1740 = vmatpush1.msra.mxu0 %v357
    %1741 = vmatprep.subr.mxu0 0.0
    %1742 = vmatpush1.msra.mxu0 %v358
    %1743 = vmatprep.subr.mxu0 0.0
    %1744 = vmatpush1.msra.mxu0 0.0
    %1745 = vmatprep.subr.mxu0 0.0
    %1746 = vmatpush1.msra.mxu0 0.0
    %1747 = vmatprep.subr.mxu0 0.0
    %1748 = vmatpush1.msra.mxu0 0.0
    %1749 = vmatprep.subr.mxu0 0.0
    %1750 = vmatpush1.msra.mxu0 0.0
    %1751 = vmatprep.subr.mxu0 0.0
    %1752 = vmatpush1.msra.mxu0 0.0
    %1753 = vmatprep.subr.mxu0 0.0
    %1754 = vmatpush1.msra.mxu0 0.0
    %1755 = vmatprep.subr.mxu0 0.0
    %1756 = vmatpush1.msra.mxu0 0.0
    %1757 = vmatprep.subr.mxu0 0.0
    %1758 = vmatpush1.msra.mxu0 0.0
    %1759 = vmatprep.subr.mxu0 0.0
    %1760 = vmatpush1.msra.mxu0 0.0
    %1761 = vmatprep.subr.mxu0 0.0
    %1762 = vmatpush1.msra.mxu0 0.0
    %1763 = vmatprep.subr.mxu0 0.0
    %1764 = vmatpush1.msra.mxu0 0.0
    %1765 = vmatprep.subr.mxu0 0.0
    %1766 = vmatpush1.msra.mxu0 0.0
    %1767 = vmatprep.subr.mxu0 0.0
    %1768 = vmatpush1.msra.mxu0 0.0
    %1769 = vmatprep.subr.mxu0 0.0
    %1770 = vmatpush1.msra.mxu0 0.0
    %1771 = vmatprep.subr.mxu0 0.0
    %1772 = vmatpush1.msra.mxu0 0.0
    %1773 = vmatprep.subr.mxu0 0.0
    %1774 = vmatpush1.msra.mxu0 0.0
    %1775 = vmatprep.subr.mxu0 0.0
    %1776 = vmatpush1.msra.mxu0 0.0
    %1777 = vmatprep.subr.mxu0 0.0
    %1778 = vmatpush1.msra.mxu0 0.0
    %1779 = vmatprep.subr.mxu0 0.0
    %1780 = vmatpush1.msra.mxu0 0.0
    %1781 = vmatprep.subr.mxu0 0.0
    %1782 = vmatpush1.msra.mxu0 0.0
    %1783 = vmatprep.subr.mxu0 0.0
    %1784 = vmatpush1.msra.mxu0 0.0
    %1785 = vmatprep.subr.mxu0 0.0
    %1786 = vmatpush1.msra.mxu0 0.0
    %1787 = vmatprep.subr.mxu0 0.0
    %1788 = vmatpush1.msra.mxu0 0.0
    %1789 = vmatprep.subr.mxu0 0.0
    %1790 = vmatpush1.msra.mxu0 0.0
    %1791 = vmatprep.subr.mxu0 0.0
    %1792 = vmatpush1.msra.mxu0 0.0
    %1793 = vmatprep.subr.mxu0 0.0
    %1794 = vmatpush1.msra.mxu0 0.0
    %1795 = vmatprep.subr.mxu0 0.0
    %1796 = vmatpush1.msra.mxu0 0.0
    %1797 = vmatprep.subr.mxu0 0.0
    %1798 = vmatpush1.msra.mxu0 0.0
    %1799 = vmatprep.mubr.f32.mxu0 0.0
    %1800 = vmatmul.mubr.f32.gmra.mrb[0].mxu0 %v1733
    %v1801 = vpop.f32.mrb[0].mxu0
    %v1802 = vadd.f32 0.0, %v1801
    %v1803 = vpop.f32.mrb[0].mxu0
    %1804 = vdwg.mxu0
    %v1805 = vadd.f32 %v1729, %v1802
    %s1806 = scalar_lea.vmem [#allocation3], 8
    %v1807 = vld [vmem:[%s1806] sm:$0xff]
    %1809 = vrot.lane.b32.xlu0 %v1726, 32
    %v1810 = vpop.permute.xlu0 %1809
    %v1811 = vsel %vm365, %v1810, 0
    %1813 = vmatprep.subr.mxu0 0.0
    %1814 = vmatpush1.msra.mxu0 %v359
    %1815 = vmatprep.subr.mxu0 0.0
    %1816 = vmatpush1.msra.mxu0 %v360
    %1817 = vmatprep.subr.mxu0 0.0
    %1818 = vmatpush1.msra.mxu0 %v361
    %1819 = vmatprep.subr.mxu0 0.0
    %1820 = vmatpush1.msra.mxu0 %v362
    %1821 = vmatprep.subr.mxu0 0.0
    %1822 = vmatpush1.msra.mxu0 0.0
    %1823 = vmatprep.subr.mxu0 0.0
    %1824 = vmatpush1.msra.mxu0 0.0
    %1825 = vmatprep.subr.mxu0 0.0
    %1826 = vmatpush1.msra.mxu0 0.0
    %1827 = vmatprep.subr.mxu0 0.0
    %1828 = vmatpush1.msra.mxu0 0.0
    %1829 = vmatprep.subr.mxu0 0.0
    %1830 = vmatpush1.msra.mxu0 0.0
    %1831 = vmatprep.subr.mxu0 0.0
    %1832 = vmatpush1.msra.mxu0 0.0
    %1833 = vmatprep.subr.mxu0 0.0
    %1834 = vmatpush1.msra.mxu0 0.0
    %1835 = vmatprep.subr.mxu0 0.0
    %1836 = vmatpush1.msra.mxu0 0.0
    %1837 = vmatprep.subr.mxu0 0.0
    %1838 = vmatpush1.msra.mxu0 0.0
    %1839 = vmatprep.subr.mxu0 0.0
    %1840 = vmatpush1.msra.mxu0 0.0
    %1841 = vmatprep.subr.mxu0 0.0
    %1842 = vmatpush1.msra.mxu0 0.0
    %1843 = vmatprep.subr.mxu0 0.0
    %1844 = vmatpush1.msra.mxu0 0.0
    %1845 = vmatprep.subr.mxu0 0.0
    %1846 = vmatpush1.msra.mxu0 0.0
    %1847 = vmatprep.subr.mxu0 0.0
    %1848 = vmatpush1.msra.mxu0 0.0
    %1849 = vmatprep.subr.mxu0 0.0
    %1850 = vmatpush1.msra.mxu0 0.0
    %1851 = vmatprep.subr.mxu0 0.0
    %1852 = vmatpush1.msra.mxu0 0.0
    %1853 = vmatprep.subr.mxu0 0.0
    %1854 = vmatpush1.msra.mxu0 0.0
    %1855 = vmatprep.subr.mxu0 0.0
    %1856 = vmatpush1.msra.mxu0 0.0
    %1857 = vmatprep.subr.mxu0 0.0
    %1858 = vmatpush1.msra.mxu0 0.0
    %1859 = vmatprep.subr.mxu0 0.0
    %1860 = vmatpush1.msra.mxu0 0.0
    %1861 = vmatprep.subr.mxu0 0.0
    %1862 = vmatpush1.msra.mxu0 0.0
    %1863 = vmatprep.subr.mxu0 0.0
    %1864 = vmatpush1.msra.mxu0 0.0
    %1865 = vmatprep.subr.mxu0 0.0
    %1866 = vmatpush1.msra.mxu0 0.0
    %1867 = vmatprep.subr.mxu0 0.0
    %1868 = vmatpush1.msra.mxu0 0.0
    %1869 = vmatprep.subr.mxu0 0.0
    %1870 = vmatpush1.msra.mxu0 0.0
    %1871 = vmatprep.subr.mxu0 0.0
    %1872 = vmatpush1.msra.mxu0 0.0
    %1873 = vmatprep.subr.mxu0 0.0
    %1874 = vmatpush1.msra.mxu0 0.0
    %1875 = vmatprep.subr.mxu0 0.0
    %1876 = vmatpush1.msra.mxu0 0.0
    %1877 = vmatprep.mubr.f32.mxu0 0.0
    %1878 = vmatmul.mubr.f32.gmra.mrb[0].mxu0 %v1811
    %v1879 = vpop.f32.mrb[0].mxu0
    %v1880 = vadd.f32 0.0, %v1879
    %v1881 = vpop.f32.mrb[0].mxu0
    %1882 = vdwg.mxu0
    %v1883 = vadd.f32 %v1807, %v1880
    %v1884 = vxor.u32 %v1805, 2147483648
    %v1885 = vmul.f32 %v1884, 1.442695
    %v1886 = vpow.pop %v1885
    %v1887 = vadd.f32 %v1886, 1.0
    %v1888 = vrcp.pop %v1887
    %v1889 = vmul.f32 1.0, %v1888
    %v1890 = vtanh.pop %v1805
    %v1891 = vmul.f32 %v1889, %v1725
    %1893 = vrot.lane.b32.xlu0 %v1890, 64
    %v1894 = vpop.permute.xlu0 %1893
    %v1896 = vmul.f32 %v1889, %v1894
    %1898 = vrot.lane.b32.xlu0 %v1896, 32
    %v1899 = vpop.permute.xlu0 %1898
    %v1901 = vadd.f32 %v1891, %v1899
    %v1902 = vtanh.pop %v1901
    %1904 = vrot.lane.b32.xlu0 %v1902, 64
    %v1905 = vpop.permute.xlu0 %1904
    %v1907 = vmul.f32 %v1889, %v1905
    %v1908 = vxor.u32 %v1883, 2147483648
    %v1909 = vmul.f32 %v1908, 1.442695
    %v1910 = vpow.pop %v1909
    %v1911 = vadd.f32 %v1910, 1.0
    %v1912 = vrcp.pop %v1911
    %v1913 = vmul.f32 1.0, %v1912
    %v1914 = vtanh.pop %v1883
    %v1915 = vmul.f32 %v1913, %v1727
    %1917 = vrot.lane.b32.xlu0 %v1914, 64
    %v1918 = vpop.permute.xlu0 %1917
    %v1920 = vmul.f32 %v1913, %v1918
    %1922 = vrot.lane.b32.xlu0 %v1920, 32
    %v1923 = vpop.permute.xlu0 %1922
    %v1925 = vadd.f32 %v1915, %v1923
    %v1926 = vtanh.pop %v1925
    %1928 = vrot.lane.b32.xlu0 %v1926, 64
    %v1929 = vpop.permute.xlu0 %1928
    %v1931 = vmul.f32 %v1913, %v1929
    %v1932 = vsel %vm804, %v1907, 0.0
    %1934 = vrot.lane.b32.xlu0 %v1932, 32
    %v1935 = vpop.permute.xlu0 %1934
    %s1937 = scalar_lea.vmem [#allocation4], 48
    %1938 = vst.msk [vmem:[%s1937] sm:$0xff] %vm365, %v1935
    %v1939 = vsel %vm792, %v1931, 0.0
    %1941 = vrot.lane.b32.xlu0 %v1939, 32
    %v1942 = vpop.permute.xlu0 %1941
    %s1944 = scalar_lea.vmem [#allocation5], 8
    %1945 = vst.msk [vmem:[%s1944] sm:$0xff] %vm365, %v1942
    %v1946 = vsel %vm804, %v1907, %v1724
    %v1947 = vsel %vm804, %v1901, %v1725
    %v1948 = vsel %vm792, %v1931, %v1726
    %v1949 = vsel %vm792, %v1925, %v1727
    %s1950 = scalar_lea.vmem [#allocation2], 56
    %v1951 = vld [vmem:[%s1950] sm:$0xff]
    %1953 = vrot.lane.b32.xlu0 %v1946, 32
    %v1954 = vpop.permute.xlu0 %1953
    %v1955 = vsel %vm365, %v1954, 0
    %1957 = vmatprep.subr.mxu0 0.0
    %1958 = vmatpush1.msra.mxu0 %v355
    %1959 = vmatprep.subr.mxu0 0.0
    %1960 = vmatpush1.msra.mxu0 %v356
    %1961 = vmatprep.subr.mxu0 0.0
    %1962 = vmatpush1.msra.mxu0 %v357
    %1963 = vmatprep.subr.mxu0 0.0
    %1964 = vmatpush1.msra.mxu0 %v358
    %1965 = vmatprep.subr.mxu0 0.0
    %1966 = vmatpush1.msra.mxu0 0.0
    %1967 = vmatprep.subr.mxu0 0.0
    %1968 = vmatpush1.msra.mxu0 0.0
    %1969 = vmatprep.subr.mxu0 0.0
    %1970 = vmatpush1.msra.mxu0 0.0
    %1971 = vmatprep.subr.mxu0 0.0
    %1972 = vmatpush1.msra.mxu0 0.0
    %1973 = vmatprep.subr.mxu0 0.0
    %1974 = vmatpush1.msra.mxu0 0.0
    %1975 = vmatprep.subr.mxu0 0.0
    %1976 = vmatpush1.msra.mxu0 0.0
    %1977 = vmatprep.subr.mxu0 0.0
    %1978 = vmatpush1.msra.mxu0 0.0
    %1979 = vmatprep.subr.mxu0 0.0
    %1980 = vmatpush1.msra.mxu0 0.0
    %1981 = vmatprep.subr.mxu0 0.0
    %1982 = vmatpush1.msra.mxu0 0.0
    %1983 = vmatprep.subr.mxu0 0.0
    %1984 = vmatpush1.msra.mxu0 0.0
    %1985 = vmatprep.subr.mxu0 0.0
    %1986 = vmatpush1.msra.mxu0 0.0
    %1987 = vmatprep.subr.mxu0 0.0
    %1988 = vmatpush1.msra.mxu0 0.0
    %1989 = vmatprep.subr.mxu0 0.0
    %1990 = vmatpush1.msra.mxu0 0.0
    %1991 = vmatprep.subr.mxu0 0.0
    %1992 = vmatpush1.msra.mxu0 0.0
    %1993 = vmatprep.subr.mxu0 0.0
    %1994 = vmatpush1.msra.mxu0 0.0
    %1995 = vmatprep.subr.mxu0 0.0
    %1996 = vmatpush1.msra.mxu0 0.0
    %1997 = vmatprep.subr.mxu0 0.0
    %1998 = vmatpush1.msra.mxu0 0.0
    %1999 = vmatprep.subr.mxu0 0.0
    %2000 = vmatpush1.msra.mxu0 0.0
    %2001 = vmatprep.subr.mxu0 0.0
    %2002 = vmatpush1.msra.mxu0 0.0
    %2003 = vmatprep.subr.mxu0 0.0
    %2004 = vmatpush1.msra.mxu0 0.0
    %2005 = vmatprep.subr.mxu0 0.0
    %2006 = vmatpush1.msra.mxu0 0.0
    %2007 = vmatprep.subr.mxu0 0.0
    %2008 = vmatpush1.msra.mxu0 0.0
    %2009 = vmatprep.subr.mxu0 0.0
    %2010 = vmatpush1.msra.mxu0 0.0
    %2011 = vmatprep.subr.mxu0 0.0
    %2012 = vmatpush1.msra.mxu0 0.0
    %2013 = vmatprep.subr.mxu0 0.0
    %2014 = vmatpush1.msra.mxu0 0.0
    %2015 = vmatprep.subr.mxu0 0.0
    %2016 = vmatpush1.msra.mxu0 0.0
    %2017 = vmatprep.subr.mxu0 0.0
    %2018 = vmatpush1.msra.mxu0 0.0
    %2019 = vmatprep.subr.mxu0 0.0
    %2020 = vmatpush1.msra.mxu0 0.0
    %2021 = vmatprep.mubr.f32.mxu0 0.0
    %2022 = vmatmul.mubr.f32.gmra.mrb[0].mxu0 %v1955
    %v2023 = vpop.f32.mrb[0].mxu0
    %v2024 = vadd.f32 0.0, %v2023
    %v2025 = vpop.f32.mrb[0].mxu0
    %2026 = vdwg.mxu0
    %v2027 = vadd.f32 %v1951, %v2024
    %v2028 = vld [vmem:[#allocation3] sm:$0xff]
    %2030 = vrot.lane.b32.xlu0 %v1948, 32
    %v2031 = vpop.permute.xlu0 %2030
    %v2032 = vsel %vm365, %v2031, 0
    %2034 = vmatprep.subr.mxu0 0.0
    %2035 = vmatpush1.msra.mxu0 %v359
    %2036 = vmatprep.subr.mxu0 0.0
    %2037 = vmatpush1.msra.mxu0 %v360
    %2038 = vmatprep.subr.mxu0 0.0
    %2039 = vmatpush1.msra.mxu0 %v361
    %2040 = vmatprep.subr.mxu0 0.0
    %2041 = vmatpush1.msra.mxu0 %v362
    %2042 = vmatprep.subr.mxu0 0.0
    %2043 = vmatpush1.msra.mxu0 0.0
    %2044 = vmatprep.subr.mxu0 0.0
    %2045 = vmatpush1.msra.mxu0 0.0
    %2046 = vmatprep.subr.mxu0 0.0
    %2047 = vmatpush1.msra.mxu0 0.0
    %2048 = vmatprep.subr.mxu0 0.0
    %2049 = vmatpush1.msra.mxu0 0.0
    %2050 = vmatprep.subr.mxu0 0.0
    %2051 = vmatpush1.msra.mxu0 0.0
    %2052 = vmatprep.subr.mxu0 0.0
    %2053 = vmatpush1.msra.mxu0 0.0
    %2054 = vmatprep.subr.mxu0 0.0
    %2055 = vmatpush1.msra.mxu0 0.0
    %2056 = vmatprep.subr.mxu0 0.0
    %2057 = vmatpush1.msra.mxu0 0.0
    %2058 = vmatprep.subr.mxu0 0.0
    %2059 = vmatpush1.msra.mxu0 0.0
    %2060 = vmatprep.subr.mxu0 0.0
    %2061 = vmatpush1.msra.mxu0 0.0
    %2062 = vmatprep.subr.mxu0 0.0
    %2063 = vmatpush1.msra.mxu0 0.0
    %2064 = vmatprep.subr.mxu0 0.0
    %2065 = vmatpush1.msra.mxu0 0.0
    %2066 = vmatprep.subr.mxu0 0.0
    %2067 = vmatpush1.msra.mxu0 0.0
    %2068 = vmatprep.subr.mxu0 0.0
    %2069 = vmatpush1.msra.mxu0 0.0
    %2070 = vmatprep.subr.mxu0 0.0
    %2071 = vmatpush1.msra.mxu0 0.0
    %2072 = vmatprep.subr.mxu0 0.0
    %2073 = vmatpush1.msra.mxu0 0.0
    %2074 = vmatprep.subr.mxu0 0.0
    %2075 = vmatpush1.msra.mxu0 0.0
    %2076 = vmatprep.subr.mxu0 0.0
    %2077 = vmatpush1.msra.mxu0 0.0
    %2078 = vmatprep.subr.mxu0 0.0
    %2079 = vmatpush1.msra.mxu0 0.0
    %2080 = vmatprep.subr.mxu0 0.0
    %2081 = vmatpush1.msra.mxu0 0.0
    %2082 = vmatprep.subr.mxu0 0.0
    %2083 = vmatpush1.msra.mxu0 0.0
    %2084 = vmatprep.subr.mxu0 0.0
    %2085 = vmatpush1.msra.mxu0 0.0
    %2086 = vmatprep.subr.mxu0 0.0
    %2087 = vmatpush1.msra.mxu0 0.0
    %2088 = vmatprep.subr.mxu0 0.0
    %2089 = vmatpush1.msra.mxu0 0.0
    %2090 = vmatprep.subr.mxu0 0.0
    %2091 = vmatpush1.msra.mxu0 0.0
    %2092 = vmatprep.subr.mxu0 0.0
    %2093 = vmatpush1.msra.mxu0 0.0
    %2094 = vmatprep.subr.mxu0 0.0
    %2095 = vmatpush1.msra.mxu0 0.0
    %2096 = vmatprep.subr.mxu0 0.0
    %2097 = vmatpush1.msra.mxu0 0.0
    %2098 = vmatprep.mubr.f32.mxu0 0.0
    %2099 = vmatmul.mubr.f32.gmra.mrb[0].mxu0 %v2032
    %v2100 = vpop.f32.mrb[0].mxu0
    %v2101 = vadd.f32 0.0, %v2100
    %v2102 = vpop.f32.mrb[0].mxu0
    %2103 = vdwg.mxu0
    %v2104 = vadd.f32 %v2028, %v2101
    %v2105 = vxor.u32 %v2027, 2147483648
    %v2106 = vmul.f32 %v2105, 1.442695
    %v2107 = vpow.pop %v2106
    %v2108 = vadd.f32 %v2107, 1.0
    %v2109 = vrcp.pop %v2108
    %v2110 = vmul.f32 1.0, %v2109
    %v2111 = vtanh.pop %v2027
    %v2112 = vmul.f32 %v2110, %v1947
    %2114 = vrot.lane.b32.xlu0 %v2111, 64
    %v2115 = vpop.permute.xlu0 %2114
    %v2117 = vmul.f32 %v2110, %v2115
    %2119 = vrot.lane.b32.xlu0 %v2117, 32
    %v2120 = vpop.permute.xlu0 %2119
    %v2122 = vadd.f32 %v2112, %v2120
    %v2123 = vtanh.pop %v2122
    %2125 = vrot.lane.b32.xlu0 %v2123, 64
    %v2126 = vpop.permute.xlu0 %2125
    %v2128 = vmul.f32 %v2110, %v2126
    %v2129 = vxor.u32 %v2104, 2147483648
    %v2130 = vmul.f32 %v2129, 1.442695
    %v2131 = vpow.pop %v2130
    %v2132 = vadd.f32 %v2131, 1.0
    %v2133 = vrcp.pop %v2132
    %v2134 = vmul.f32 1.0, %v2133
    %v2135 = vtanh.pop %v2104
    %v2136 = vmul.f32 %v2134, %v1949
    %2138 = vrot.lane.b32.xlu0 %v2135, 64
    %v2139 = vpop.permute.xlu0 %2138
    %v2141 = vmul.f32 %v2134, %v2139
    %2143 = vrot.lane.b32.xlu0 %v2141, 32
    %v2144 = vpop.permute.xlu0 %2143
    %v2146 = vadd.f32 %v2136, %v2144
    %v2147 = vtanh.pop %v2146
    %2149 = vrot.lane.b32.xlu0 %v2147, 64
    %v2150 = vpop.permute.xlu0 %2149
    %v2152 = vmul.f32 %v2134, %v2150
    %v2153 = vsel %vm578, %v2128, 0.0
    %2155 = vrot.lane.b32.xlu0 %v2153, 32
    %v2156 = vpop.permute.xlu0 %2155
    %s2158 = scalar_lea.vmem [#allocation4], 56
    %2159 = vst.msk [vmem:[%s2158] sm:$0xff] %vm365, %v2156
    %v2160 = vsel %vm567, %v2152, 0.0
    %2162 = vrot.lane.b32.xlu0 %v2160, 32
    %v2163 = vpop.permute.xlu0 %2162
    %2165 = vst.msk [vmem:[#allocation5] sm:$0xff] %vm365, %v2163
    %v2166 = vld [vmem:[#allocation4] sm:$0xff]
    %v2167 = vld [vmem:[#allocation4 + $0x8] sm:$0xff]
    %v2168 = vld [vmem:[#allocation4 + $0x10] sm:$0xff]
    %v2169 = vld [vmem:[#allocation4 + $0x18] sm:$0xff]
    %v2170 = vld [vmem:[#allocation4 + $0x20] sm:$0xff]
    %v2171 = vld [vmem:[#allocation4 + $0x28] sm:$0xff]
    %v2172 = vld [vmem:[#allocation4 + $0x30] sm:$0xff]
    %v2173 = vld [vmem:[#allocation4 + $0x38] sm:$0xff]
    %v2174 = vld [vmem:[#allocation5] sm:$0xff]
    %v2175 = vld [vmem:[#allocation5 + $0x8] sm:$0xff]
    %v2176 = vld [vmem:[#allocation5 + $0x10] sm:$0xff]
    %v2177 = vld [vmem:[#allocation5 + $0x18] sm:$0xff]
    %v2178 = vld [vmem:[#allocation5 + $0x20] sm:$0xff]
    %v2179 = vld [vmem:[#allocation5 + $0x28] sm:$0xff]
    %v2180 = vld [vmem:[#allocation5 + $0x30] sm:$0xff]
    %v2181 = vld [vmem:[#allocation5 + $0x38] sm:$0xff]
    %v2182 = vld [vmem:[%s7] sm:$0xff]
    %v2183 = vld [vmem:[%s7 + $0x8] sm:$0xff]
    %v2184 = vld [vmem:[%s7 + $0x10] sm:$0xff]
    %v2185 = vld [vmem:[%s7 + $0x18] sm:$0xff]
    %v2186 = vld [vmem:[#allocation15] sm:$0xff]
    %v2187 = vld [vmem:[#allocation15 + $0x8] sm:$0xff]
    %v2188 = vld [vmem:[#allocation15 + $0x10] sm:$0xff]
    %v2189 = vld [vmem:[#allocation15 + $0x18] sm:$0xff]
    %v2191 = vsel %vm365, %v2174, 0
    %v2194 = vsel %vm365, %v2175, 0
    %v2197 = vsel %vm365, %v2176, 0
    %v2200 = vsel %vm365, %v2177, 0
    %v2203 = vsel %vm365, %v2178, 0
    %v2206 = vsel %vm365, %v2179, 0
    %v2209 = vsel %vm365, %v2180, 0
    %v2212 = vsel %vm365, %v2181, 0
    %2214 = vmatprep.subr.mxu0 0.0
    %2215 = vmatpush1.msra.mxu0 %v2186
    %2216 = vmatprep.subr.mxu0 0.0
    %2217 = vmatpush1.msra.mxu0 %v2187
    %2218 = vmatprep.subr.mxu0 0.0
    %2219 = vmatpush1.msra.mxu0 %v2188
    %2220 = vmatprep.subr.mxu0 0.0
    %2221 = vmatpush1.msra.mxu0 %v2189
    %2222 = vmatprep.subr.mxu0 0.0
    %2223 = vmatpush1.msra.mxu0 0.0
    %2224 = vmatprep.subr.mxu0 0.0
    %2225 = vmatpush1.msra.mxu0 0.0
    %2226 = vmatprep.subr.mxu0 0.0
    %2227 = vmatpush1.msra.mxu0 0.0
    %2228 = vmatprep.subr.mxu0 0.0
    %2229 = vmatpush1.msra.mxu0 0.0
    %2230 = vmatprep.subr.mxu0 0.0
    %2231 = vmatpush1.msra.mxu0 0.0
    %2232 = vmatprep.subr.mxu0 0.0
    %2233 = vmatpush1.msra.mxu0 0.0
    %2234 = vmatprep.subr.mxu0 0.0
    %2235 = vmatpush1.msra.mxu0 0.0
    %2236 = vmatprep.subr.mxu0 0.0
    %2237 = vmatpush1.msra.mxu0 0.0
    %2238 = vmatprep.subr.mxu0 0.0
    %2239 = vmatpush1.msra.mxu0 0.0
    %2240 = vmatprep.subr.mxu0 0.0
    %2241 = vmatpush1.msra.mxu0 0.0
    %2242 = vmatprep.subr.mxu0 0.0
    %2243 = vmatpush1.msra.mxu0 0.0
    %2244 = vmatprep.subr.mxu0 0.0
    %2245 = vmatpush1.msra.mxu0 0.0
    %2246 = vmatprep.subr.mxu0 0.0
    %2247 = vmatpush1.msra.mxu0 0.0
    %2248 = vmatprep.subr.mxu0 0.0
    %2249 = vmatpush1.msra.mxu0 0.0
    %2250 = vmatprep.subr.mxu0 0.0
    %2251 = vmatpush1.msra.mxu0 0.0
    %2252 = vmatprep.subr.mxu0 0.0
    %2253 = vmatpush1.msra.mxu0 0.0
    %2254 = vmatprep.subr.mxu0 0.0
    %2255 = vmatpush1.msra.mxu0 0.0
    %2256 = vmatprep.subr.mxu0 0.0
    %2257 = vmatpush1.msra.mxu0 0.0
    %2258 = vmatprep.subr.mxu0 0.0
    %2259 = vmatpush1.msra.mxu0 0.0
    %2260 = vmatprep.subr.mxu0 0.0
    %2261 = vmatpush1.msra.mxu0 0.0
    %2262 = vmatprep.subr.mxu0 0.0
    %2263 = vmatpush1.msra.mxu0 0.0
    %2264 = vmatprep.subr.mxu0 0.0
    %2265 = vmatpush1.msra.mxu0 0.0
    %2266 = vmatprep.subr.mxu0 0.0
    %2267 = vmatpush1.msra.mxu0 0.0
    %2268 = vmatprep.subr.mxu0 0.0
    %2269 = vmatpush1.msra.mxu0 0.0
    %2270 = vmatprep.subr.mxu0 0.0
    %2271 = vmatpush1.msra.mxu0 0.0
    %2272 = vmatprep.subr.mxu0 0.0
    %2273 = vmatpush1.msra.mxu0 0.0
    %2274 = vmatprep.subr.mxu0 0.0
    %2275 = vmatpush1.msra.mxu0 0.0
    %2276 = vmatprep.subr.mxu0 0.0
    %2277 = vmatpush1.msra.mxu0 0.0
    %2278 = vmatprep.mubr.f32.mxu0 0.0
    %2279 = vmatmul.mubr.f32.gmra.mrb[0].mxu0 %v2191
    %v2280 = vpop.f32.mrb[0].mxu0
    %v2281 = vadd.f32 0.0, %v2280
    %v2282 = vpop.f32.mrb[0].mxu0
    %2283 = vmatprep.mubr.f32.mxu0 0.0
    %2284 = vmatmul.mubr.f32.gmra.mrb[0].mxu0 %v2194
    %v2285 = vpop.f32.mrb[0].mxu0
    %v2286 = vadd.f32 0.0, %v2285
    %v2287 = vpop.f32.mrb[0].mxu0
    %2288 = vmatprep.mubr.f32.mxu0 0.0
    %2289 = vmatmul.mubr.f32.gmra.mrb[0].mxu0 %v2197
    %v2290 = vpop.f32.mrb[0].mxu0
    %v2291 = vadd.f32 0.0, %v2290
    %v2292 = vpop.f32.mrb[0].mxu0
    %2293 = vmatprep.mubr.f32.mxu0 0.0
    %2294 = vmatmul.mubr.f32.gmra.mrb[0].mxu0 %v2200
    %v2295 = vpop.f32.mrb[0].mxu0
    %v2296 = vadd.f32 0.0, %v2295
    %v2297 = vpop.f32.mrb[0].mxu0
    %2298 = vmatprep.mubr.f32.mxu0 0.0
    %2299 = vmatmul.mubr.f32.gmra.mrb[0].mxu0 %v2203
    %v2300 = vpop.f32.mrb[0].mxu0
    %v2301 = vadd.f32 0.0, %v2300
    %v2302 = vpop.f32.mrb[0].mxu0
    %2303 = vmatprep.mubr.f32.mxu0 0.0
    %2304 = vmatmul.mubr.f32.gmra.mrb[0].mxu0 %v2206
    %v2305 = vpop.f32.mrb[0].mxu0
    %v2306 = vadd.f32 0.0, %v2305
    %v2307 = vpop.f32.mrb[0].mxu0
    %2308 = vmatprep.mubr.f32.mxu0 0.0
    %2309 = vmatmul.mubr.f32.gmra.mrb[0].mxu0 %v2209
    %v2310 = vpop.f32.mrb[0].mxu0
    %v2311 = vadd.f32 0.0, %v2310
    %v2312 = vpop.f32.mrb[0].mxu0
    %2313 = vmatprep.mubr.f32.mxu0 0.0
    %2314 = vmatmul.mubr.f32.gmra.mrb[0].mxu0 %v2212
    %v2315 = vpop.f32.mrb[0].mxu0
    %v2316 = vadd.f32 0.0, %v2315
    %v2317 = vpop.f32.mrb[0].mxu0
    %2318 = vdwg.mxu0
    %v2320 = vsel %vm365, %v2166, 0
    %v2323 = vsel %vm365, %v2167, 0
    %v2326 = vsel %vm365, %v2168, 0
    %v2329 = vsel %vm365, %v2169, 0
    %v2332 = vsel %vm365, %v2170, 0
    %v2335 = vsel %vm365, %v2171, 0
    %v2338 = vsel %vm365, %v2172, 0
    %v2341 = vsel %vm365, %v2173, 0
    %2343 = vmatprep.subr.mxu0 0.0
    %2344 = vmatpush1.msra.mxu0 %v2182
    %2345 = vmatprep.subr.mxu0 0.0
    %2346 = vmatpush1.msra.mxu0 %v2183
    %2347 = vmatprep.subr.mxu0 0.0
    %2348 = vmatpush1.msra.mxu0 %v2184
    %2349 = vmatprep.subr.mxu0 0.0
    %2350 = vmatpush1.msra.mxu0 %v2185
    %2351 = vmatprep.subr.mxu0 0.0
    %2352 = vmatpush1.msra.mxu0 0.0
    %2353 = vmatprep.subr.mxu0 0.0
    %2354 = vmatpush1.msra.mxu0 0.0
    %2355 = vmatprep.subr.mxu0 0.0
    %2356 = vmatpush1.msra.mxu0 0.0
    %2357 = vmatprep.subr.mxu0 0.0
    %2358 = vmatpush1.msra.mxu0 0.0
    %2359 = vmatprep.subr.mxu0 0.0
    %2360 = vmatpush1.msra.mxu0 0.0
    %2361 = vmatprep.subr.mxu0 0.0
    %2362 = vmatpush1.msra.mxu0 0.0
    %2363 = vmatprep.subr.mxu0 0.0
    %2364 = vmatpush1.msra.mxu0 0.0
    %2365 = vmatprep.subr.mxu0 0.0
    %2366 = vmatpush1.msra.mxu0 0.0
    %2367 = vmatprep.subr.mxu0 0.0
    %2368 = vmatpush1.msra.mxu0 0.0
    %2369 = vmatprep.subr.mxu0 0.0
    %2370 = vmatpush1.msra.mxu0 0.0
    %2371 = vmatprep.subr.mxu0 0.0
    %2372 = vmatpush1.msra.mxu0 0.0
    %2373 = vmatprep.subr.mxu0 0.0
    %2374 = vmatpush1.msra.mxu0 0.0
    %2375 = vmatprep.subr.mxu0 0.0
    %2376 = vmatpush1.msra.mxu0 0.0
    %2377 = vmatprep.subr.mxu0 0.0
    %2378 = vmatpush1.msra.mxu0 0.0
    %2379 = vmatprep.subr.mxu0 0.0
    %2380 = vmatpush1.msra.mxu0 0.0
    %2381 = vmatprep.subr.mxu0 0.0
    %2382 = vmatpush1.msra.mxu0 0.0
    %2383 = vmatprep.subr.mxu0 0.0
    %2384 = vmatpush1.msra.mxu0 0.0
    %2385 = vmatprep.subr.mxu0 0.0
    %2386 = vmatpush1.msra.mxu0 0.0
    %2387 = vmatprep.subr.mxu0 0.0
    %2388 = vmatpush1.msra.mxu0 0.0
    %2389 = vmatprep.subr.mxu0 0.0
    %2390 = vmatpush1.msra.mxu0 0.0
    %2391 = vmatprep.subr.mxu0 0.0
    %2392 = vmatpush1.msra.mxu0 0.0
    %2393 = vmatprep.subr.mxu0 0.0
    %2394 = vmatpush1.msra.mxu0 0.0
    %2395 = vmatprep.subr.mxu0 0.0
    %2396 = vmatpush1.msra.mxu0 0.0
    %2397 = vmatprep.subr.mxu0 0.0
    %2398 = vmatpush1.msra.mxu0 0.0
    %2399 = vmatprep.subr.mxu0 0.0
    %2400 = vmatpush1.msra.mxu0 0.0
    %2401 = vmatprep.subr.mxu0 0.0
    %2402 = vmatpush1.msra.mxu0 0.0
    %2403 = vmatprep.subr.mxu0 0.0
    %2404 = vmatpush1.msra.mxu0 0.0
    %2405 = vmatprep.subr.mxu0 0.0
    %2406 = vmatpush1.msra.mxu0 0.0
    %2407 = vmatprep.mubr.f32.mxu0 0.0
    %2408 = vmatmul.mubr.f32.gmra.mrb[0].mxu0 %v2320
    %v2409 = vpop.f32.mrb[0].mxu0
    %v2410 = vadd.f32 %v2281, %v2409
    %v2411 = vpop.f32.mrb[0].mxu0
    %2412 = vmatprep.mubr.f32.mxu0 0.0
    %2413 = vmatmul.mubr.f32.gmra.mrb[0].mxu0 %v2323
    %v2414 = vpop.f32.mrb[0].mxu0
    %v2415 = vadd.f32 %v2286, %v2414
    %v2416 = vpop.f32.mrb[0].mxu0
    %2417 = vmatprep.mubr.f32.mxu0 0.0
    %2418 = vmatmul.mubr.f32.gmra.mrb[0].mxu0 %v2326
    %v2419 = vpop.f32.mrb[0].mxu0
    %v2420 = vadd.f32 %v2291, %v2419
    %v2421 = vpop.f32.mrb[0].mxu0
    %2422 = vmatprep.mubr.f32.mxu0 0.0
    %2423 = vmatmul.mubr.f32.gmra.mrb[0].mxu0 %v2329
    %v2424 = vpop.f32.mrb[0].mxu0
    %v2425 = vadd.f32 %v2296, %v2424
    %v2426 = vpop.f32.mrb[0].mxu0
    %2427 = vmatprep.mubr.f32.mxu0 0.0
    %2428 = vmatmul.mubr.f32.gmra.mrb[0].mxu0 %v2332
    %v2429 = vpop.f32.mrb[0].mxu0
    %v2430 = vadd.f32 %v2301, %v2429
    %v2431 = vpop.f32.mrb[0].mxu0
    %2432 = vmatprep.mubr.f32.mxu0 0.0
    %2433 = vmatmul.mubr.f32.gmra.mrb[0].mxu0 %v2335
    %v2434 = vpop.f32.mrb[0].mxu0
    %v2435 = vadd.f32 %v2306, %v2434
    %v2436 = vpop.f32.mrb[0].mxu0
    %2437 = vmatprep.mubr.f32.mxu0 0.0
    %2438 = vmatmul.mubr.f32.gmra.mrb[0].mxu0 %v2338
    %v2439 = vpop.f32.mrb[0].mxu0
    %v2440 = vadd.f32 %v2311, %v2439
    %v2441 = vpop.f32.mrb[0].mxu0
    %2442 = vmatprep.mubr.f32.mxu0 0.0
    %2443 = vmatmul.mubr.f32.gmra.mrb[0].mxu0 %v2341
    %v2444 = vpop.f32.mrb[0].mxu0
    %v2445 = vadd.f32 %v2316, %v2444
    %v2446 = vpop.f32.mrb[0].mxu0
    %2447 = vdwg.mxu0
    %v2448 = vld [vmem:[%s9] sm:$0x1]
    %v2450 = vlaneseq
    %v2451 = vshrl.u32 %v2450, 7
    %v2452 = vsub.s32 0, %v2451
    %v2453 = vrot.slane %v2448, %v2452
    %v2455 = vadd.f32 %v2410, %v2453
    %v2456 = vadd.f32 %v2415, %v2453
    %v2457 = vadd.f32 %v2420, %v2453
    %v2458 = vadd.f32 %v2425, %v2453
    %v2459 = vadd.f32 %v2430, %v2453
    %v2460 = vadd.f32 %v2435, %v2453
    %v2461 = vadd.f32 %v2440, %v2453
    %v2462 = vadd.f32 %v2445, %v2453
    %v2463 = vtanh.pop %v2455
    %v2464 = vtanh.pop %v2456
    %v2465 = vtanh.pop %v2457
    %v2466 = vtanh.pop %v2458
    %v2467 = vtanh.pop %v2459
    %v2468 = vtanh.pop %v2460
    %v2469 = vtanh.pop %v2461
    %v2470 = vtanh.pop %v2462
    %v2471 = vld [vmem:[%s10] sm:$0x1]
    %v2473 = vlaneseq
    %v2474 = vshrl.u32 %v2473, 7
    %v2475 = vsub.s32 0, %v2474
    %v2476 = vrot.slane %v2471, %v2475
    %v2478 = vmul.f32 %v2463, %v2476
    %v2479 = vmul.f32 %v2464, %v2476
    %v2480 = vmul.f32 %v2465, %v2476
    %v2481 = vmul.f32 %v2466, %v2476
    %v2482 = vmul.f32 %v2467, %v2476
    %v2483 = vmul.f32 %v2468, %v2476
    %v2484 = vmul.f32 %v2469, %v2476
    %v2485 = vmul.f32 %v2470, %v2476
    %v2486 = vsel %vm365, %v2478, 0.0
    %2487 = vadd.xlane.f32.xlu0 %v2486
    %v2488 = vpop.xlane.xlu0 %2487
    %v2489 = vsel %vm365, %v2479, 0.0
    %2490 = vadd.xlane.f32.xlu0 %v2489
    %v2491 = vpop.xlane.xlu0 %2490
    %v2492 = vsel %vm365, %v2480, 0.0
    %2493 = vadd.xlane.f32.xlu0 %v2492
    %v2494 = vpop.xlane.xlu0 %2493
    %v2495 = vsel %vm365, %v2481, 0.0
    %2496 = vadd.xlane.f32.xlu0 %v2495
    %v2497 = vpop.xlane.xlu0 %2496
    %v2498 = vsel %vm365, %v2482, 0.0
    %2499 = vadd.xlane.f32.xlu0 %v2498
    %v2500 = vpop.xlane.xlu0 %2499
    %v2501 = vsel %vm365, %v2483, 0.0
    %2502 = vadd.xlane.f32.xlu0 %v2501
    %v2503 = vpop.xlane.xlu0 %2502
    %v2504 = vsel %vm365, %v2484, 0.0
    %2505 = vadd.xlane.f32.xlu0 %v2504
    %v2506 = vpop.xlane.xlu0 %2505
    %v2507 = vsel %vm365, %v2485, 0.0
    %2508 = vadd.xlane.f32.xlu0 %v2507
    %v2509 = vpop.xlane.xlu0 %2508
    %v2518 = vlaneseq
    %v2519 = vand.u32 %v2518, 127
    %v2520 = vlaneseq
    %v2521 = vshrl.u32 %v2520, 7
    %v2522 = vsub.s32 %v2519, %v2521
    %v2523 = vrot.slane %v2488, %v2522
    %v2524 = vlaneseq
    %v2525 = vshrl.u32 %v2524, 7
    %v2526 = vsub.s32 %v2519, %v2525
    %v2527 = vrot.slane %v2491, %v2526
    %v2528 = vlaneseq
    %v2529 = vshrl.u32 %v2528, 7
    %v2530 = vsub.s32 %v2519, %v2529
    %v2531 = vrot.slane %v2494, %v2530
    %v2532 = vlaneseq
    %v2533 = vshrl.u32 %v2532, 7
    %v2534 = vsub.s32 %v2519, %v2533
    %v2535 = vrot.slane %v2497, %v2534
    %v2536 = vlaneseq
    %v2537 = vshrl.u32 %v2536, 7
    %v2538 = vsub.s32 %v2519, %v2537
    %v2539 = vrot.slane %v2500, %v2538
    %v2540 = vlaneseq
    %v2541 = vshrl.u32 %v2540, 7
    %v2542 = vsub.s32 %v2519, %v2541
    %v2543 = vrot.slane %v2503, %v2542
    %v2544 = vlaneseq
    %v2545 = vshrl.u32 %v2544, 7
    %v2546 = vsub.s32 %v2519, %v2545
    %v2547 = vrot.slane %v2506, %v2546
    %v2548 = vlaneseq
    %v2549 = vshrl.u32 %v2548, 7
    %v2550 = vsub.s32 %v2519, %v2549
    %v2551 = vrot.slane %v2509, %v2550
    %vm2552 = vcmask 1041409
    %v2553 = vsel %vm2552, %v2527, %v2523
    %vm2554 = vcmask 1042434
    %v2555 = vsel %vm2554, %v2531, %v2553
    %vm2556 = vcmask 1043459
    %v2557 = vsel %vm2556, %v2535, %v2555
    %vm2558 = vcmask 1044484
    %v2559 = vsel %vm2558, %v2539, %v2557
    %vm2560 = vcmask 1045509
    %v2561 = vsel %vm2560, %v2543, %v2559
    %vm2562 = vcmask 1046534
    %v2563 = vsel %vm2562, %v2547, %v2561
    %vm2564 = vcmask 1047559
    %v2565 = vsel %vm2564, %v2551, %v2563
    %2567 = vxpose.xlu0.b32.start [1/16] %v2565, 128
    %2568 = vxpose.xlu0.b32.cont [2/16] 0.0, 128
    %2569 = vxpose.xlu0.b32.cont [3/16] 0.0, 128
    %2570 = vxpose.xlu0.b32.cont [4/16] 0.0, 128
    %2571 = vxpose.xlu0.b32.cont [5/16] 0.0, 128
    %2572 = vxpose.xlu0.b32.cont [6/16] 0.0, 128
    %2573 = vxpose.xlu0.b32.cont [7/16] 0.0, 128
    %2574 = vxpose.xlu0.b32.cont [8/16] 0.0, 128
    %2575 = vxpose.xlu0.b32.cont [9/16] 0.0, 128
    %2576 = vxpose.xlu0.b32.cont [10/16] 0.0, 128
    %2577 = vxpose.xlu0.b32.cont [11/16] 0.0, 128
    %2578 = vxpose.xlu0.b32.cont [12/16] 0.0, 128
    %2579 = vxpose.xlu0.b32.cont [13/16] 0.0, 128
    %2580 = vxpose.xlu0.b32.cont [14/16] 0.0, 128
    %2581 = vxpose.xlu0.b32.cont [15/16] 0.0, 128
    %2582 = vxpose.xlu0.b32.end [16/16] 0.0, 128
    %v2583 = vpop.trf.xlu0
    %v2584 = vpop.trf.xlu0
    %v2585 = vpop.trf.xlu0
    %v2586 = vpop.trf.xlu0
    %v2587 = vpop.trf.xlu0
    %v2588 = vpop.trf.xlu0
    %v2589 = vpop.trf.xlu0
    %v2590 = vpop.trf.xlu0
    %v2591 = vpop.trf.xlu0
    %v2592 = vpop.trf.xlu0
    %v2593 = vpop.trf.xlu0
    %v2594 = vpop.trf.xlu0
    %v2595 = vpop.trf.xlu0
    %v2596 = vpop.trf.xlu0
    %v2597 = vpop.trf.xlu0
    %v2598 = vpop.trf.xlu0
    %v2599 = vld [vmem:[#allocation6] sm:$0xff]
    %vm2600 = vcmp.gt.f32.partialorder %v2599, 0.0
    %v2601 = vsel %vm2600, %v2583, -1e+09
    %vm2602 = vcmask 64512
    %v2603 = vsel %vm2602, %v2601, -inf
    %2604 = vmax.xlane.f32.xlu0 %v2603
    %v2605 = vpop.xlane.xlu0 %2604
    %v2606 = vsub.f32 %v2601, %v2605
    %v2607 = vmul.f32 %v2606, 1.442695
    %v2608 = vpow.pop %v2607
    %v2609 = vsel %vm2602, %v2608, 0.0
    %2610 = vadd.xlane.f32.xlu0 %v2609
    %v2611 = vpop.xlane.xlu0 %2610
    %v2612 = vrcp.pop %v2611
    %v2613 = vmul.f32 %v2608, %v2612
    %2614 = vst.msk [vmem:[#allocation22] sm:$0xff] %vm2602, %v2613
    %2615 = vxpose.xlu0.b32.start [1/16] %v2613, 128
    %2616 = vxpose.xlu0.b32.cont [2/16] 0.0, 128
    %2617 = vxpose.xlu0.b32.cont [3/16] 0.0, 128
    %2618 = vxpose.xlu0.b32.cont [4/16] 0.0, 128
    %2619 = vxpose.xlu0.b32.cont [5/16] 0.0, 128
    %2620 = vxpose.xlu0.b32.cont [6/16] 0.0, 128
    %2621 = vxpose.xlu0.b32.cont [7/16] 0.0, 128
    %2622 = vxpose.xlu0.b32.cont [8/16] 0.0, 128
    %2623 = vxpose.xlu0.b32.cont [9/16] 0.0, 128
    %2624 = vxpose.xlu0.b32.cont [10/16] 0.0, 128
    %2625 = vxpose.xlu0.b32.cont [11/16] 0.0, 128
    %2626 = vxpose.xlu0.b32.cont [12/16] 0.0, 128
    %2627 = vxpose.xlu0.b32.cont [13/16] 0.0, 128
    %2628 = vxpose.xlu0.b32.cont [14/16] 0.0, 128
    %2629 = vxpose.xlu0.b32.cont [15/16] 0.0, 128
    %2630 = vxpose.xlu0.b32.end [16/16] 0.0, 128
    %v2631 = vpop.trf.xlu0
    %v2632 = vpop.trf.xlu0
    %v2633 = vpop.trf.xlu0
    %v2634 = vpop.trf.xlu0
    %v2635 = vpop.trf.xlu0
    %v2636 = vpop.trf.xlu0
    %v2637 = vpop.trf.xlu0
    %v2638 = vpop.trf.xlu0
    %v2639 = vpop.trf.xlu0
    %v2640 = vpop.trf.xlu0
    %v2641 = vpop.trf.xlu0
    %v2642 = vpop.trf.xlu0
    %v2643 = vpop.trf.xlu0
    %v2644 = vpop.trf.xlu0
    %v2645 = vpop.trf.xlu0
    %v2646 = vpop.trf.xlu0
    %v2647 = vlaneseq
    %v2648 = vshrl.u32 %v2647, 7
    %v2649 = vsub.s32 0, %v2648
    %v2650 = vrot.slane %v2631, %v2649
    %2652 = vbcast.lane.b32.xlu0 %v2650, 256
    %v2653 = vpop.permute.xlu0 %2652
    %v2654 = vlaneseq
    %v2655 = vshrl.u32 %v2654, 7
    %v2656 = vsub.s32 1, %v2655
    %v2657 = vrot.slane %v2631, %v2656
    %2659 = vbcast.lane.b32.xlu0 %v2657, 256
    %v2660 = vpop.permute.xlu0 %2659
    %v2661 = vlaneseq
    %v2662 = vshrl.u32 %v2661, 7
    %v2663 = vsub.s32 2, %v2662
    %v2664 = vrot.slane %v2631, %v2663
    %2666 = vbcast.lane.b32.xlu0 %v2664, 256
    %v2667 = vpop.permute.xlu0 %2666
    %v2668 = vlaneseq
    %v2669 = vshrl.u32 %v2668, 7
    %v2670 = vsub.s32 3, %v2669
    %v2671 = vrot.slane %v2631, %v2670
    %2673 = vbcast.lane.b32.xlu0 %v2671, 256
    %v2674 = vpop.permute.xlu0 %2673
    %v2675 = vlaneseq
    %v2676 = vshrl.u32 %v2675, 7
    %v2677 = vsub.s32 4, %v2676
    %v2678 = vrot.slane %v2631, %v2677
    %2680 = vbcast.lane.b32.xlu0 %v2678, 256
    %v2681 = vpop.permute.xlu0 %2680
    %v2682 = vlaneseq
    %v2683 = vshrl.u32 %v2682, 7
    %v2684 = vsub.s32 5, %v2683
    %v2685 = vrot.slane %v2631, %v2684
    %2687 = vbcast.lane.b32.xlu0 %v2685, 256
    %v2688 = vpop.permute.xlu0 %2687
    %v2689 = vlaneseq
    %v2690 = vshrl.u32 %v2689, 7
    %v2691 = vsub.s32 6, %v2690
    %v2692 = vrot.slane %v2631, %v2691
    %2694 = vbcast.lane.b32.xlu0 %v2692, 256
    %v2695 = vpop.permute.xlu0 %2694
    %v2696 = vlaneseq
    %v2697 = vshrl.u32 %v2696, 7
    %v2698 = vsub.s32 7, %v2697
    %v2699 = vrot.slane %v2631, %v2698
    %2701 = vbcast.lane.b32.xlu0 %v2699, 256
    %v2702 = vpop.permute.xlu0 %2701
    %v2703 = vld [vmem:[#allocation4] sm:$0xff]
    %v2704 = vld [vmem:[#allocation4 + $0x8] sm:$0xff]
    %v2705 = vld [vmem:[#allocation4 + $0x10] sm:$0xff]
    %v2706 = vld [vmem:[#allocation4 + $0x18] sm:$0xff]
    %v2707 = vld [vmem:[#allocation4 + $0x20] sm:$0xff]
    %v2708 = vld [vmem:[#allocation4 + $0x28] sm:$0xff]
    %v2709 = vld [vmem:[#allocation4 + $0x30] sm:$0xff]
    %v2710 = vld [vmem:[#allocation4 + $0x38] sm:$0xff]
    %v2711 = vmul.f32 %v2653, %v2703
    %v2712 = vmul.f32 %v2660, %v2704
    %v2713 = vmul.f32 %v2667, %v2705
    %v2714 = vmul.f32 %v2674, %v2706
    %v2715 = vmul.f32 %v2681, %v2707
    %v2716 = vmul.f32 %v2688, %v2708
    %v2717 = vmul.f32 %v2695, %v2709
    %v2718 = vmul.f32 %v2702, %v2710
    %v2719 = vsel %vm365, %v2711, 0.0
    %v2720 = vsel %vm365, %v2712, 0.0
    %v2721 = vadd.f32 %v2719, %v2720
    %v2722 = vsel %vm365, %v2713, 0.0
    %v2723 = vadd.f32 %v2721, %v2722
    %v2724 = vsel %vm365, %v2714, 0.0
    %v2725 = vadd.f32 %v2723, %v2724
    %v2726 = vsel %vm365, %v2715, 0.0
    %v2727 = vadd.f32 %v2725, %v2726
    %v2728 = vsel %vm365, %v2716, 0.0
    %v2729 = vadd.f32 %v2727, %v2728
    %v2730 = vsel %vm365, %v2717, 0.0
    %v2731 = vadd.f32 %v2729, %v2730
    %v2732 = vsel %vm365, %v2718, 0.0
    %v2733 = vadd.f32 %v2731, %v2732
    %v2734 = vld [vmem:[#allocation5] sm:$0xff]
    %v2735 = vld [vmem:[#allocation5 + $0x8] sm:$0xff]
    %v2736 = vld [vmem:[#allocation5 + $0x10] sm:$0xff]
    %v2737 = vld [vmem:[#allocation5 + $0x18] sm:$0xff]
    %v2738 = vld [vmem:[#allocation5 + $0x20] sm:$0xff]
    %v2739 = vld [vmem:[#allocation5 + $0x28] sm:$0xff]
    %v2740 = vld [vmem:[#allocation5 + $0x30] sm:$0xff]
    %v2741 = vld [vmem:[#allocation5 + $0x38] sm:$0xff]
    %v2742 = vmul.f32 %v2653, %v2734
    %v2743 = vmul.f32 %v2660, %v2735
    %v2744 = vmul.f32 %v2667, %v2736
    %v2745 = vmul.f32 %v2674, %v2737
    %v2746 = vmul.f32 %v2681, %v2738
    %v2747 = vmul.f32 %v2688, %v2739
    %v2748 = vmul.f32 %v2695, %v2740
    %v2749 = vmul.f32 %v2702, %v2741
    %v2750 = vsel %vm365, %v2742, 0.0
    %v2751 = vsel %vm365, %v2743, 0.0
    %v2752 = vadd.f32 %v2750, %v2751
    %v2753 = vsel %vm365, %v2744, 0.0
    %v2754 = vadd.f32 %v2752, %v2753
    %v2755 = vsel %vm365, %v2745, 0.0
    %v2756 = vadd.f32 %v2754, %v2755
    %v2757 = vsel %vm365, %v2746, 0.0
    %v2758 = vadd.f32 %v2756, %v2757
    %v2759 = vsel %vm365, %v2747, 0.0
    %v2760 = vadd.f32 %v2758, %v2759
    %v2761 = vsel %vm365, %v2748, 0.0
    %v2762 = vadd.f32 %v2760, %v2761
    %v2763 = vsel %vm365, %v2749, 0.0
    %v2764 = vadd.f32 %v2762, %v2763
    %v2765 = vld [vmem:[#allocation17] sm:$0xff]
    %v2766 = vld [vmem:[#allocation17 + $0x8] sm:$0xff]
    %v2767 = vld [vmem:[#allocation17 + $0x10] sm:$0xff]
    %v2768 = vld [vmem:[#allocation17 + $0x18] sm:$0xff]
    %v2769 = vld [vmem:[#allocation18] sm:$0xff]
    %v2770 = vld [vmem:[#allocation18 + $0x8] sm:$0xff]
    %v2771 = vld [vmem:[#allocation18 + $0x10] sm:$0xff]
    %v2772 = vld [vmem:[#allocation18 + $0x18] sm:$0xff]
    %v2774 = vsel %vm365, %v2764, 0
    %2776 = vmatprep.subr.mxu0 0.0
    %2777 = vmatpush1.msra.mxu0 %v2769
    %2778 = vmatprep.subr.mxu0 0.0
    %2779 = vmatpush1.msra.mxu0 %v2770
    %2780 = vmatprep.subr.mxu0 0.0
    %2781 = vmatpush1.msra.mxu0 %v2771
    %2782 = vmatprep.subr.mxu0 0.0
    %2783 = vmatpush1.msra.mxu0 %v2772
    %2784 = vmatprep.subr.mxu0 0.0
    %2785 = vmatpush1.msra.mxu0 0.0
    %2786 = vmatprep.subr.mxu0 0.0
    %2787 = vmatpush1.msra.mxu0 0.0
    %2788 = vmatprep.subr.mxu0 0.0
    %2789 = vmatpush1.msra.mxu0 0.0
    %2790 = vmatprep.subr.mxu0 0.0
    %2791 = vmatpush1.msra.mxu0 0.0
    %2792 = vmatprep.subr.mxu0 0.0
    %2793 = vmatpush1.msra.mxu0 0.0
    %2794 = vmatprep.subr.mxu0 0.0
    %2795 = vmatpush1.msra.mxu0 0.0
    %2796 = vmatprep.subr.mxu0 0.0
    %2797 = vmatpush1.msra.mxu0 0.0
    %2798 = vmatprep.subr.mxu0 0.0
    %2799 = vmatpush1.msra.mxu0 0.0
    %2800 = vmatprep.subr.mxu0 0.0
    %2801 = vmatpush1.msra.mxu0 0.0
    %2802 = vmatprep.subr.mxu0 0.0
    %2803 = vmatpush1.msra.mxu0 0.0
    %2804 = vmatprep.subr.mxu0 0.0
    %2805 = vmatpush1.msra.mxu0 0.0
    %2806 = vmatprep.subr.mxu0 0.0
    %2807 = vmatpush1.msra.mxu0 0.0
    %2808 = vmatprep.subr.mxu0 0.0
    %2809 = vmatpush1.msra.mxu0 0.0
    %2810 = vmatprep.subr.mxu0 0.0
    %2811 = vmatpush1.msra.mxu0 0.0
    %2812 = vmatprep.subr.mxu0 0.0
    %2813 = vmatpush1.msra.mxu0 0.0
    %2814 = vmatprep.subr.mxu0 0.0
    %2815 = vmatpush1.msra.mxu0 0.0
    %2816 = vmatprep.subr.mxu0 0.0
    %2817 = vmatpush1.msra.mxu0 0.0
    %2818 = vmatprep.subr.mxu0 0.0
    %2819 = vmatpush1.msra.mxu0 0.0
    %2820 = vmatprep.subr.mxu0 0.0
    %2821 = vmatpush1.msra.mxu0 0.0
    %2822 = vmatprep.subr.mxu0 0.0
    %2823 = vmatpush1.msra.mxu0 0.0
    %2824 = vmatprep.subr.mxu0 0.0
    %2825 = vmatpush1.msra.mxu0 0.0
    %2826 = vmatprep.subr.mxu0 0.0
    %2827 = vmatpush1.msra.mxu0 0.0
    %2828 = vmatprep.subr.mxu0 0.0
    %2829 = vmatpush1.msra.mxu0 0.0
    %2830 = vmatprep.subr.mxu0 0.0
    %2831 = vmatpush1.msra.mxu0 0.0
    %2832 = vmatprep.subr.mxu0 0.0
    %2833 = vmatpush1.msra.mxu0 0.0
    %2834 = vmatprep.subr.mxu0 0.0
    %2835 = vmatpush1.msra.mxu0 0.0
    %2836 = vmatprep.subr.mxu0 0.0
    %2837 = vmatpush1.msra.mxu0 0.0
    %2838 = vmatprep.subr.mxu0 0.0
    %2839 = vmatpush1.msra.mxu0 0.0
    %2840 = vmatprep.mubr.f32.mxu0 0.0
    %2841 = vmatmul.mubr.f32.gmra.mrb[0].mxu0 %v2774
    %v2842 = vpop.f32.mrb[0].mxu0
    %v2843 = vadd.f32 0.0, %v2842
    %v2844 = vpop.f32.mrb[0].mxu0
    %2845 = vdwg.mxu0
    %v2847 = vsel %vm365, %v2733, 0
    %2849 = vmatprep.subr.mxu0 0.0
    %2850 = vmatpush1.msra.mxu0 %v2765
    %2851 = vmatprep.subr.mxu0 0.0
    %2852 = vmatpush1.msra.mxu0 %v2766
    %2853 = vmatprep.subr.mxu0 0.0
    %2854 = vmatpush1.msra.mxu0 %v2767
    %2855 = vmatprep.subr.mxu0 0.0
    %2856 = vmatpush1.msra.mxu0 %v2768
    %2857 = vmatprep.subr.mxu0 0.0
    %2858 = vmatpush1.msra.mxu0 0.0
    %2859 = vmatprep.subr.mxu0 0.0
    %2860 = vmatpush1.msra.mxu0 0.0
    %2861 = vmatprep.subr.mxu0 0.0
    %2862 = vmatpush1.msra.mxu0 0.0
    %2863 = vmatprep.subr.mxu0 0.0
    %2864 = vmatpush1.msra.mxu0 0.0
    %2865 = vmatprep.subr.mxu0 0.0
    %2866 = vmatpush1.msra.mxu0 0.0
    %2867 = vmatprep.subr.mxu0 0.0
    %2868 = vmatpush1.msra.mxu0 0.0
    %2869 = vmatprep.subr.mxu0 0.0
    %2870 = vmatpush1.msra.mxu0 0.0
    %2871 = vmatprep.subr.mxu0 0.0
    %2872 = vmatpush1.msra.mxu0 0.0
    %2873 = vmatprep.subr.mxu0 0.0
    %2874 = vmatpush1.msra.mxu0 0.0
    %2875 = vmatprep.subr.mxu0 0.0
    %2876 = vmatpush1.msra.mxu0 0.0
    %2877 = vmatprep.subr.mxu0 0.0
    %2878 = vmatpush1.msra.mxu0 0.0
    %2879 = vmatprep.subr.mxu0 0.0
    %2880 = vmatpush1.msra.mxu0 0.0
    %2881 = vmatprep.subr.mxu0 0.0
    %2882 = vmatpush1.msra.mxu0 0.0
    %2883 = vmatprep.subr.mxu0 0.0
    %2884 = vmatpush1.msra.mxu0 0.0
    %2885 = vmatprep.subr.mxu0 0.0
    %2886 = vmatpush1.msra.mxu0 0.0
    %2887 = vmatprep.subr.mxu0 0.0
    %2888 = vmatpush1.msra.mxu0 0.0
    %2889 = vmatprep.subr.mxu0 0.0
    %2890 = vmatpush1.msra.mxu0 0.0
    %2891 = vmatprep.subr.mxu0 0.0
    %2892 = vmatpush1.msra.mxu0 0.0
    %2893 = vmatprep.subr.mxu0 0.0
    %2894 = vmatpush1.msra.mxu0 0.0
    %2895 = vmatprep.subr.mxu0 0.0
    %2896 = vmatpush1.msra.mxu0 0.0
    %2897 = vmatprep.subr.mxu0 0.0
    %2898 = vmatpush1.msra.mxu0 0.0
    %2899 = vmatprep.subr.mxu0 0.0
    %2900 = vmatpush1.msra.mxu0 0.0
    %2901 = vmatprep.subr.mxu0 0.0
    %2902 = vmatpush1.msra.mxu0 0.0
    %2903 = vmatprep.subr.mxu0 0.0
    %2904 = vmatpush1.msra.mxu0 0.0
    %2905 = vmatprep.subr.mxu0 0.0
    %2906 = vmatpush1.msra.mxu0 0.0
    %2907 = vmatprep.subr.mxu0 0.0
    %2908 = vmatpush1.msra.mxu0 0.0
    %2909 = vmatprep.subr.mxu0 0.0
    %2910 = vmatpush1.msra.mxu0 0.0
    %2911 = vmatprep.subr.mxu0 0.0
    %2912 = vmatpush1.msra.mxu0 0.0
    %2913 = vmatprep.mubr.f32.mxu0 0.0
    %2914 = vmatmul.mubr.f32.gmra.mrb[0].mxu0 %v2847
    %v2915 = vpop.f32.mrb[0].mxu0
    %v2916 = vadd.f32 %v2843, %v2915
    %v2917 = vpop.f32.mrb[0].mxu0
    %2918 = vdwg.mxu0
    %v2919 = vld [vmem:[%s13] sm:$0x1]
    %v2921 = vlaneseq
    %v2922 = vshrl.u32 %v2921, 7
    %v2923 = vsub.s32 0, %v2922
    %v2924 = vrot.slane %v2919, %v2923
    %v2926 = vadd.f32 %v2916, %v2924
    %v2927 = vld [vmem:[#allocation20] sm:$0xff]
    %v2928 = vld [vmem:[#allocation20 + $0x8] sm:$0xff]
    %v2929 = vld [vmem:[#allocation20 + $0x10] sm:$0xff]
    %v2930 = vld [vmem:[#allocation20 + $0x18] sm:$0xff]
    %v2931 = vld [vmem:[%s15] sm:$0x1]
    %v2933 = vlaneseq
    %v2934 = vshrl.u32 %v2933, 7
    %v2935 = vsub.s32 0, %v2934
    %v2936 = vrot.slane %v2931, %v2935
    %v2939 = vsel %vm365, %v2926, 0
    %2941 = vmatprep.subr.mxu0 0.0
    %2942 = vmatpush1.msra.mxu0 %v2927
    %2943 = vmatprep.subr.mxu0 0.0
    %2944 = vmatpush1.msra.mxu0 %v2928
    %2945 = vmatprep.subr.mxu0 0.0
    %2946 = vmatpush1.msra.mxu0 %v2929
    %2947 = vmatprep.subr.mxu0 0.0
    %2948 = vmatpush1.msra.mxu0 %v2930
    %2949 = vmatprep.subr.mxu0 0.0
    %2950 = vmatpush1.msra.mxu0 0.0
    %2951 = vmatprep.subr.mxu0 0.0
    %2952 = vmatpush1.msra.mxu0 0.0
    %2953 = vmatprep.subr.mxu0 0.0
    %2954 = vmatpush1.msra.mxu0 0.0
    %2955 = vmatprep.subr.mxu0 0.0
    %2956 = vmatpush1.msra.mxu0 0.0
    %2957 = vmatprep.subr.mxu0 0.0
    %2958 = vmatpush1.msra.mxu0 0.0
    %2959 = vmatprep.subr.mxu0 0.0
    %2960 = vmatpush1.msra.mxu0 0.0
    %2961 = vmatprep.subr.mxu0 0.0
    %2962 = vmatpush1.msra.mxu0 0.0
    %2963 = vmatprep.subr.mxu0 0.0
    %2964 = vmatpush1.msra.mxu0 0.0
    %2965 = vmatprep.subr.mxu0 0.0
    %2966 = vmatpush1.msra.mxu0 0.0
    %2967 = vmatprep.subr.mxu0 0.0
    %2968 = vmatpush1.msra.mxu0 0.0
    %2969 = vmatprep.subr.mxu0 0.0
    %2970 = vmatpush1.msra.mxu0 0.0
    %2971 = vmatprep.subr.mxu0 0.0
    %2972 = vmatpush1.msra.mxu0 0.0
    %2973 = vmatprep.subr.mxu0 0.0
    %2974 = vmatpush1.msra.mxu0 0.0
    %2975 = vmatprep.subr.mxu0 0.0
    %2976 = vmatpush1.msra.mxu0 0.0
    %2977 = vmatprep.subr.mxu0 0.0
    %2978 = vmatpush1.msra.mxu0 0.0
    %2979 = vmatprep.subr.mxu0 0.0
    %2980 = vmatpush1.msra.mxu0 0.0
    %2981 = vmatprep.subr.mxu0 0.0
    %2982 = vmatpush1.msra.mxu0 0.0
    %2983 = vmatprep.subr.mxu0 0.0
    %2984 = vmatpush1.msra.mxu0 0.0
    %2985 = vmatprep.subr.mxu0 0.0
    %2986 = vmatpush1.msra.mxu0 0.0
    %2987 = vmatprep.subr.mxu0 0.0
    %2988 = vmatpush1.msra.mxu0 0.0
    %2989 = vmatprep.subr.mxu0 0.0
    %2990 = vmatpush1.msra.mxu0 0.0
    %2991 = vmatprep.subr.mxu0 0.0
    %2992 = vmatpush1.msra.mxu0 0.0
    %2993 = vmatprep.subr.mxu0 0.0
    %2994 = vmatpush1.msra.mxu0 0.0
    %2995 = vmatprep.subr.mxu0 0.0
    %2996 = vmatpush1.msra.mxu0 0.0
    %2997 = vmatprep.subr.mxu0 0.0
    %2998 = vmatpush1.msra.mxu0 0.0
    %2999 = vmatprep.subr.mxu0 0.0
    %3000 = vmatpush1.msra.mxu0 0.0
    %3001 = vmatprep.subr.mxu0 0.0
    %3002 = vmatpush1.msra.mxu0 0.0
    %3003 = vmatprep.subr.mxu0 0.0
    %3004 = vmatpush1.msra.mxu0 0.0
    %3005 = vmatprep.mubr.f32.mxu0 0.0
    %3006 = vmatmul.mubr.f32.gmra.mrb[0].mxu0 %v2939
    %v3007 = vpop.f32.mrb[0].mxu0
    %v3008 = vadd.f32 %v2936, %v3007
    %v3009 = vpop.f32.mrb[0].mxu0
    %3010 = vdwg.mxu0
    %3011 = vst [vmem:[#allocation21] sm:$0xff] %v3008
    // Predicated region
    $region102: #{tpu_custom_call.1} parent=1 // pred_check
      _
    $region103: #{tpu_custom_call.1} parent=1 // pred_check_branch
      %3013 = sbr.rel (0) target = $region105
    $region104: #{tpu_custom_call.1} parent=1 // pred_region
      %s3015 = ssub.s32 128, 128
      %3016 = vsyncadd [#allocation8], %s3015
      %s3018 = sshll.u32 [#allocation21], 4
      %s3019 = int_to_ptr.vmem [resolvable:$true] %s3018
      %3021 = dma.vmem_to_hbm [thread:$0]  %s3019, 128, %s16, [#allocation8]
    $region105: #{tpu_custom_call.1} parent=1 // pred_fallthru
      _
    // Predicated region
    $region106: #{tpu_custom_call.1} parent=1 // pred_check
      _
    $region107: #{tpu_custom_call.1} parent=1 // pred_check_branch
      %3023 = sbr.rel (0) target = $region109
    $region108: #{tpu_custom_call.1} parent=1 // pred_region
      %s3025 = ssub.s32 128, 128
      %3026 = vsyncadd [#allocation23], %s3025
      %s3028 = sshll.u32 [#allocation22], 4
      %s3029 = int_to_ptr.vmem [resolvable:$true] %s3028
      %3031 = dma.vmem_to_hbm [thread:$0]  %s3029, 128, %s17, [#allocation23]
    $region109: #{tpu_custom_call.1} parent=1 // pred_fallthru
      _
    // Predicated region
    $region110: #{tpu_custom_call.1} parent=1 // pred_check
      _
    $region111: #{tpu_custom_call.1} parent=1 // pred_check_branch
      %3033 = sbr.rel (0) target = $region113
    $region112: #{tpu_custom_call.1} parent=1 // pred_region
      %3034 = dma.done [#allocation8], 128
    $region113: #{tpu_custom_call.1} parent=1 // pred_fallthru
      _
    // Predicated region
    $region114: #{tpu_custom_call.1} parent=1 // pred_check
      _
    $region115: #{tpu_custom_call.1} parent=1 // pred_check_branch
      %3036 = sbr.rel (0) target = $region117
    $region116: #{tpu_custom_call.1} parent=1 // pred_region
      %3037 = dma.done [#allocation23], 128
    $region117: #{tpu_custom_call.1} parent=1 // pred_fallthru
      _
    %3038 = vsyncpa [#allocation7], 1
    %3039 = vsyncpa [#allocation10], 1
    %3040 = vsyncpa [#allocation13], 1
    %3041 = vsyncpa [#allocation16], 1
    %3042 = vsyncpa [#allocation19], 1
    %3043 = vsyncpa [#allocation8], 1
    %3044 = vsyncpa [#allocation23], 1

</llo_original>
